<compile_context>
chip_gen: v7x
topology: tpu7x:2x2x1
jax: 0.10.0
libtpu: 0.0.40
codegen_flags: <defaults>
</compile_context>

<pallas_src>
import functools

import jax
import jax.numpy as jnp
from jax.experimental import pallas as pl
from jax.experimental.pallas import tpu as pltpu


def _double_conv_kernel(xpad_ref, w1_ref, s1_ref, b1_ref, w2_ref, s2_ref,
                        b2_ref, o_ref, col1_ref, ypad_ref, col2_ref,
                        *, Nb, D, H, W, Cin, Cmid):
    """One block of Nb batch elements per grid step.

    xpad_ref: (Nb, D+2, H+2, W*Cin)   input with D/H halo (compute dtype)
    w1_ref:   (9*W*Cin, W*Cmid)       conv1 banded 2D weight (compute dtype)
    s1/b1:    (1, W*Cmid)             folded BN1 scale / bias (f32)
    w2_ref:   (9*W*Cmid, W*Cout)      conv2 banded 2D weight (compute dtype)
    s2/b2:    (1, W*Cout)             folded BN2 scale / bias (f32)
    o_ref:    (Nb, D*H, W*Cout)       lane-dense output block
    col1_ref: (Nb*D*H, 9*W*Cin)       conv1 im2col scratch (compute dtype)
    ypad_ref: (Nb, D+2, H+2, W*Cmid)  y1 halo staging (compute dtype)
    col2_ref: (Nb*D*H, 9*W*Cmid)      conv2 im2col scratch (compute dtype)
    """
    DH = D * H
    WCi = W * Cin
    WCm = W * Cmid

    # ---- conv1 im2col, built in-kernel from the halo-padded input block.
    # (Wrapper only pads by 1 voxel; no 9x-expanded HBM copy is ever DMA'd.)
    for b in range(Nb):
        for kd in range(3):
            for kh in range(3):
                t = kd * 3 + kh
                slab = xpad_ref[b, kd:kd + D, kh:kh + H, :]      # (D, H, WCi)
                col1_ref[b * DH:(b + 1) * DH, t * WCi:(t + 1) * WCi] = (
                    slab.reshape(DH, WCi))

    # ---- conv1: one big-K matmul (K = 9*W*Cin, M = Nb*D*H); MXU accumulation.
    acc1 = jnp.dot(col1_ref[...], w1_ref[...],
                   preferred_element_type=jnp.float32)
    # Folded BN1 + ReLU in f32 on a lane-dense (Nb*D*H, W*Cmid) tile.
    y1 = jnp.maximum(acc1 * s1_ref[...] + b1_ref[...], 0.0)
    # Single cast to the staging/compute dtype before the 9-tap reuse.
    y1 = y1.astype(ypad_ref.dtype).reshape(Nb, D, H, WCm)

    # ---- stage y1 with a D/H halo.  The W padding is folded into the banded
    # weights, so every interior row is a full 128-lane store.  Only the halo
    # border strips are re-zeroed each step (interior is fully overwritten),
    # which keeps the batch axis safely "parallel"-shardable.
    zdt = ypad_ref.dtype
    for b in range(Nb):
        ypad_ref[b, 0:1, :, :] = jnp.zeros((1, H + 2, WCm), zdt)
        ypad_ref[b, D + 1:D + 2, :, :] = jnp.zeros((1, H + 2, WCm), zdt)
        ypad_ref[b, 1:D + 1, 0:1, :] = jnp.zeros((D, 1, WCm), zdt)
        ypad_ref[b, 1:D + 1, H + 1:H + 2, :] = jnp.zeros((D, 1, WCm), zdt)
        ypad_ref[b, 1:D + 1, 1:H + 1, :] = y1[b]

    # ---- conv2 im2col: 9 shifted slabs stored at lane offsets that are
    # multiples of W*Cmid (= 128 here) -> full-width, unmasked stores.
    for b in range(Nb):
        for kd in range(3):
            for kh in range(3):
                t = kd * 3 + kh
                slab = ypad_ref[b, kd:kd + D, kh:kh + H, :]      # (D, H, WCm)
                col2_ref[b * DH:(b + 1) * DH, t * WCm:(t + 1) * WCm] = (
                    slab.reshape(DH, WCm))

    # ---- conv2: one big-K matmul (K = 9*W*Cmid, M = Nb*D*H).
    acc2 = jnp.dot(col2_ref[...], w2_ref[...],
                   preferred_element_type=jnp.float32)
    z = jnp.maximum(acc2 * s2_ref[...] + b2_ref[...], 0.0)
    o_ref[...] = z.reshape(Nb, DH, o_ref.shape[-1]).astype(o_ref.dtype)


def _fold_bn(bn, eps):
    gamma, beta, mean, var = bn
    scale = (gamma / jnp.sqrt(var + eps)).astype(jnp.float32)
    bias = (beta - mean * scale).astype(jnp.float32)
    return scale, bias


def _band_weight(w_pt, W):
    """PyTorch (Cout, Cin, 3, 3, 3) conv weight -> dense (9*W*Cin, W*Cout).

    Row index = ((kd*3 + kh)*W + wi)*Cin + ci, col index = w*Cout + co, value
    w_pt[co, ci, kd, kh, wi - w + 1] when |wi - w| <= 1 else 0.  The zero band
    implements the W-axis padding=1, so only D/H need an explicit halo.
    """
    Cin, Cout = w_pt.shape[1], w_pt.shape[0]
    wt = jnp.transpose(w_pt, (2, 3, 4, 1, 0))              # (kd, kh, kw, Cin, Cout)
    wi = jnp.arange(W)[None, :, None]
    wo = jnp.arange(W)[None, None, :]
    kw = jnp.arange(3)[:, None, None]
    sel = (wi == wo + kw - 1).astype(wt.dtype)              # (3, W, W) band selector
    wb = jnp.einsum('dhkio,kvw->dhviwo', wt, sel,
                    precision=jax.lax.Precision.HIGHEST)    # (3,3,W,Cin,W,Cout)
    return wb.reshape(9 * W * Cin, W * Cout)


def double_conv(x_ncdhw, w1_pt, bn1, w2_pt, bn2, eps=1e-5,
                compute_dtype=jnp.bfloat16, out_dtype=None, batch_block=None):
    """x_ncdhw: (N, Cin, D, H, W) PyTorch layout; returns (N, Cout, D, H, W).

    compute_dtype: dtype of matmul operands / im2col + staging scratches
      (default bf16: native MXU rate on v6e/v7x, half the DMA/VMEM bytes on
      all generations; expect ~bf16 rounding in the result).  Accumulation and
      BN/ReLU always stay f32.
    out_dtype: output dtype (defaults to the input dtype).
    batch_block: batch elements folded into each grid step (auto: targets a
      matmul M = batch_block*D*H of at least 128 rows).
    """
    N, Cin, D, H, W = x_ncdhw.shape
    Cmid, Cout = w1_pt.shape[0], w2_pt.shape[0]
    out_dtype = x_ncdhw.dtype if out_dtype is None else out_dtype
    DH, WCi, WCm, WCo = D * H, W * Cin, W * Cmid, W * Cout
    K1, K2 = 9 * WCi, 9 * WCm

    if batch_block is None:
        batch_block = min(N, max(1, -(-128 // DH)))   # M = Nb*DH >= 128 if possible
        while N % batch_block:
            batch_block -= 1
    assert N % batch_block == 0, (N, batch_block)
    Nb = batch_block
    Mrows = Nb * DH

    # Wrapper-side layout plumbing only: NCDHW -> NDHWC packed as (..., W*Cin)
    # plus a single 1-voxel D/H halo pad (9x less HBM than a full im2col).
    x = jnp.transpose(x_ncdhw, (0, 2, 3, 4, 1)).reshape(N, D, H, WCi)
    xpad = jnp.pad(x, ((0, 0), (1, 1), (1, 1), (0, 0))).astype(compute_dtype)

    # Dense 2D weights with the W-axis conv folded into a banded matrix.
    w1b = _band_weight(w1_pt, W).astype(compute_dtype)       # (K1, W*Cmid)
    w2b = _band_weight(w2_pt, W).astype(compute_dtype)       # (K2, W*Cout)

    # Folded BN (inference form), tiled per output-w so it broadcasts over the
    # packed (w*C + c) lane axis.  Kept f32 (BN/ReLU math is f32 on the VPU).
    s1, b1 = _fold_bn(bn1, eps)
    s2, b2 = _fold_bn(bn2, eps)
    s1 = jnp.tile(s1, W).reshape(1, WCm)
    b1 = jnp.tile(b1, W).reshape(1, WCm)
    s2 = jnp.tile(s2, W).reshape(1, WCo)
    b2 = jnp.tile(b2, W).reshape(1, WCo)

    kernel = functools.partial(_double_conv_kernel, Nb=Nb, D=D, H=H, W=W,
                               Cin=Cin, Cmid=Cmid)

    # Explicit scoped-VMEM budget: blocks + double-buffer footprint + scratches.
    cb = jnp.dtype(compute_dtype).itemsize
    ob = jnp.dtype(out_dtype).itemsize
    rup = lambda n, m: ((n + m - 1) // m) * m
    vmem_limit = int(
        2 * Nb * (D + 2) * rup(H + 2, 8) * rup(WCi, 128) * cb   # input block (x2)
        + 2 * K1 * rup(WCm, 128) * cb                            # conv1 weight (x2)
        + 2 * K2 * rup(WCo, 128) * cb                            # conv2 weight (x2)
        + 2 * Mrows * rup(WCo, 128) * ob                         # output block (x2)
        + Mrows * rup(K1, 128) * cb                              # col1 scratch
        + Nb * (D + 2) * rup(H + 2, 8) * rup(WCm, 128) * cb      # y1 halo staging
        + Mrows * rup(K2, 128) * cb                              # col2 scratch
        + (16 << 20))                                            # headroom

    out_packed = pl.pallas_call(
        kernel,
        out_shape=jax.ShapeDtypeStruct((N, DH, WCo), out_dtype),
        grid_spec=pltpu.PrefetchScalarGridSpec(
            num_scalar_prefetch=0,
            grid=(N // Nb,),                      # Nb batch elements per step
            in_specs=[
                pl.BlockSpec((Nb, D + 2, H + 2, WCi), lambda n: (n, 0, 0, 0)),
                pl.BlockSpec((K1, WCm), lambda n: (0, 0)),
                pl.BlockSpec((1, WCm), lambda n: (0, 0)),
                pl.BlockSpec((1, WCm), lambda n: (0, 0)),
                pl.BlockSpec((K2, WCo), lambda n: (0, 0)),
                pl.BlockSpec((1, WCo), lambda n: (0, 0)),
                pl.BlockSpec((1, WCo), lambda n: (0, 0)),
            ],
            # Lane-dense output: last dim W*Cout (= 128 here) -> unmasked vst.
            out_specs=pl.BlockSpec((Nb, DH, WCo), lambda n: (n, 0, 0)),
            scratch_shapes=[
                pltpu.VMEM((Mrows, K1), compute_dtype),             # conv1 im2col
                pltpu.VMEM((Nb, D + 2, H + 2, WCm), compute_dtype),  # y1 halo
                pltpu.VMEM((Mrows, K2), compute_dtype),             # conv2 im2col
            ],
        ),
        compiler_params=pltpu.CompilerParams(
            # Batch blocks are independent: lets v7x shard them across its two
            # TensorCores (no-op on single-TC v5e/v6e).
            dimension_semantics=("parallel",),
            vmem_limit_bytes=vmem_limit),
    )(xpad, w1b, s1, b1, w2b, s2, b2)

    # (N, D*H, W*Cout) -> (N, Cout, D, H, W) to match the PyTorch module.
    out = out_packed.reshape(N, D, H, W, Cout)
    return jnp.transpose(out, (0, 4, 1, 2, 3))


def double_conv_reference(x_ncdhw, w1_pt, bn1, w2_pt, bn2, eps=1e-5):
    """Pure-JAX reference (XLA conv) for correctness checking."""
    x = jnp.transpose(x_ncdhw, (0, 2, 3, 4, 1))
    w1 = jnp.transpose(w1_pt, (2, 3, 4, 1, 0))
    w2 = jnp.transpose(w2_pt, (2, 3, 4, 1, 0))
    dn = ('NDHWC', 'DHWIO', 'NDHWC')

    def bn_relu(y, bn):
        gamma, beta, mean, var = bn
        return jnp.maximum((y - mean) / jnp.sqrt(var + eps) * gamma + beta, 0.0)

    y = jax.lax.conv_general_dilated(x, w1, (1, 1, 1), 'SAME',
                                     dimension_numbers=dn)
    y = bn_relu(y, bn1)
    z = jax.lax.conv_general_dilated(y, w2, (1, 1, 1), 'SAME',
                                     dimension_numbers=dn)
    z = bn_relu(z, bn2)
    return jnp.transpose(z, (0, 4, 1, 2, 3))


if __name__ == "__main__":
    # Small shapes consistent with DoubleConv(inplanes=4, planes=16).
    # N=4 so the auto batch_block=2 gives matmul M=128 AND a 2-step grid.
    N, Cin, D, H, W = 4, 4, 8, 8, 8
    planes = 16

    key = jax.random.PRNGKey(0)
    ks = jax.random.split(key, 11)

    x = jax.random.normal(ks[0], (N, Cin, D, H, W), jnp.float32)

    # Conv weights (PyTorch layout: Cout, Cin, kd, kh, kw), deterministic init.
    w1 = 0.1 * jax.random.normal(ks[1], (planes, Cin, 3, 3, 3), jnp.float32)
    w2 = 0.1 * jax.random.normal(ks[2], (planes, planes, 3, 3, 3), jnp.float32)

    # BatchNorm params (gamma, beta, running_mean, running_var), deterministic.
    bn1 = (1.0 + 0.05 * jax.random.normal(ks[3], (planes,), jnp.float32),
           0.05 * jax.random.normal(ks[4], (planes,), jnp.float32),
           0.1 * jax.random.normal(ks[5], (planes,), jnp.float32),
           0.5 + jax.nn.softplus(jax.random.normal(ks[6], (planes,), jnp.float32)))
    bn2 = (1.0 + 0.05 * jax.random.normal(ks[7], (planes,), jnp.float32),
           0.05 * jax.random.normal(ks[8], (planes,), jnp.float32),
           0.1 * jax.random.normal(ks[9], (planes,), jnp.float32),
           0.5 + jax.nn.softplus(jax.random.normal(ks[10], (planes,), jnp.float32)))

    ref = jax.block_until_ready(double_conv_reference(x, w1, bn1, w2, bn2))

    # f32 operands: tight check against the XLA conv reference.
    out_f32 = jax.block_until_ready(
        double_conv(x, w1, bn1, w2, bn2, compute_dtype=jnp.float32))
    assert out_f32.shape == (N, planes, D, H, W), out_f32.shape
    assert jnp.allclose(out_f32, ref, atol=1e-3, rtol=1e-3), (
        float(jnp.max(jnp.abs(out_f32 - ref))))

    # Default bf16 matmul operands / scratches (f32 accumulation + BN/ReLU):
    # loose tolerance reflects expected bf16 rounding, not a bug.
    out_bf16 = jax.block_until_ready(double_conv(x, w1, bn1, w2, bn2))
    assert out_bf16.shape == (N, planes, D, H, W), out_bf16.shape
    assert jnp.allclose(out_bf16, ref, atol=3e-1, rtol=5e-2), (
        float(jnp.max(jnp.abs(out_bf16 - ref))))

    print("KERNEL_OK")
</pallas_src>

<mosaic_0001>
module attributes {stable_mosaic.version = 11 : i64} {
  func.func @_double_conv_kernel(%arg0: i32, %arg1: memref<2x10x10x32xf32, #tpu.memory_space<vmem>>, %arg2: memref<288x128xf32, #tpu.memory_space<vmem>>, %arg3: memref<1x128xf32, #tpu.memory_space<vmem>>, %arg4: memref<1x128xf32, #tpu.memory_space<vmem>>, %arg5: memref<1152x128xf32, #tpu.memory_space<vmem>>, %arg6: memref<1x128xf32, #tpu.memory_space<vmem>>, %arg7: memref<1x128xf32, #tpu.memory_space<vmem>>, %arg8: memref<2x64x128xf32, #tpu.memory_space<vmem>>, %arg9: memref<128x288xf32, #tpu.memory_space<vmem>>, %arg10: memref<2x10x10x128xf32, #tpu.memory_space<vmem>>, %arg11: memref<128x1152xf32, #tpu.memory_space<vmem>>) attributes {dimension_semantics = [#tpu.dimension_semantics<parallel>], iteration_bounds = array<i64: 2>, scalar_prefetch = 0 : i64, scratch_operands = 3 : i64, tpu.core_type = #tpu.core_type<tc>, window_params = [{transform_indices = @transform_0, window_bounds = array<i64: 2, 10, 10, 32>}, {pipeline_mode = #tpu.pipeline_mode<synchronous>, transform_indices = @transform_1, window_bounds = array<i64: 288, 128>}, {pipeline_mode = #tpu.pipeline_mode<synchronous>, transform_indices = @transform_2, window_bounds = array<i64: 1, 128>}, {pipeline_mode = #tpu.pipeline_mode<synchronous>, transform_indices = @transform_3, window_bounds = array<i64: 1, 128>}, {pipeline_mode = #tpu.pipeline_mode<synchronous>, transform_indices = @transform_4, window_bounds = array<i64: 1152, 128>}, {pipeline_mode = #tpu.pipeline_mode<synchronous>, transform_indices = @transform_5, window_bounds = array<i64: 1, 128>}, {pipeline_mode = #tpu.pipeline_mode<synchronous>, transform_indices = @transform_6, window_bounds = array<i64: 1, 128>}, {transform_indices = @transform_7, window_bounds = array<i64: 2, 64, 128>}]} {
    %c0 = arith.constant 0 : index
    %c0_0 = arith.constant 0 : index
    %c0_1 = arith.constant 0 : index
    %c0_2 = arith.constant 0 : index
    %0 = vector.load %arg1[%c0, %c0_0, %c0_1, %c0_2] : memref<2x10x10x32xf32, #tpu.memory_space<vmem>>, vector<1x8x8x32xf32>
    %1 = vector.shape_cast %0 : vector<1x8x8x32xf32> to vector<8x8x32xf32>
    %2 = vector.shape_cast %1 : vector<8x8x32xf32> to vector<64x32xf32>
    %c0_3 = arith.constant 0 : index
    %c0_4 = arith.constant 0 : index
    %3 = vector.load %arg9[%c0_3, %c0_4] : memref<128x288xf32, #tpu.memory_space<vmem>>, vector<64x32xf32>
    tpu.vector_store %arg9[%c0_3, %c0_4], %2 {strides = array<i32>} : memref<128x288xf32, #tpu.memory_space<vmem>>, vector<64x32xf32>,
    %c0_5 = arith.constant 0 : index
    %c0_6 = arith.constant 0 : index
    %c1 = arith.constant 1 : index
    %c0_7 = arith.constant 0 : index
    %4 = vector.load %arg1[%c0_5, %c0_6, %c1, %c0_7] : memref<2x10x10x32xf32, #tpu.memory_space<vmem>>, vector<1x8x8x32xf32>
    %5 = vector.shape_cast %4 : vector<1x8x8x32xf32> to vector<8x8x32xf32>
    %6 = vector.shape_cast %5 : vector<8x8x32xf32> to vector<64x32xf32>
    %c0_8 = arith.constant 0 : index
    %c32 = arith.constant 32 : index
    %7 = vector.load %arg9[%c0_8, %c32] : memref<128x288xf32, #tpu.memory_space<vmem>>, vector<64x32xf32>
    tpu.vector_store %arg9[%c0_8, %c32], %6 {strides = array<i32>} : memref<128x288xf32, #tpu.memory_space<vmem>>, vector<64x32xf32>,
    %c0_9 = arith.constant 0 : index
    %c0_10 = arith.constant 0 : index
    %c2 = arith.constant 2 : index
    %c0_11 = arith.constant 0 : index
    %8 = vector.load %arg1[%c0_9, %c0_10, %c2, %c0_11] : memref<2x10x10x32xf32, #tpu.memory_space<vmem>>, vector<1x8x8x32xf32>
    %9 = vector.shape_cast %8 : vector<1x8x8x32xf32> to vector<8x8x32xf32>
    %10 = vector.shape_cast %9 : vector<8x8x32xf32> to vector<64x32xf32>
    %c0_12 = arith.constant 0 : index
    %c64 = arith.constant 64 : index
    %11 = vector.load %arg9[%c0_12, %c64] : memref<128x288xf32, #tpu.memory_space<vmem>>, vector<64x32xf32>
    tpu.vector_store %arg9[%c0_12, %c64], %10 {strides = array<i32>} : memref<128x288xf32, #tpu.memory_space<vmem>>, vector<64x32xf32>,
    %c0_13 = arith.constant 0 : index
    %c1_14 = arith.constant 1 : index
    %c0_15 = arith.constant 0 : index
    %c0_16 = arith.constant 0 : index
    %12 = vector.load %arg1[%c0_13, %c1_14, %c0_15, %c0_16] : memref<2x10x10x32xf32, #tpu.memory_space<vmem>>, vector<1x8x8x32xf32>
    %13 = vector.shape_cast %12 : vector<1x8x8x32xf32> to vector<8x8x32xf32>
    %14 = vector.shape_cast %13 : vector<8x8x32xf32> to vector<64x32xf32>
    %c0_17 = arith.constant 0 : index
    %c96 = arith.constant 96 : index
    %15 = vector.load %arg9[%c0_17, %c96] : memref<128x288xf32, #tpu.memory_space<vmem>>, vector<64x32xf32>
    tpu.vector_store %arg9[%c0_17, %c96], %14 {strides = array<i32>} : memref<128x288xf32, #tpu.memory_space<vmem>>, vector<64x32xf32>,
    %c0_18 = arith.constant 0 : index
    %c1_19 = arith.constant 1 : index
    %c1_20 = arith.constant 1 : index
    %c0_21 = arith.constant 0 : index
    %16 = vector.load %arg1[%c0_18, %c1_19, %c1_20, %c0_21] : memref<2x10x10x32xf32, #tpu.memory_space<vmem>>, vector<1x8x8x32xf32>
    %17 = vector.shape_cast %16 : vector<1x8x8x32xf32> to vector<8x8x32xf32>
    %18 = vector.shape_cast %17 : vector<8x8x32xf32> to vector<64x32xf32>
    %c0_22 = arith.constant 0 : index
    %c128 = arith.constant 128 : index
    %19 = vector.load %arg9[%c0_22, %c128] : memref<128x288xf32, #tpu.memory_space<vmem>>, vector<64x32xf32>
    tpu.vector_store %arg9[%c0_22, %c128], %18 {strides = array<i32>} : memref<128x288xf32, #tpu.memory_space<vmem>>, vector<64x32xf32>,
    %c0_23 = arith.constant 0 : index
    %c1_24 = arith.constant 1 : index
    %c2_25 = arith.constant 2 : index
    %c0_26 = arith.constant 0 : index
    %20 = vector.load %arg1[%c0_23, %c1_24, %c2_25, %c0_26] : memref<2x10x10x32xf32, #tpu.memory_space<vmem>>, vector<1x8x8x32xf32>
    %21 = vector.shape_cast %20 : vector<1x8x8x32xf32> to vector<8x8x32xf32>
    %22 = vector.shape_cast %21 : vector<8x8x32xf32> to vector<64x32xf32>
    %c0_27 = arith.constant 0 : index
    %c160 = arith.constant 160 : index
    %23 = vector.load %arg9[%c0_27, %c160] : memref<128x288xf32, #tpu.memory_space<vmem>>, vector<64x32xf32>
    tpu.vector_store %arg9[%c0_27, %c160], %22 {strides = array<i32>} : memref<128x288xf32, #tpu.memory_space<vmem>>, vector<64x32xf32>,
    %c0_28 = arith.constant 0 : index
    %c2_29 = arith.constant 2 : index
    %c0_30 = arith.constant 0 : index
    %c0_31 = arith.constant 0 : index
    %24 = vector.load %arg1[%c0_28, %c2_29, %c0_30, %c0_31] : memref<2x10x10x32xf32, #tpu.memory_space<vmem>>, vector<1x8x8x32xf32>
    %25 = vector.shape_cast %24 : vector<1x8x8x32xf32> to vector<8x8x32xf32>
    %26 = vector.shape_cast %25 : vector<8x8x32xf32> to vector<64x32xf32>
    %c0_32 = arith.constant 0 : index
    %c192 = arith.constant 192 : index
    %27 = vector.load %arg9[%c0_32, %c192] : memref<128x288xf32, #tpu.memory_space<vmem>>, vector<64x32xf32>
    tpu.vector_store %arg9[%c0_32, %c192], %26 {strides = array<i32>} : memref<128x288xf32, #tpu.memory_space<vmem>>, vector<64x32xf32>,
    %c0_33 = arith.constant 0 : index
    %c2_34 = arith.constant 2 : index
    %c1_35 = arith.constant 1 : index
    %c0_36 = arith.constant 0 : index
    %28 = vector.load %arg1[%c0_33, %c2_34, %c1_35, %c0_36] : memref<2x10x10x32xf32, #tpu.memory_space<vmem>>, vector<1x8x8x32xf32>
    %29 = vector.shape_cast %28 : vector<1x8x8x32xf32> to vector<8x8x32xf32>
    %30 = vector.shape_cast %29 : vector<8x8x32xf32> to vector<64x32xf32>
    %c0_37 = arith.constant 0 : index
    %c224 = arith.constant 224 : index
    %31 = vector.load %arg9[%c0_37, %c224] : memref<128x288xf32, #tpu.memory_space<vmem>>, vector<64x32xf32>
    tpu.vector_store %arg9[%c0_37, %c224], %30 {strides = array<i32>} : memref<128x288xf32, #tpu.memory_space<vmem>>, vector<64x32xf32>,
    %c0_38 = arith.constant 0 : index
    %c2_39 = arith.constant 2 : index
    %c2_40 = arith.constant 2 : index
    %c0_41 = arith.constant 0 : index
    %32 = vector.load %arg1[%c0_38, %c2_39, %c2_40, %c0_41] : memref<2x10x10x32xf32, #tpu.memory_space<vmem>>, vector<1x8x8x32xf32>
    %33 = vector.shape_cast %32 : vector<1x8x8x32xf32> to vector<8x8x32xf32>
    %34 = vector.shape_cast %33 : vector<8x8x32xf32> to vector<64x32xf32>
    %c0_42 = arith.constant 0 : index
    %c256 = arith.constant 256 : index
    %35 = vector.load %arg9[%c0_42, %c256] : memref<128x288xf32, #tpu.memory_space<vmem>>, vector<64x32xf32>
    tpu.vector_store %arg9[%c0_42, %c256], %34 {strides = array<i32>} : memref<128x288xf32, #tpu.memory_space<vmem>>, vector<64x32xf32>,
    %c1_43 = arith.constant 1 : index
    %c0_44 = arith.constant 0 : index
    %c0_45 = arith.constant 0 : index
    %c0_46 = arith.constant 0 : index
    %36 = vector.load %arg1[%c1_43, %c0_44, %c0_45, %c0_46] : memref<2x10x10x32xf32, #tpu.memory_space<vmem>>, vector<1x8x8x32xf32>
    %37 = vector.shape_cast %36 : vector<1x8x8x32xf32> to vector<8x8x32xf32>
    %38 = vector.shape_cast %37 : vector<8x8x32xf32> to vector<64x32xf32>
    %c64_47 = arith.constant 64 : index
    %c0_48 = arith.constant 0 : index
    %39 = vector.load %arg9[%c64_47, %c0_48] : memref<128x288xf32, #tpu.memory_space<vmem>>, vector<64x32xf32>
    tpu.vector_store %arg9[%c64_47, %c0_48], %38 {strides = array<i32>} : memref<128x288xf32, #tpu.memory_space<vmem>>, vector<64x32xf32>,
    %c1_49 = arith.constant 1 : index
    %c0_50 = arith.constant 0 : index
    %c1_51 = arith.constant 1 : index
    %c0_52 = arith.constant 0 : index
    %40 = vector.load %arg1[%c1_49, %c0_50, %c1_51, %c0_52] : memref<2x10x10x32xf32, #tpu.memory_space<vmem>>, vector<1x8x8x32xf32>
    %41 = vector.shape_cast %40 : vector<1x8x8x32xf32> to vector<8x8x32xf32>
    %42 = vector.shape_cast %41 : vector<8x8x32xf32> to vector<64x32xf32>
    %c64_53 = arith.constant 64 : index
    %c32_54 = arith.constant 32 : index
    %43 = vector.load %arg9[%c64_53, %c32_54] : memref<128x288xf32, #tpu.memory_space<vmem>>, vector<64x32xf32>
    tpu.vector_store %arg9[%c64_53, %c32_54], %42 {strides = array<i32>} : memref<128x288xf32, #tpu.memory_space<vmem>>, vector<64x32xf32>,
    %c1_55 = arith.constant 1 : index
    %c0_56 = arith.constant 0 : index
    %c2_57 = arith.constant 2 : index
    %c0_58 = arith.constant 0 : index
    %44 = vector.load %arg1[%c1_55, %c0_56, %c2_57, %c0_58] : memref<2x10x10x32xf32, #tpu.memory_space<vmem>>, vector<1x8x8x32xf32>
    %45 = vector.shape_cast %44 : vector<1x8x8x32xf32> to vector<8x8x32xf32>
    %46 = vector.shape_cast %45 : vector<8x8x32xf32> to vector<64x32xf32>
    %c64_59 = arith.constant 64 : index
    %c64_60 = arith.constant 64 : index
    %47 = vector.load %arg9[%c64_59, %c64_60] : memref<128x288xf32, #tpu.memory_space<vmem>>, vector<64x32xf32>
    tpu.vector_store %arg9[%c64_59, %c64_60], %46 {strides = array<i32>} : memref<128x288xf32, #tpu.memory_space<vmem>>, vector<64x32xf32>,
    %c1_61 = arith.constant 1 : index
    %c1_62 = arith.constant 1 : index
    %c0_63 = arith.constant 0 : index
    %c0_64 = arith.constant 0 : index
    %48 = vector.load %arg1[%c1_61, %c1_62, %c0_63, %c0_64] : memref<2x10x10x32xf32, #tpu.memory_space<vmem>>, vector<1x8x8x32xf32>
    %49 = vector.shape_cast %48 : vector<1x8x8x32xf32> to vector<8x8x32xf32>
    %50 = vector.shape_cast %49 : vector<8x8x32xf32> to vector<64x32xf32>
    %c64_65 = arith.constant 64 : index
    %c96_66 = arith.constant 96 : index
    %51 = vector.load %arg9[%c64_65, %c96_66] : memref<128x288xf32, #tpu.memory_space<vmem>>, vector<64x32xf32>
    tpu.vector_store %arg9[%c64_65, %c96_66], %50 {strides = array<i32>} : memref<128x288xf32, #tpu.memory_space<vmem>>, vector<64x32xf32>,
    %c1_67 = arith.constant 1 : index
    %c1_68 = arith.constant 1 : index
    %c1_69 = arith.constant 1 : index
    %c0_70 = arith.constant 0 : index
    %52 = vector.load %arg1[%c1_67, %c1_68, %c1_69, %c0_70] : memref<2x10x10x32xf32, #tpu.memory_space<vmem>>, vector<1x8x8x32xf32>
    %53 = vector.shape_cast %52 : vector<1x8x8x32xf32> to vector<8x8x32xf32>
    %54 = vector.shape_cast %53 : vector<8x8x32xf32> to vector<64x32xf32>
    %c64_71 = arith.constant 64 : index
    %c128_72 = arith.constant 128 : index
    %55 = vector.load %arg9[%c64_71, %c128_72] : memref<128x288xf32, #tpu.memory_space<vmem>>, vector<64x32xf32>
    tpu.vector_store %arg9[%c64_71, %c128_72], %54 {strides = array<i32>} : memref<128x288xf32, #tpu.memory_space<vmem>>, vector<64x32xf32>,
    %c1_73 = arith.constant 1 : index
    %c1_74 = arith.constant 1 : index
    %c2_75 = arith.constant 2 : index
    %c0_76 = arith.constant 0 : index
    %56 = vector.load %arg1[%c1_73, %c1_74, %c2_75, %c0_76] : memref<2x10x10x32xf32, #tpu.memory_space<vmem>>, vector<1x8x8x32xf32>
    %57 = vector.shape_cast %56 : vector<1x8x8x32xf32> to vector<8x8x32xf32>
    %58 = vector.shape_cast %57 : vector<8x8x32xf32> to vector<64x32xf32>
    %c64_77 = arith.constant 64 : index
    %c160_78 = arith.constant 160 : index
    %59 = vector.load %arg9[%c64_77, %c160_78] : memref<128x288xf32, #tpu.memory_space<vmem>>, vector<64x32xf32>
    tpu.vector_store %arg9[%c64_77, %c160_78], %58 {strides = array<i32>} : memref<128x288xf32, #tpu.memory_space<vmem>>, vector<64x32xf32>,
    %c1_79 = arith.constant 1 : index
    %c2_80 = arith.constant 2 : index
    %c0_81 = arith.constant 0 : index
    %c0_82 = arith.constant 0 : index
    %60 = vector.load %arg1[%c1_79, %c2_80, %c0_81, %c0_82] : memref<2x10x10x32xf32, #tpu.memory_space<vmem>>, vector<1x8x8x32xf32>
    %61 = vector.shape_cast %60 : vector<1x8x8x32xf32> to vector<8x8x32xf32>
    %62 = vector.shape_cast %61 : vector<8x8x32xf32> to vector<64x32xf32>
    %c64_83 = arith.constant 64 : index
    %c192_84 = arith.constant 192 : index
    %63 = vector.load %arg9[%c64_83, %c192_84] : memref<128x288xf32, #tpu.memory_space<vmem>>, vector<64x32xf32>
    tpu.vector_store %arg9[%c64_83, %c192_84], %62 {strides = array<i32>} : memref<128x288xf32, #tpu.memory_space<vmem>>, vector<64x32xf32>,
    %c1_85 = arith.constant 1 : index
    %c2_86 = arith.constant 2 : index
    %c1_87 = arith.constant 1 : index
    %c0_88 = arith.constant 0 : index
    %64 = vector.load %arg1[%c1_85, %c2_86, %c1_87, %c0_88] : memref<2x10x10x32xf32, #tpu.memory_space<vmem>>, vector<1x8x8x32xf32>
    %65 = vector.shape_cast %64 : vector<1x8x8x32xf32> to vector<8x8x32xf32>
    %66 = vector.shape_cast %65 : vector<8x8x32xf32> to vector<64x32xf32>
    %c64_89 = arith.constant 64 : index
    %c224_90 = arith.constant 224 : index
    %67 = vector.load %arg9[%c64_89, %c224_90] : memref<128x288xf32, #tpu.memory_space<vmem>>, vector<64x32xf32>
    tpu.vector_store %arg9[%c64_89, %c224_90], %66 {strides = array<i32>} : memref<128x288xf32, #tpu.memory_space<vmem>>, vector<64x32xf32>,
    %c1_91 = arith.constant 1 : index
    %c2_92 = arith.constant 2 : index
    %c2_93 = arith.constant 2 : index
    %c0_94 = arith.constant 0 : index
    %68 = vector.load %arg1[%c1_91, %c2_92, %c2_93, %c0_94] : memref<2x10x10x32xf32, #tpu.memory_space<vmem>>, vector<1x8x8x32xf32>
    %69 = vector.shape_cast %68 : vector<1x8x8x32xf32> to vector<8x8x32xf32>
    %70 = vector.shape_cast %69 : vector<8x8x32xf32> to vector<64x32xf32>
    %c64_95 = arith.constant 64 : index
    %c256_96 = arith.constant 256 : index
    %71 = vector.load %arg9[%c64_95, %c256_96] : memref<128x288xf32, #tpu.memory_space<vmem>>, vector<64x32xf32>
    tpu.vector_store %arg9[%c64_95, %c256_96], %70 {strides = array<i32>} : memref<128x288xf32, #tpu.memory_space<vmem>>, vector<64x32xf32>,
    %c0_97 = arith.constant 0 : index
    %c0_98 = arith.constant 0 : index
    %72 = vector.load %arg9[%c0_97, %c0_98] : memref<128x288xf32, #tpu.memory_space<vmem>>, vector<128x288xf32>
    %c0_99 = arith.constant 0 : index
    %c0_100 = arith.constant 0 : index
    %73 = vector.load %arg2[%c0_99, %c0_100] : memref<288x128xf32, #tpu.memory_space<vmem>>, vector<288x128xf32>
    %cst = arith.constant dense<0.000000e+00> : vector<128x128xf32>
    %74 = tpu.matmul %72, %73, %cst {dimension_numbers = #tpu.dot_dimension_numbers<[1], [0], [0], [1], [0, 0, 1, 1], [], []>} : vector<128x288xf32>, vector<288x128xf32>, vector<128x128xf32> -> vector<128x128xf32>
    %c0_101 = arith.constant 0 : index
    %c0_102 = arith.constant 0 : index
    %75 = vector.load %arg3[%c0_101, %c0_102] : memref<1x128xf32, #tpu.memory_space<vmem>>, vector<1x128xf32>
    %76 = vector.broadcast %75 : vector<1x128xf32> to vector<128x128xf32>
    %77 = arith.mulf %74, %76 : vector<128x128xf32>
    %c0_103 = arith.constant 0 : index
    %c0_104 = arith.constant 0 : index
    %78 = vector.load %arg4[%c0_103, %c0_104] : memref<1x128xf32, #tpu.memory_space<vmem>>, vector<1x128xf32>
    %79 = vector.broadcast %78 : vector<1x128xf32> to vector<128x128xf32>
    %80 = arith.addf %77, %79 : vector<128x128xf32>
    %cst_105 = arith.constant 0.000000e+00 : f32
    %81 = vector.broadcast %cst_105 : f32 to vector<128x128xf32>
    %82 = arith.maximumf %80, %81 : vector<128x128xf32>
    %83 = vector.shape_cast %82 : vector<128x128xf32> to vector<2x8x8x128xf32>
    %cst_106 = arith.constant 0.000000e+00 : f32
    %84 = vector.broadcast %cst_106 : f32 to vector<1x10x128xf32>
    %c0_107 = arith.constant 0 : index
    %c0_108 = arith.constant 0 : index
    %c0_109 = arith.constant 0 : index
    %c0_110 = arith.constant 0 : index
    %85 = vector.load %arg10[%c0_107, %c0_108, %c0_109, %c0_110] : memref<2x10x10x128xf32, #tpu.memory_space<vmem>>, vector<1x1x10x128xf32>
    %86 = vector.shape_cast %85 : vector<1x1x10x128xf32> to vector<1x10x128xf32>
    %87 = vector.shape_cast %84 : vector<1x10x128xf32> to vector<1x1x10x128xf32>
    tpu.vector_store %arg10[%c0_107, %c0_108, %c0_109, %c0_110], %87 {strides = array<i32>} : memref<2x10x10x128xf32, #tpu.memory_space<vmem>>, vector<1x1x10x128xf32>,
    %cst_111 = arith.constant 0.000000e+00 : f32
    %88 = vector.broadcast %cst_111 : f32 to vector<1x10x128xf32>
    %c0_112 = arith.constant 0 : index
    %c9 = arith.constant 9 : index
    %c0_113 = arith.constant 0 : index
    %c0_114 = arith.constant 0 : index
    %89 = vector.load %arg10[%c0_112, %c9, %c0_113, %c0_114] : memref<2x10x10x128xf32, #tpu.memory_space<vmem>>, vector<1x1x10x128xf32>
    %90 = vector.shape_cast %89 : vector<1x1x10x128xf32> to vector<1x10x128xf32>
    %91 = vector.shape_cast %88 : vector<1x10x128xf32> to vector<1x1x10x128xf32>
    tpu.vector_store %arg10[%c0_112, %c9, %c0_113, %c0_114], %91 {strides = array<i32>} : memref<2x10x10x128xf32, #tpu.memory_space<vmem>>, vector<1x1x10x128xf32>,
    %cst_115 = arith.constant 0.000000e+00 : f32
    %92 = vector.broadcast %cst_115 : f32 to vector<8x1x128xf32>
    %c0_116 = arith.constant 0 : index
    %c1_117 = arith.constant 1 : index
    %c0_118 = arith.constant 0 : index
    %c0_119 = arith.constant 0 : index
    %93 = vector.load %arg10[%c0_116, %c1_117, %c0_118, %c0_119] : memref<2x10x10x128xf32, #tpu.memory_space<vmem>>, vector<1x8x1x128xf32>
    %94 = vector.shape_cast %93 : vector<1x8x1x128xf32> to vector<8x1x128xf32>
    %95 = vector.shape_cast %92 : vector<8x1x128xf32> to vector<1x8x1x128xf32>
    tpu.vector_store %arg10[%c0_116, %c1_117, %c0_118, %c0_119], %95 {strides = array<i32>} : memref<2x10x10x128xf32, #tpu.memory_space<vmem>>, vector<1x8x1x128xf32>,
    %cst_120 = arith.constant 0.000000e+00 : f32
    %96 = vector.broadcast %cst_120 : f32 to vector<8x1x128xf32>
    %c0_121 = arith.constant 0 : index
    %c1_122 = arith.constant 1 : index
    %c9_123 = arith.constant 9 : index
    %c0_124 = arith.constant 0 : index
    %97 = vector.load %arg10[%c0_121, %c1_122, %c9_123, %c0_124] : memref<2x10x10x128xf32, #tpu.memory_space<vmem>>, vector<1x8x1x128xf32>
    %98 = vector.shape_cast %97 : vector<1x8x1x128xf32> to vector<8x1x128xf32>
    %99 = vector.shape_cast %96 : vector<8x1x128xf32> to vector<1x8x1x128xf32>
    tpu.vector_store %arg10[%c0_121, %c1_122, %c9_123, %c0_124], %99 {strides = array<i32>} : memref<2x10x10x128xf32, #tpu.memory_space<vmem>>, vector<1x8x1x128xf32>,
    %100 = vector.extract_strided_slice %83 {offsets = [0, 0, 0, 0], sizes = [1, 8, 8, 128], strides = [1, 1, 1, 1]} : vector<2x8x8x128xf32> to vector<1x8x8x128xf32>
    %101 = vector.shape_cast %100 : vector<1x8x8x128xf32> to vector<8x8x128xf32>
    %c0_125 = arith.constant 0 : index
    %c1_126 = arith.constant 1 : index
    %c1_127 = arith.constant 1 : index
    %c0_128 = arith.constant 0 : index
    %102 = vector.load %arg10[%c0_125, %c1_126, %c1_127, %c0_128] : memref<2x10x10x128xf32, #tpu.memory_space<vmem>>, vector<1x8x8x128xf32>
    %103 = vector.shape_cast %102 : vector<1x8x8x128xf32> to vector<8x8x128xf32>
    %104 = vector.shape_cast %101 : vector<8x8x128xf32> to vector<1x8x8x128xf32>
    tpu.vector_store %arg10[%c0_125, %c1_126, %c1_127, %c0_128], %104 {strides = array<i32>} : memref<2x10x10x128xf32, #tpu.memory_space<vmem>>, vector<1x8x8x128xf32>,
    %cst_129 = arith.constant 0.000000e+00 : f32
    %105 = vector.broadcast %cst_129 : f32 to vector<1x10x128xf32>
    %c1_130 = arith.constant 1 : index
    %c0_131 = arith.constant 0 : index
    %c0_132 = arith.constant 0 : index
    %c0_133 = arith.constant 0 : index
    %106 = vector.load %arg10[%c1_130, %c0_131, %c0_132, %c0_133] : memref<2x10x10x128xf32, #tpu.memory_space<vmem>>, vector<1x1x10x128xf32>
    %107 = vector.shape_cast %106 : vector<1x1x10x128xf32> to vector<1x10x128xf32>
    %108 = vector.shape_cast %105 : vector<1x10x128xf32> to vector<1x1x10x128xf32>
    tpu.vector_store %arg10[%c1_130, %c0_131, %c0_132, %c0_133], %108 {strides = array<i32>} : memref<2x10x10x128xf32, #tpu.memory_space<vmem>>, vector<1x1x10x128xf32>,
    %cst_134 = arith.constant 0.000000e+00 : f32
    %109 = vector.broadcast %cst_134 : f32 to vector<1x10x128xf32>
    %c1_135 = arith.constant 1 : index
    %c9_136 = arith.constant 9 : index
    %c0_137 = arith.constant 0 : index
    %c0_138 = arith.constant 0 : index
    %110 = vector.load %arg10[%c1_135, %c9_136, %c0_137, %c0_138] : memref<2x10x10x128xf32, #tpu.memory_space<vmem>>, vector<1x1x10x128xf32>
    %111 = vector.shape_cast %110 : vector<1x1x10x128xf32> to vector<1x10x128xf32>
    %112 = vector.shape_cast %109 : vector<1x10x128xf32> to vector<1x1x10x128xf32>
    tpu.vector_store %arg10[%c1_135, %c9_136, %c0_137, %c0_138], %112 {strides = array<i32>} : memref<2x10x10x128xf32, #tpu.memory_space<vmem>>, vector<1x1x10x128xf32>,
    %cst_139 = arith.constant 0.000000e+00 : f32
    %113 = vector.broadcast %cst_139 : f32 to vector<8x1x128xf32>
    %c1_140 = arith.constant 1 : index
    %c1_141 = arith.constant 1 : index
    %c0_142 = arith.constant 0 : index
    %c0_143 = arith.constant 0 : index
    %114 = vector.load %arg10[%c1_140, %c1_141, %c0_142, %c0_143] : memref<2x10x10x128xf32, #tpu.memory_space<vmem>>, vector<1x8x1x128xf32>
    %115 = vector.shape_cast %114 : vector<1x8x1x128xf32> to vector<8x1x128xf32>
    %116 = vector.shape_cast %113 : vector<8x1x128xf32> to vector<1x8x1x128xf32>
    tpu.vector_store %arg10[%c1_140, %c1_141, %c0_142, %c0_143], %116 {strides = array<i32>} : memref<2x10x10x128xf32, #tpu.memory_space<vmem>>, vector<1x8x1x128xf32>,
    %cst_144 = arith.constant 0.000000e+00 : f32
    %117 = vector.broadcast %cst_144 : f32 to vector<8x1x128xf32>
    %c1_145 = arith.constant 1 : index
    %c1_146 = arith.constant 1 : index
    %c9_147 = arith.constant 9 : index
    %c0_148 = arith.constant 0 : index
    %118 = vector.load %arg10[%c1_145, %c1_146, %c9_147, %c0_148] : memref<2x10x10x128xf32, #tpu.memory_space<vmem>>, vector<1x8x1x128xf32>
    %119 = vector.shape_cast %118 : vector<1x8x1x128xf32> to vector<8x1x128xf32>
    %120 = vector.shape_cast %117 : vector<8x1x128xf32> to vector<1x8x1x128xf32>
    tpu.vector_store %arg10[%c1_145, %c1_146, %c9_147, %c0_148], %120 {strides = array<i32>} : memref<2x10x10x128xf32, #tpu.memory_space<vmem>>, vector<1x8x1x128xf32>,
    %121 = vector.extract_strided_slice %83 {offsets = [1, 0, 0, 0], sizes = [1, 8, 8, 128], strides = [1, 1, 1, 1]} : vector<2x8x8x128xf32> to vector<1x8x8x128xf32>
    %122 = vector.shape_cast %121 : vector<1x8x8x128xf32> to vector<8x8x128xf32>
    %c1_149 = arith.constant 1 : index
    %c1_150 = arith.constant 1 : index
    %c1_151 = arith.constant 1 : index
    %c0_152 = arith.constant 0 : index
    %123 = vector.load %arg10[%c1_149, %c1_150, %c1_151, %c0_152] : memref<2x10x10x128xf32, #tpu.memory_space<vmem>>, vector<1x8x8x128xf32>
    %124 = vector.shape_cast %123 : vector<1x8x8x128xf32> to vector<8x8x128xf32>
    %125 = vector.shape_cast %122 : vector<8x8x128xf32> to vector<1x8x8x128xf32>
    tpu.vector_store %arg10[%c1_149, %c1_150, %c1_151, %c0_152], %125 {strides = array<i32>} : memref<2x10x10x128xf32, #tpu.memory_space<vmem>>, vector<1x8x8x128xf32>,
    %c0_153 = arith.constant 0 : index
    %c0_154 = arith.constant 0 : index
    %c0_155 = arith.constant 0 : index
    %c0_156 = arith.constant 0 : index
    %126 = vector.load %arg10[%c0_153, %c0_154, %c0_155, %c0_156] : memref<2x10x10x128xf32, #tpu.memory_space<vmem>>, vector<1x8x8x128xf32>
    %127 = vector.shape_cast %126 : vector<1x8x8x128xf32> to vector<8x8x128xf32>
    %128 = vector.shape_cast %127 : vector<8x8x128xf32> to vector<64x128xf32>
    %c0_157 = arith.constant 0 : index
    %c0_158 = arith.constant 0 : index
    %129 = vector.load %arg11[%c0_157, %c0_158] : memref<128x1152xf32, #tpu.memory_space<vmem>>, vector<64x128xf32>
    tpu.vector_store %arg11[%c0_157, %c0_158], %128 {strides = array<i32>} : memref<128x1152xf32, #tpu.memory_space<vmem>>, vector<64x128xf32>,
    %c0_159 = arith.constant 0 : index
    %c0_160 = arith.constant 0 : index
    %c1_161 = arith.constant 1 : index
    %c0_162 = arith.constant 0 : index
    %130 = vector.load %arg10[%c0_159, %c0_160, %c1_161, %c0_162] : memref<2x10x10x128xf32, #tpu.memory_space<vmem>>, vector<1x8x8x128xf32>
    %131 = vector.shape_cast %130 : vector<1x8x8x128xf32> to vector<8x8x128xf32>
    %132 = vector.shape_cast %131 : vector<8x8x128xf32> to vector<64x128xf32>
    %c0_163 = arith.constant 0 : index
    %c128_164 = arith.constant 128 : index
    %133 = vector.load %arg11[%c0_163, %c128_164] : memref<128x1152xf32, #tpu.memory_space<vmem>>, vector<64x128xf32>
    tpu.vector_store %arg11[%c0_163, %c128_164], %132 {strides = array<i32>} : memref<128x1152xf32, #tpu.memory_space<vmem>>, vector<64x128xf32>,
    %c0_165 = arith.constant 0 : index
    %c0_166 = arith.constant 0 : index
    %c2_167 = arith.constant 2 : index
    %c0_168 = arith.constant 0 : index
    %134 = vector.load %arg10[%c0_165, %c0_166, %c2_167, %c0_168] : memref<2x10x10x128xf32, #tpu.memory_space<vmem>>, vector<1x8x8x128xf32>
    %135 = vector.shape_cast %134 : vector<1x8x8x128xf32> to vector<8x8x128xf32>
    %136 = vector.shape_cast %135 : vector<8x8x128xf32> to vector<64x128xf32>
    %c0_169 = arith.constant 0 : index
    %c256_170 = arith.constant 256 : index
    %137 = vector.load %arg11[%c0_169, %c256_170] : memref<128x1152xf32, #tpu.memory_space<vmem>>, vector<64x128xf32>
    tpu.vector_store %arg11[%c0_169, %c256_170], %136 {strides = array<i32>} : memref<128x1152xf32, #tpu.memory_space<vmem>>, vector<64x128xf32>,
    %c0_171 = arith.constant 0 : index
    %c1_172 = arith.constant 1 : index
    %c0_173 = arith.constant 0 : index
    %c0_174 = arith.constant 0 : index
    %138 = vector.load %arg10[%c0_171, %c1_172, %c0_173, %c0_174] : memref<2x10x10x128xf32, #tpu.memory_space<vmem>>, vector<1x8x8x128xf32>
    %139 = vector.shape_cast %138 : vector<1x8x8x128xf32> to vector<8x8x128xf32>
    %140 = vector.shape_cast %139 : vector<8x8x128xf32> to vector<64x128xf32>
    %c0_175 = arith.constant 0 : index
    %c384 = arith.constant 384 : index
    %141 = vector.load %arg11[%c0_175, %c384] : memref<128x1152xf32, #tpu.memory_space<vmem>>, vector<64x128xf32>
    tpu.vector_store %arg11[%c0_175, %c384], %140 {strides = array<i32>} : memref<128x1152xf32, #tpu.memory_space<vmem>>, vector<64x128xf32>,
    %c0_176 = arith.constant 0 : index
    %c1_177 = arith.constant 1 : index
    %c1_178 = arith.constant 1 : index
    %c0_179 = arith.constant 0 : index
    %142 = vector.load %arg10[%c0_176, %c1_177, %c1_178, %c0_179] : memref<2x10x10x128xf32, #tpu.memory_space<vmem>>, vector<1x8x8x128xf32>
    %143 = vector.shape_cast %142 : vector<1x8x8x128xf32> to vector<8x8x128xf32>
    %144 = vector.shape_cast %143 : vector<8x8x128xf32> to vector<64x128xf32>
    %c0_180 = arith.constant 0 : index
    %c512 = arith.constant 512 : index
    %145 = vector.load %arg11[%c0_180, %c512] : memref<128x1152xf32, #tpu.memory_space<vmem>>, vector<64x128xf32>
    tpu.vector_store %arg11[%c0_180, %c512], %144 {strides = array<i32>} : memref<128x1152xf32, #tpu.memory_space<vmem>>, vector<64x128xf32>,
    %c0_181 = arith.constant 0 : index
    %c1_182 = arith.constant 1 : index
    %c2_183 = arith.constant 2 : index
    %c0_184 = arith.constant 0 : index
    %146 = vector.load %arg10[%c0_181, %c1_182, %c2_183, %c0_184] : memref<2x10x10x128xf32, #tpu.memory_space<vmem>>, vector<1x8x8x128xf32>
    %147 = vector.shape_cast %146 : vector<1x8x8x128xf32> to vector<8x8x128xf32>
    %148 = vector.shape_cast %147 : vector<8x8x128xf32> to vector<64x128xf32>
    %c0_185 = arith.constant 0 : index
    %c640 = arith.constant 640 : index
    %149 = vector.load %arg11[%c0_185, %c640] : memref<128x1152xf32, #tpu.memory_space<vmem>>, vector<64x128xf32>
    tpu.vector_store %arg11[%c0_185, %c640], %148 {strides = array<i32>} : memref<128x1152xf32, #tpu.memory_space<vmem>>, vector<64x128xf32>,
    %c0_186 = arith.constant 0 : index
    %c2_187 = arith.constant 2 : index
    %c0_188 = arith.constant 0 : index
    %c0_189 = arith.constant 0 : index
    %150 = vector.load %arg10[%c0_186, %c2_187, %c0_188, %c0_189] : memref<2x10x10x128xf32, #tpu.memory_space<vmem>>, vector<1x8x8x128xf32>
    %151 = vector.shape_cast %150 : vector<1x8x8x128xf32> to vector<8x8x128xf32>
    %152 = vector.shape_cast %151 : vector<8x8x128xf32> to vector<64x128xf32>
    %c0_190 = arith.constant 0 : index
    %c768 = arith.constant 768 : index
    %153 = vector.load %arg11[%c0_190, %c768] : memref<128x1152xf32, #tpu.memory_space<vmem>>, vector<64x128xf32>
    tpu.vector_store %arg11[%c0_190, %c768], %152 {strides = array<i32>} : memref<128x1152xf32, #tpu.memory_space<vmem>>, vector<64x128xf32>,
    %c0_191 = arith.constant 0 : index
    %c2_192 = arith.constant 2 : index
    %c1_193 = arith.constant 1 : index
    %c0_194 = arith.constant 0 : index
    %154 = vector.load %arg10[%c0_191, %c2_192, %c1_193, %c0_194] : memref<2x10x10x128xf32, #tpu.memory_space<vmem>>, vector<1x8x8x128xf32>
    %155 = vector.shape_cast %154 : vector<1x8x8x128xf32> to vector<8x8x128xf32>
    %156 = vector.shape_cast %155 : vector<8x8x128xf32> to vector<64x128xf32>
    %c0_195 = arith.constant 0 : index
    %c896 = arith.constant 896 : index
    %157 = vector.load %arg11[%c0_195, %c896] : memref<128x1152xf32, #tpu.memory_space<vmem>>, vector<64x128xf32>
    tpu.vector_store %arg11[%c0_195, %c896], %156 {strides = array<i32>} : memref<128x1152xf32, #tpu.memory_space<vmem>>, vector<64x128xf32>,
    %c0_196 = arith.constant 0 : index
    %c2_197 = arith.constant 2 : index
    %c2_198 = arith.constant 2 : index
    %c0_199 = arith.constant 0 : index
    %158 = vector.load %arg10[%c0_196, %c2_197, %c2_198, %c0_199] : memref<2x10x10x128xf32, #tpu.memory_space<vmem>>, vector<1x8x8x128xf32>
    %159 = vector.shape_cast %158 : vector<1x8x8x128xf32> to vector<8x8x128xf32>
    %160 = vector.shape_cast %159 : vector<8x8x128xf32> to vector<64x128xf32>
    %c0_200 = arith.constant 0 : index
    %c1024 = arith.constant 1024 : index
    %161 = vector.load %arg11[%c0_200, %c1024] : memref<128x1152xf32, #tpu.memory_space<vmem>>, vector<64x128xf32>
    tpu.vector_store %arg11[%c0_200, %c1024], %160 {strides = array<i32>} : memref<128x1152xf32, #tpu.memory_space<vmem>>, vector<64x128xf32>,
    %c1_201 = arith.constant 1 : index
    %c0_202 = arith.constant 0 : index
    %c0_203 = arith.constant 0 : index
    %c0_204 = arith.constant 0 : index
    %162 = vector.load %arg10[%c1_201, %c0_202, %c0_203, %c0_204] : memref<2x10x10x128xf32, #tpu.memory_space<vmem>>, vector<1x8x8x128xf32>
    %163 = vector.shape_cast %162 : vector<1x8x8x128xf32> to vector<8x8x128xf32>
    %164 = vector.shape_cast %163 : vector<8x8x128xf32> to vector<64x128xf32>
    %c64_205 = arith.constant 64 : index
    %c0_206 = arith.constant 0 : index
    %165 = vector.load %arg11[%c64_205, %c0_206] : memref<128x1152xf32, #tpu.memory_space<vmem>>, vector<64x128xf32>
    tpu.vector_store %arg11[%c64_205, %c0_206], %164 {strides = array<i32>} : memref<128x1152xf32, #tpu.memory_space<vmem>>, vector<64x128xf32>,
    %c1_207 = arith.constant 1 : index
    %c0_208 = arith.constant 0 : index
    %c1_209 = arith.constant 1 : index
    %c0_210 = arith.constant 0 : index
    %166 = vector.load %arg10[%c1_207, %c0_208, %c1_209, %c0_210] : memref<2x10x10x128xf32, #tpu.memory_space<vmem>>, vector<1x8x8x128xf32>
    %167 = vector.shape_cast %166 : vector<1x8x8x128xf32> to vector<8x8x128xf32>
    %168 = vector.shape_cast %167 : vector<8x8x128xf32> to vector<64x128xf32>
    %c64_211 = arith.constant 64 : index
    %c128_212 = arith.constant 128 : index
    %169 = vector.load %arg11[%c64_211, %c128_212] : memref<128x1152xf32, #tpu.memory_space<vmem>>, vector<64x128xf32>
    tpu.vector_store %arg11[%c64_211, %c128_212], %168 {strides = array<i32>} : memref<128x1152xf32, #tpu.memory_space<vmem>>, vector<64x128xf32>,
    %c1_213 = arith.constant 1 : index
    %c0_214 = arith.constant 0 : index
    %c2_215 = arith.constant 2 : index
    %c0_216 = arith.constant 0 : index
    %170 = vector.load %arg10[%c1_213, %c0_214, %c2_215, %c0_216] : memref<2x10x10x128xf32, #tpu.memory_space<vmem>>, vector<1x8x8x128xf32>
    %171 = vector.shape_cast %170 : vector<1x8x8x128xf32> to vector<8x8x128xf32>
    %172 = vector.shape_cast %171 : vector<8x8x128xf32> to vector<64x128xf32>
    %c64_217 = arith.constant 64 : index
    %c256_218 = arith.constant 256 : index
    %173 = vector.load %arg11[%c64_217, %c256_218] : memref<128x1152xf32, #tpu.memory_space<vmem>>, vector<64x128xf32>
    tpu.vector_store %arg11[%c64_217, %c256_218], %172 {strides = array<i32>} : memref<128x1152xf32, #tpu.memory_space<vmem>>, vector<64x128xf32>,
    %c1_219 = arith.constant 1 : index
    %c1_220 = arith.constant 1 : index
    %c0_221 = arith.constant 0 : index
    %c0_222 = arith.constant 0 : index
    %174 = vector.load %arg10[%c1_219, %c1_220, %c0_221, %c0_222] : memref<2x10x10x128xf32, #tpu.memory_space<vmem>>, vector<1x8x8x128xf32>
    %175 = vector.shape_cast %174 : vector<1x8x8x128xf32> to vector<8x8x128xf32>
    %176 = vector.shape_cast %175 : vector<8x8x128xf32> to vector<64x128xf32>
    %c64_223 = arith.constant 64 : index
    %c384_224 = arith.constant 384 : index
    %177 = vector.load %arg11[%c64_223, %c384_224] : memref<128x1152xf32, #tpu.memory_space<vmem>>, vector<64x128xf32>
    tpu.vector_store %arg11[%c64_223, %c384_224], %176 {strides = array<i32>} : memref<128x1152xf32, #tpu.memory_space<vmem>>, vector<64x128xf32>,
    %c1_225 = arith.constant 1 : index
    %c1_226 = arith.constant 1 : index
    %c1_227 = arith.constant 1 : index
    %c0_228 = arith.constant 0 : index
    %178 = vector.load %arg10[%c1_225, %c1_226, %c1_227, %c0_228] : memref<2x10x10x128xf32, #tpu.memory_space<vmem>>, vector<1x8x8x128xf32>
    %179 = vector.shape_cast %178 : vector<1x8x8x128xf32> to vector<8x8x128xf32>
    %180 = vector.shape_cast %179 : vector<8x8x128xf32> to vector<64x128xf32>
    %c64_229 = arith.constant 64 : index
    %c512_230 = arith.constant 512 : index
    %181 = vector.load %arg11[%c64_229, %c512_230] : memref<128x1152xf32, #tpu.memory_space<vmem>>, vector<64x128xf32>
    tpu.vector_store %arg11[%c64_229, %c512_230], %180 {strides = array<i32>} : memref<128x1152xf32, #tpu.memory_space<vmem>>, vector<64x128xf32>,
    %c1_231 = arith.constant 1 : index
    %c1_232 = arith.constant 1 : index
    %c2_233 = arith.constant 2 : index
    %c0_234 = arith.constant 0 : index
    %182 = vector.load %arg10[%c1_231, %c1_232, %c2_233, %c0_234] : memref<2x10x10x128xf32, #tpu.memory_space<vmem>>, vector<1x8x8x128xf32>
    %183 = vector.shape_cast %182 : vector<1x8x8x128xf32> to vector<8x8x128xf32>
    %184 = vector.shape_cast %183 : vector<8x8x128xf32> to vector<64x128xf32>
    %c64_235 = arith.constant 64 : index
    %c640_236 = arith.constant 640 : index
    %185 = vector.load %arg11[%c64_235, %c640_236] : memref<128x1152xf32, #tpu.memory_space<vmem>>, vector<64x128xf32>
    tpu.vector_store %arg11[%c64_235, %c640_236], %184 {strides = array<i32>} : memref<128x1152xf32, #tpu.memory_space<vmem>>, vector<64x128xf32>,
    %c1_237 = arith.constant 1 : index
    %c2_238 = arith.constant 2 : index
    %c0_239 = arith.constant 0 : index
    %c0_240 = arith.constant 0 : index
    %186 = vector.load %arg10[%c1_237, %c2_238, %c0_239, %c0_240] : memref<2x10x10x128xf32, #tpu.memory_space<vmem>>, vector<1x8x8x128xf32>
    %187 = vector.shape_cast %186 : vector<1x8x8x128xf32> to vector<8x8x128xf32>
    %188 = vector.shape_cast %187 : vector<8x8x128xf32> to vector<64x128xf32>
    %c64_241 = arith.constant 64 : index
    %c768_242 = arith.constant 768 : index
    %189 = vector.load %arg11[%c64_241, %c768_242] : memref<128x1152xf32, #tpu.memory_space<vmem>>, vector<64x128xf32>
    tpu.vector_store %arg11[%c64_241, %c768_242], %188 {strides = array<i32>} : memref<128x1152xf32, #tpu.memory_space<vmem>>, vector<64x128xf32>,
    %c1_243 = arith.constant 1 : index
    %c2_244 = arith.constant 2 : index
    %c1_245 = arith.constant 1 : index
    %c0_246 = arith.constant 0 : index
    %190 = vector.load %arg10[%c1_243, %c2_244, %c1_245, %c0_246] : memref<2x10x10x128xf32, #tpu.memory_space<vmem>>, vector<1x8x8x128xf32>
    %191 = vector.shape_cast %190 : vector<1x8x8x128xf32> to vector<8x8x128xf32>
    %192 = vector.shape_cast %191 : vector<8x8x128xf32> to vector<64x128xf32>
    %c64_247 = arith.constant 64 : index
    %c896_248 = arith.constant 896 : index
    %193 = vector.load %arg11[%c64_247, %c896_248] : memref<128x1152xf32, #tpu.memory_space<vmem>>, vector<64x128xf32>
    tpu.vector_store %arg11[%c64_247, %c896_248], %192 {strides = array<i32>} : memref<128x1152xf32, #tpu.memory_space<vmem>>, vector<64x128xf32>,
    %c1_249 = arith.constant 1 : index
    %c2_250 = arith.constant 2 : index
    %c2_251 = arith.constant 2 : index
    %c0_252 = arith.constant 0 : index
    %194 = vector.load %arg10[%c1_249, %c2_250, %c2_251, %c0_252] : memref<2x10x10x128xf32, #tpu.memory_space<vmem>>, vector<1x8x8x128xf32>
    %195 = vector.shape_cast %194 : vector<1x8x8x128xf32> to vector<8x8x128xf32>
    %196 = vector.shape_cast %195 : vector<8x8x128xf32> to vector<64x128xf32>
    %c64_253 = arith.constant 64 : index
    %c1024_254 = arith.constant 1024 : index
    %197 = vector.load %arg11[%c64_253, %c1024_254] : memref<128x1152xf32, #tpu.memory_space<vmem>>, vector<64x128xf32>
    tpu.vector_store %arg11[%c64_253, %c1024_254], %196 {strides = array<i32>} : memref<128x1152xf32, #tpu.memory_space<vmem>>, vector<64x128xf32>,
    %c0_255 = arith.constant 0 : index
    %c0_256 = arith.constant 0 : index
    %198 = vector.load %arg11[%c0_255, %c0_256] : memref<128x1152xf32, #tpu.memory_space<vmem>>, vector<128x1152xf32>
    %c0_257 = arith.constant 0 : index
    %c0_258 = arith.constant 0 : index
    %199 = vector.load %arg5[%c0_257, %c0_258] : memref<1152x128xf32, #tpu.memory_space<vmem>>, vector<1152x128xf32>
    %cst_259 = arith.constant dense<0.000000e+00> : vector<128x128xf32>
    %200 = tpu.matmul %198, %199, %cst_259 {dimension_numbers = #tpu.dot_dimension_numbers<[1], [0], [0], [1], [0, 0, 1, 1], [], []>} : vector<128x1152xf32>, vector<1152x128xf32>, vector<128x128xf32> -> vector<128x128xf32>
    %c0_260 = arith.constant 0 : index
    %c0_261 = arith.constant 0 : index
    %201 = vector.load %arg6[%c0_260, %c0_261] : memref<1x128xf32, #tpu.memory_space<vmem>>, vector<1x128xf32>
    %202 = vector.broadcast %201 : vector<1x128xf32> to vector<128x128xf32>
    %203 = arith.mulf %200, %202 : vector<128x128xf32>
    %c0_262 = arith.constant 0 : index
    %c0_263 = arith.constant 0 : index
    %204 = vector.load %arg7[%c0_262, %c0_263] : memref<1x128xf32, #tpu.memory_space<vmem>>, vector<1x128xf32>
    %205 = vector.broadcast %204 : vector<1x128xf32> to vector<128x128xf32>
    %206 = arith.addf %203, %205 : vector<128x128xf32>
    %cst_264 = arith.constant 0.000000e+00 : f32
    %207 = vector.broadcast %cst_264 : f32 to vector<128x128xf32>
    %208 = arith.maximumf %206, %207 : vector<128x128xf32>
    %209 = vector.shape_cast %208 : vector<128x128xf32> to vector<2x64x128xf32>
    %c0_265 = arith.constant 0 : index
    %c0_266 = arith.constant 0 : index
    %c0_267 = arith.constant 0 : index
    %210 = vector.load %arg8[%c0_265, %c0_266, %c0_267] : memref<2x64x128xf32, #tpu.memory_space<vmem>>, vector<2x64x128xf32>
    tpu.vector_store %arg8[%c0_265, %c0_266, %c0_267], %209 {strides = array<i32>} : memref<2x64x128xf32, #tpu.memory_space<vmem>>, vector<2x64x128xf32>,
    return
  }
  func.func @transform_0(%arg0: i32) -> (i32, i32, i32, i32) {
    %c0_i32 = arith.constant 0 : i32
    %c0_i32_0 = arith.constant 0 : i32
    %c0_i32_1 = arith.constant 0 : i32
    %c0_i32_2 = arith.constant 0 : i32
    return %arg0, %c0_i32, %c0_i32_0, %c0_i32_1 : i32, i32, i32, i32
  }
  func.func @transform_1(%arg0: i32) -> (i32, i32) {
    %c0_i32 = arith.constant 0 : i32
    %c0_i32_0 = arith.constant 0 : i32
    %c0_i32_1 = arith.constant 0 : i32
    return %c0_i32, %c0_i32_0 : i32, i32
  }
  func.func @transform_2(%arg0: i32) -> (i32, i32) {
    %c0_i32 = arith.constant 0 : i32
    %c0_i32_0 = arith.constant 0 : i32
    %c0_i32_1 = arith.constant 0 : i32
    return %c0_i32, %c0_i32_0 : i32, i32
  }
  func.func @transform_3(%arg0: i32) -> (i32, i32) {
    %c0_i32 = arith.constant 0 : i32
    %c0_i32_0 = arith.constant 0 : i32
    %c0_i32_1 = arith.constant 0 : i32
    return %c0_i32, %c0_i32_0 : i32, i32
  }
  func.func @transform_4(%arg0: i32) -> (i32, i32) {
    %c0_i32 = arith.constant 0 : i32
    %c0_i32_0 = arith.constant 0 : i32
    %c0_i32_1 = arith.constant 0 : i32
    return %c0_i32, %c0_i32_0 : i32, i32
  }
  func.func @transform_5(%arg0: i32) -> (i32, i32) {
    %c0_i32 = arith.constant 0 : i32
    %c0_i32_0 = arith.constant 0 : i32
    %c0_i32_1 = arith.constant 0 : i32
    return %c0_i32, %c0_i32_0 : i32, i32
  }
  func.func @transform_6(%arg0: i32) -> (i32, i32) {
    %c0_i32 = arith.constant 0 : i32
    %c0_i32_0 = arith.constant 0 : i32
    %c0_i32_1 = arith.constant 0 : i32
    return %c0_i32, %c0_i32_0 : i32, i32
  }
  func.func @transform_7(%arg0: i32) -> (i32, i32, i32) {
    %c0_i32 = arith.constant 0 : i32
    %c0_i32_0 = arith.constant 0 : i32
    %c0_i32_1 = arith.constant 0 : i32
    return %arg0, %c0_i32, %c0_i32_0 : i32, i32, i32
  }
}

</mosaic_0001>

<llo_original>
// kernel: tpu_custom_call.1
$region0: #{tpu_custom_call.1}
  #allocation0 [shape = 'u32[]', space=smem, size = 0x4, offset = 0x4, fixed_abs, tag = 'smem constant byte address 0x4 - core index']
  #allocation1 [shape = 'u32[144,128]{1,0:T(1,128)}', space=vmem, size = 0x12000, scoped, tag = 'internal scratch']
  #allocation2 [shape = 'f32[128,288]{1,0:T(8,128)}', space=vmem, size = 0x30000, scoped, tag = 'scratch operand']
  #allocation3 [shape = 'f32[2,10,10,128]{3,2,1,0:T(8,128)}', space=vmem, size = 0x28000, scoped, tag = 'scratch operand']
  #allocation4 [shape = 'f32[128,1152]{1,0:T(8,128)}', space=vmem, size = 0x90000, scoped, tag = 'scratch operand']
  %s0 = inlined_call_operand.vmem [shape: f32[4,10,10,32], index: 0, kind: input, shape index: {}]
  %s1 = inlined_call_operand.vmem [shape: f32[288,128], index: 1, kind: input, shape index: {}]
  %s2 = inlined_call_operand.vmem [shape: f32[1,128], index: 2, kind: input, shape index: {}]
  %s3 = inlined_call_operand.vmem [shape: f32[1,128], index: 3, kind: input, shape index: {}]
  %s4 = inlined_call_operand.hbm [shape: f32[1152,128], index: 4, kind: input, shape index: {}]
  %s5 = inlined_call_operand.vmem [shape: f32[1,128], index: 5, kind: input, shape index: {}]
  %s6 = inlined_call_operand.vmem [shape: f32[1,128], index: 6, kind: input, shape index: {}]
  %s7 = inlined_call_operand.hbm [shape: f32[4,64,128], index: 7, kind: output, shape index: {}]
  %s8 = sld [smem:[#allocation0]]
  $region65: #{tpu_custom_call.1} parent=0
    _
  %s10 = ssub.s32 1, %s8
  %s11 = scalar_select 0, %s10, %s8
  $region1: #{tpu_custom_call.1} parent=0
    #allocation5 [shape = 'u8[589824]{0}', space=vmem, size = 0x90000, scoped, tag = 'input window, operand 4, single buffered']
    #allocation6 [shape = 's32[2]{0}', space=sflag, size = 0x8, scoped, tag = 'scoped memory for tpu_custom_call.1']
    #allocation7 [shape = 's32[2]{0}', space=sflag, size = 0x8, scoped, tag = 'scoped memory for tpu_custom_call.1']
    #allocation8 [shape = 'u8[131072]{0}', space=vmem, size = 0x20000, scoped, tag = 'output window, operand 0']
    %12 = vsyncpa [#allocation6], 0
    %13 = vsyncpa [#allocation7], 0
    %s14 = scalar_lea.sflag [#allocation7], 1
    %15 = vsyncpa %s14, 0
    loop: start=0, step=1, limit=4
    $region2: #{tpu_custom_call.1} parent=1 // loop_pre_header
      _
    $region3: #{tpu_custom_call.1} parent=1 // loop_header
      %s17 = sphi 0, %s21
      %p18 = scmp.ge.s32.totalorder %s17, 4
      %s27 = sphi 0, %s29
      %s30 = sphi 0, %s27
      %s31 = sphi 0, %s30
      %s47 = sphi 0, %s31
      %s51 = sphi 0, %s51
      %s53 = sphi 0, %s51
      %s54 = sphi 0, %s53
      %s68 = sphi 0, %s54
      %s72 = sphi 0, %s72
      %s74 = sphi 0, %s72
      %s75 = sphi 0, %s74
      %s89 = sphi 0, %s75
      %s93 = sphi 0, %s93
      %s95 = sphi 0, %s93
      %s96 = sphi 0, %s95
      %s110 = sphi 0, %s96
      %s114 = sphi 0, %s114
      %s116 = sphi 0, %s114
      %s117 = sphi 0, %s116
      %s131 = sphi 0, %s117
      %s135 = sphi 0, %s135
      %s137 = sphi 0, %s135
      %s138 = sphi 0, %s137
      %s152 = sphi 0, %s138
      %s156 = sphi 0, %s156
      %s158 = sphi 0, %s156
      %s159 = sphi 0, %s158
      %s173 = sphi 0, %s159
      %s179 = sphi 0, %s181
      %s182 = sphi 0, %s179
      %s183 = sphi 0, %s182
      %s199 = sphi 0, %s183
    $region4: #{tpu_custom_call.1} parent=1 // loop_header_branch
      %20 = sbr.rel (%p18) target = $region8
    $region5: #{tpu_custom_call.1} parent=1 // loop_body
      %s22 = ssub.s32 %s17, 1
      %s23 = ssub.s32 %s17, 2
      %s24 = sadd.s32 %s17, 1
      %s25 = ssub.s32 %s17, %s24
      %p26 = scmp.eq.s32.totalorder %s25, 0
      %s28 = sadd.s32 %s27, 1
      %s29 = scalar_select %p26, %s27, %s28
      %p32 = pneg %p26
      %p33 = scmp.eq.s32.totalorder %s17, 1
      %p34 = por %p32, %p33
      %p35 = scmp.ne.s32.totalorder %s27, %s30
      %p36 = scmp.eq.s32.totalorder %s17, 0
      %p37 = por %p35, %p36
      %p38 = scmp.ne.s32.totalorder %s27, %s30
      %p39 = scmp.eq.s32.totalorder %s22, 1
      %p40 = por %p38, %p39
      %p41 = scmp.ne.s32.totalorder %s30, %s31
      %p42 = scmp.eq.s32.totalorder %s22, 0
      %p43 = por %p41, %p42
      %p44 = scmp.ne.s32.totalorder %s30, %s31
      %p45 = scmp.eq.s32.totalorder %s23, 1
      %p46 = por %p44, %p45
      %p48 = scmp.ne.s32.totalorder %s31, %s47
      %p49 = scmp.eq.s32.totalorder %s23, 0
      %p50 = por %p48, %p49
      %s52 = sadd.s32 %s51, 1
      %p55 = scmp.eq.s32.totalorder %s17, 1
      %p56 = scmp.ne.s32.totalorder %s51, %s53
      %p57 = scmp.eq.s32.totalorder %s17, 0
      %p58 = por %p56, %p57
      %p59 = scmp.ne.s32.totalorder %s51, %s53
      %p60 = scmp.eq.s32.totalorder %s22, 1
      %p61 = por %p59, %p60
      %p62 = scmp.ne.s32.totalorder %s53, %s54
      %p63 = scmp.eq.s32.totalorder %s22, 0
      %p64 = por %p62, %p63
      %p65 = scmp.ne.s32.totalorder %s53, %s54
      %p66 = scmp.eq.s32.totalorder %s23, 1
      %p67 = por %p65, %p66
      %p69 = scmp.ne.s32.totalorder %s54, %s68
      %p70 = scmp.eq.s32.totalorder %s23, 0
      %p71 = por %p69, %p70
      %s73 = sadd.s32 %s72, 1
      %p76 = scmp.eq.s32.totalorder %s17, 1
      %p77 = scmp.ne.s32.totalorder %s72, %s74
      %p78 = scmp.eq.s32.totalorder %s17, 0
      %p79 = por %p77, %p78
      %p80 = scmp.ne.s32.totalorder %s72, %s74
      %p81 = scmp.eq.s32.totalorder %s22, 1
      %p82 = por %p80, %p81
      %p83 = scmp.ne.s32.totalorder %s74, %s75
      %p84 = scmp.eq.s32.totalorder %s22, 0
      %p85 = por %p83, %p84
      %p86 = scmp.ne.s32.totalorder %s74, %s75
      %p87 = scmp.eq.s32.totalorder %s23, 1
      %p88 = por %p86, %p87
      %p90 = scmp.ne.s32.totalorder %s75, %s89
      %p91 = scmp.eq.s32.totalorder %s23, 0
      %p92 = por %p90, %p91
      %s94 = sadd.s32 %s93, 1
      %p97 = scmp.eq.s32.totalorder %s17, 1
      %p98 = scmp.ne.s32.totalorder %s93, %s95
      %p99 = scmp.eq.s32.totalorder %s17, 0
      %p100 = por %p98, %p99
      %p101 = scmp.ne.s32.totalorder %s93, %s95
      %p102 = scmp.eq.s32.totalorder %s22, 1
      %p103 = por %p101, %p102
      %p104 = scmp.ne.s32.totalorder %s95, %s96
      %p105 = scmp.eq.s32.totalorder %s22, 0
      %p106 = por %p104, %p105
      %p107 = scmp.ne.s32.totalorder %s95, %s96
      %p108 = scmp.eq.s32.totalorder %s23, 1
      %p109 = por %p107, %p108
      %p111 = scmp.ne.s32.totalorder %s96, %s110
      %p112 = scmp.eq.s32.totalorder %s23, 0
      %p113 = por %p111, %p112
      %s115 = sadd.s32 %s114, 1
      %p118 = scmp.eq.s32.totalorder %s17, 1
      %p119 = scmp.ne.s32.totalorder %s114, %s116
      %p120 = scmp.eq.s32.totalorder %s17, 0
      %p121 = por %p119, %p120
      %p122 = scmp.ne.s32.totalorder %s114, %s116
      %p123 = scmp.eq.s32.totalorder %s22, 1
      %p124 = por %p122, %p123
      %p125 = scmp.ne.s32.totalorder %s116, %s117
      %p126 = scmp.eq.s32.totalorder %s22, 0
      %p127 = por %p125, %p126
      %p128 = scmp.ne.s32.totalorder %s116, %s117
      %p129 = scmp.eq.s32.totalorder %s23, 1
      %p130 = por %p128, %p129
      %p132 = scmp.ne.s32.totalorder %s117, %s131
      %p133 = scmp.eq.s32.totalorder %s23, 0
      %p134 = por %p132, %p133
      %s136 = sadd.s32 %s135, 1
      %p139 = scmp.eq.s32.totalorder %s17, 1
      %p140 = scmp.ne.s32.totalorder %s135, %s137
      %p141 = scmp.eq.s32.totalorder %s17, 0
      %p142 = por %p140, %p141
      %p143 = scmp.ne.s32.totalorder %s135, %s137
      %p144 = scmp.eq.s32.totalorder %s22, 1
      %p145 = por %p143, %p144
      %p146 = scmp.ne.s32.totalorder %s137, %s138
      %p147 = scmp.eq.s32.totalorder %s22, 0
      %p148 = por %p146, %p147
      %p149 = scmp.ne.s32.totalorder %s137, %s138
      %p150 = scmp.eq.s32.totalorder %s23, 1
      %p151 = por %p149, %p150
      %p153 = scmp.ne.s32.totalorder %s138, %s152
      %p154 = scmp.eq.s32.totalorder %s23, 0
      %p155 = por %p153, %p154
      %s157 = sadd.s32 %s156, 1
      %p160 = scmp.eq.s32.totalorder %s17, 1
      %p161 = scmp.ne.s32.totalorder %s156, %s158
      %p162 = scmp.eq.s32.totalorder %s17, 0
      %p163 = por %p161, %p162
      %p164 = scmp.ne.s32.totalorder %s156, %s158
      %p165 = scmp.eq.s32.totalorder %s22, 1
      %p166 = por %p164, %p165
      %p167 = scmp.ne.s32.totalorder %s158, %s159
      %p168 = scmp.eq.s32.totalorder %s22, 0
      %p169 = por %p167, %p168
      %p170 = scmp.ne.s32.totalorder %s158, %s159
      %p171 = scmp.eq.s32.totalorder %s23, 1
      %p172 = por %p170, %p171
      %p174 = scmp.ne.s32.totalorder %s159, %s173
      %p175 = scmp.eq.s32.totalorder %s23, 0
      %p176 = por %p174, %p175
      %s177 = ssub.s32 %s17, %s24
      %p178 = scmp.eq.s32.totalorder %s177, 0
      %s180 = sadd.s32 %s179, 1
      %s181 = scalar_select %p178, %s179, %s180
      %p184 = pneg %p178
      %p185 = scmp.eq.s32.totalorder %s17, 1
      %p186 = por %p184, %p185
      %p187 = scmp.ne.s32.totalorder %s179, %s182
      %p188 = scmp.eq.s32.totalorder %s17, 0
      %p189 = por %p187, %p188
      %p190 = scmp.ne.s32.totalorder %s179, %s182
      %p191 = scmp.eq.s32.totalorder %s22, 1
      %p192 = por %p190, %p191
      %p193 = scmp.ne.s32.totalorder %s182, %s183
      %p194 = scmp.eq.s32.totalorder %s22, 0
      %p195 = por %p193, %p194
      %p196 = scmp.ne.s32.totalorder %s182, %s183
      %p197 = scmp.eq.s32.totalorder %s23, 1
      %p198 = por %p196, %p197
      %p200 = scmp.ne.s32.totalorder %s183, %s199
      %p201 = scmp.eq.s32.totalorder %s23, 0
      %p202 = por %p200, %p201
      %p203 = scmp.le.s32.totalorder 1, %s17
      %p204 = scmp.lt.s32.totalorder %s17, 3
      %p205 = pnand %p203, %p204
      %p206 = pneg %p205
      // Predicated region
      $region9: #{tpu_custom_call.1} parent=5 // pred_check
        _
      $region10: #{tpu_custom_call.1} parent=5 // pred_check_branch
        %208 = sbr.rel (%p205) target = $region12
      $region11: #{tpu_custom_call.1} parent=5 // pred_region
        %s209 = ssub.s32 %s17, 1
        // Predicated region
        $region13: #{tpu_custom_call.1} parent=11 // pred_check
          %p210 = pneg %p64
        $region14: #{tpu_custom_call.1} parent=11 // pred_check_branch
          %212 = sbr.rel (%p210) target = $region16
        $region15: #{tpu_custom_call.1} parent=11 // pred_region
          _
        $region16: #{tpu_custom_call.1} parent=11 // pred_fallthru
          _
        // Predicated region
        $region17: #{tpu_custom_call.1} parent=11 // pred_check
          %p213 = pneg %p85
        $region18: #{tpu_custom_call.1} parent=11 // pred_check_branch
          %215 = sbr.rel (%p213) target = $region20
        $region19: #{tpu_custom_call.1} parent=11 // pred_region
          _
        $region20: #{tpu_custom_call.1} parent=11 // pred_fallthru
          _
        // Predicated region
        $region21: #{tpu_custom_call.1} parent=11 // pred_check
          %p216 = pneg %p106
        $region22: #{tpu_custom_call.1} parent=11 // pred_check_branch
          %218 = sbr.rel (%p216) target = $region24
        $region23: #{tpu_custom_call.1} parent=11 // pred_region
          _
        $region24: #{tpu_custom_call.1} parent=11 // pred_fallthru
          _
        // Predicated region
        $region25: #{tpu_custom_call.1} parent=11 // pred_check
          %p219 = pneg %p127
        $region26: #{tpu_custom_call.1} parent=11 // pred_check_branch
          %221 = sbr.rel (%p219) target = $region28
        $region27: #{tpu_custom_call.1} parent=11 // pred_region
          %s223 = ssub.s32 18432, 18432
          %224 = vsyncadd [#allocation6], %s223
          %s225 = sshll.u32 [#allocation5], 4
          %s226 = int_to_ptr.vmem [resolvable:$true] %s225
          %231 = dma.hbm_to_vmem [thread:$0]  %s4, 18432, %s226, [#allocation6], 128, 128, 8
        $region28: #{tpu_custom_call.1} parent=11 // pred_fallthru
          _
        // Predicated region
        $region29: #{tpu_custom_call.1} parent=11 // pred_check
          %p232 = pneg %p148
        $region30: #{tpu_custom_call.1} parent=11 // pred_check_branch
          %234 = sbr.rel (%p232) target = $region32
        $region31: #{tpu_custom_call.1} parent=11 // pred_region
          _
        $region32: #{tpu_custom_call.1} parent=11 // pred_fallthru
          _
        // Predicated region
        $region33: #{tpu_custom_call.1} parent=11 // pred_check
          %p235 = pneg %p169
        $region34: #{tpu_custom_call.1} parent=11 // pred_check_branch
          %237 = sbr.rel (%p235) target = $region36
        $region35: #{tpu_custom_call.1} parent=11 // pred_region
          _
        $region36: #{tpu_custom_call.1} parent=11 // pred_fallthru
          _
      $region12: #{tpu_custom_call.1} parent=5 // pred_fallthru
        _
      %p238 = scmp.lt.s32.totalorder %s17, 2
      // Predicated region
      $region37: #{tpu_custom_call.1} parent=5 // pred_check
        %p239 = pneg %p238
      $region38: #{tpu_custom_call.1} parent=5 // pred_check_branch
        %241 = sbr.rel (%p239) target = $region40
      $region39: #{tpu_custom_call.1} parent=5 // pred_region
        // Predicated region
        $region41: #{tpu_custom_call.1} parent=39 // pred_check
          %p242 = pneg %p37
        $region42: #{tpu_custom_call.1} parent=39 // pred_check_branch
          %244 = sbr.rel (%p242) target = $region44
        $region43: #{tpu_custom_call.1} parent=39 // pred_region
          %s245 = smul.u32 2, %s17
          %p246 = scmp.lt.s32.totalorder %s245, 3
          %s247 = scalar_select %p246, %s245, 3
          %s248 = smul.addr %s247, 20
          %s249 = smul.addr %s248, 8
          %s250 = scalar_lea.vmem %s0, %s249
          %s251 = smul.u32 2, %s17
        $region44: #{tpu_custom_call.1} parent=39 // pred_fallthru
          _
      $region40: #{tpu_custom_call.1} parent=5 // pred_fallthru
        _
      %p252 = scmp.le.s32.totalorder 1, %s17
      %p253 = scmp.lt.s32.totalorder %s17, 3
      %p254 = pnand %p252, %p253
      %p255 = pneg %p254
      // Predicated region
      $region45: #{tpu_custom_call.1} parent=5 // pred_check
        _
      $region46: #{tpu_custom_call.1} parent=5 // pred_check_branch
        %257 = sbr.rel (%p254) target = $region48
      $region47: #{tpu_custom_call.1} parent=5 // pred_region
        %s258 = ssub.s32 %s17, 1
        // Predicated region
        $region49: #{tpu_custom_call.1} parent=47 // pred_check
          %p259 = pneg %p127
        $region50: #{tpu_custom_call.1} parent=47 // pred_check_branch
          %261 = sbr.rel (%p259) target = $region52
        $region51: #{tpu_custom_call.1} parent=47 // pred_region
          %262 = dma.done [#allocation6], 18432
        $region52: #{tpu_custom_call.1} parent=47 // pred_fallthru
          _
        %s263 = smul.u32 2, %s22
        %p264 = scmp.lt.s32.totalorder %s263, 3
        %s265 = scalar_select %p264, %s263, 3
        %s266 = smul.addr %s265, 20
        %s267 = smul.addr %s266, 8
        %s268 = scalar_lea.vmem %s0, %s267
        %p269 = pneg %p43
        %p270 = pneg %p40
        %p271 = pneg %p64
        %p272 = pneg %p61
        %p273 = pneg %p85
        %p274 = pneg %p82
        %p275 = pneg %p106
        %p276 = pneg %p103
        %p277 = pneg %p127
        %p278 = pneg %p124
        %p279 = pneg %p148
        %p280 = pneg %p145
        %p281 = pneg %p169
        %p282 = pneg %p166
        %p283 = pneg %p195
        %p284 = pneg %p192
        %s285 = sand.u32 %s182, 1
        %s286 = scalar_lea.sflag [#allocation7], %s285
        %s287 = sand.u32 %s182, 1
        %s288 = smul.addr %s287, 128
        %s289 = scalar_lea.vmem [#allocation8], %s288
        %s290 = smul.u32 2, %s22
        %p291 = scmp.lt.s32.totalorder %s290, 3
        %s292 = scalar_select %p291, %s290, 3
        %s293 = smul.addr %s292, 20
        %s294 = smul.addr %s293, 8
        %s295 = scalar_lea.vmem %s0, %s294
        %s296 = smul.u32 2, %s22
        %s297 = smul.u32 2, %s22
        %v298 = vld [vmem:[%s295] sm:$0xff]
        %v299 = vld [vmem:[%s295 + $0x10] sm:$0xff]
        %v300 = vld [vmem:[%s295 + $0x20] sm:$0xff]
        %v301 = vld [vmem:[%s295 + $0x30] sm:$0xff]
        %v302 = vld [vmem:[%s295 + $0x40] sm:$0xff]
        %v303 = vld [vmem:[%s295 + $0x50] sm:$0xff]
        %v304 = vld [vmem:[%s295 + $0x60] sm:$0xff]
        %v305 = vld [vmem:[%s295 + $0x70] sm:$0xff]
        %vm306 = vcmask 261120
        %307 = vst.msk [vmem:[#allocation2] sm:$0xff] %vm306, %v298
        %308 = vst.msk [vmem:[#allocation2 + $0x18] sm:$0xff] %vm306, %v299
        %309 = vst.msk [vmem:[#allocation2 + $0x30] sm:$0xff] %vm306, %v300
        %310 = vst.msk [vmem:[#allocation2 + $0x48] sm:$0xff] %vm306, %v301
        %311 = vst.msk [vmem:[#allocation2 + $0x60] sm:$0xff] %vm306, %v302
        %312 = vst.msk [vmem:[#allocation2 + $0x78] sm:$0xff] %vm306, %v303
        %313 = vst.msk [vmem:[#allocation2 + $0x90] sm:$0xff] %vm306, %v304
        %314 = vst.msk [vmem:[#allocation2 + $0xa8] sm:$0xff] %vm306, %v305
        %v315 = vld [vmem:[%s295 + $0x1] sm:$0xff]
        %v316 = vld [vmem:[%s295 + $0x11] sm:$0xff]
        %v317 = vld [vmem:[%s295 + $0x21] sm:$0xff]
        %v318 = vld [vmem:[%s295 + $0x31] sm:$0xff]
        %v319 = vld [vmem:[%s295 + $0x41] sm:$0xff]
        %v320 = vld [vmem:[%s295 + $0x51] sm:$0xff]
        %v321 = vld [vmem:[%s295 + $0x61] sm:$0xff]
        %v322 = vld [vmem:[%s295 + $0x71] sm:$0xff]
        %331 = vrot.lane.b32.xlu0 %v315, 32
        %v332 = vpop.permute.xlu0 %331
        %333 = vrot.lane.b32.xlu0 %v316, 32
        %v334 = vpop.permute.xlu0 %333
        %335 = vrot.lane.b32.xlu0 %v317, 32
        %v336 = vpop.permute.xlu0 %335
        %337 = vrot.lane.b32.xlu0 %v318, 32
        %v338 = vpop.permute.xlu0 %337
        %339 = vrot.lane.b32.xlu0 %v319, 32
        %v340 = vpop.permute.xlu0 %339
        %341 = vrot.lane.b32.xlu0 %v320, 32
        %v342 = vpop.permute.xlu0 %341
        %343 = vrot.lane.b32.xlu0 %v321, 32
        %v344 = vpop.permute.xlu0 %343
        %345 = vrot.lane.b32.xlu0 %v322, 32
        %v346 = vpop.permute.xlu0 %345
        %vm355 = vcmask 523520
        %356 = vst.msk [vmem:[#allocation2] sm:$0xff] %vm355, %v332
        %357 = vst.msk [vmem:[#allocation2 + $0x18] sm:$0xff] %vm355, %v334
        %358 = vst.msk [vmem:[#allocation2 + $0x30] sm:$0xff] %vm355, %v336
        %359 = vst.msk [vmem:[#allocation2 + $0x48] sm:$0xff] %vm355, %v338
        %360 = vst.msk [vmem:[#allocation2 + $0x60] sm:$0xff] %vm355, %v340
        %361 = vst.msk [vmem:[#allocation2 + $0x78] sm:$0xff] %vm355, %v342
        %362 = vst.msk [vmem:[#allocation2 + $0x90] sm:$0xff] %vm355, %v344
        %363 = vst.msk [vmem:[#allocation2 + $0xa8] sm:$0xff] %vm355, %v346
        %v364 = vld [vmem:[%s295 + $0x2] sm:$0xff]
        %v365 = vld [vmem:[%s295 + $0x12] sm:$0xff]
        %v366 = vld [vmem:[%s295 + $0x22] sm:$0xff]
        %v367 = vld [vmem:[%s295 + $0x32] sm:$0xff]
        %v368 = vld [vmem:[%s295 + $0x42] sm:$0xff]
        %v369 = vld [vmem:[%s295 + $0x52] sm:$0xff]
        %v370 = vld [vmem:[%s295 + $0x62] sm:$0xff]
        %v371 = vld [vmem:[%s295 + $0x72] sm:$0xff]
        %380 = vrot.lane.b32.xlu0 %v364, 64
        %v381 = vpop.permute.xlu0 %380
        %382 = vrot.lane.b32.xlu0 %v365, 64
        %v383 = vpop.permute.xlu0 %382
        %384 = vrot.lane.b32.xlu0 %v366, 64
        %v385 = vpop.permute.xlu0 %384
        %386 = vrot.lane.b32.xlu0 %v367, 64
        %v387 = vpop.permute.xlu0 %386
        %388 = vrot.lane.b32.xlu0 %v368, 64
        %v389 = vpop.permute.xlu0 %388
        %390 = vrot.lane.b32.xlu0 %v369, 64
        %v391 = vpop.permute.xlu0 %390
        %392 = vrot.lane.b32.xlu0 %v370, 64
        %v393 = vpop.permute.xlu0 %392
        %394 = vrot.lane.b32.xlu0 %v371, 64
        %v395 = vpop.permute.xlu0 %394
        %vm404 = vcmask 785920
        %405 = vst.msk [vmem:[#allocation2] sm:$0xff] %vm404, %v381
        %406 = vst.msk [vmem:[#allocation2 + $0x18] sm:$0xff] %vm404, %v383
        %407 = vst.msk [vmem:[#allocation2 + $0x30] sm:$0xff] %vm404, %v385
        %408 = vst.msk [vmem:[#allocation2 + $0x48] sm:$0xff] %vm404, %v387
        %409 = vst.msk [vmem:[#allocation2 + $0x60] sm:$0xff] %vm404, %v389
        %410 = vst.msk [vmem:[#allocation2 + $0x78] sm:$0xff] %vm404, %v391
        %411 = vst.msk [vmem:[#allocation2 + $0x90] sm:$0xff] %vm404, %v393
        %412 = vst.msk [vmem:[#allocation2 + $0xa8] sm:$0xff] %vm404, %v395
        %s413 = scalar_lea.vmem %s295, 16
        %v414 = vld [vmem:[%s413] sm:$0xff]
        %v415 = vld [vmem:[%s413 + $0x10] sm:$0xff]
        %v416 = vld [vmem:[%s413 + $0x20] sm:$0xff]
        %v417 = vld [vmem:[%s413 + $0x30] sm:$0xff]
        %v418 = vld [vmem:[%s413 + $0x40] sm:$0xff]
        %v419 = vld [vmem:[%s413 + $0x50] sm:$0xff]
        %v420 = vld [vmem:[%s413 + $0x60] sm:$0xff]
        %v421 = vld [vmem:[%s413 + $0x70] sm:$0xff]
        %430 = vrot.lane.b32.xlu0 %v414, 96
        %v431 = vpop.permute.xlu0 %430
        %432 = vrot.lane.b32.xlu0 %v415, 96
        %v433 = vpop.permute.xlu0 %432
        %434 = vrot.lane.b32.xlu0 %v416, 96
        %v435 = vpop.permute.xlu0 %434
        %436 = vrot.lane.b32.xlu0 %v417, 96
        %v437 = vpop.permute.xlu0 %436
        %438 = vrot.lane.b32.xlu0 %v418, 96
        %v439 = vpop.permute.xlu0 %438
        %440 = vrot.lane.b32.xlu0 %v419, 96
        %v441 = vpop.permute.xlu0 %440
        %442 = vrot.lane.b32.xlu0 %v420, 96
        %v443 = vpop.permute.xlu0 %442
        %444 = vrot.lane.b32.xlu0 %v421, 96
        %v445 = vpop.permute.xlu0 %444
        %vm454 = vcmask 1048320
        %455 = vst.msk [vmem:[#allocation2] sm:$0xff] %vm454, %v431
        %456 = vst.msk [vmem:[#allocation2 + $0x18] sm:$0xff] %vm454, %v433
        %457 = vst.msk [vmem:[#allocation2 + $0x30] sm:$0xff] %vm454, %v435
        %458 = vst.msk [vmem:[#allocation2 + $0x48] sm:$0xff] %vm454, %v437
        %459 = vst.msk [vmem:[#allocation2 + $0x60] sm:$0xff] %vm454, %v439
        %460 = vst.msk [vmem:[#allocation2 + $0x78] sm:$0xff] %vm454, %v441
        %461 = vst.msk [vmem:[#allocation2 + $0x90] sm:$0xff] %vm454, %v443
        %462 = vst.msk [vmem:[#allocation2 + $0xa8] sm:$0xff] %vm454, %v445
        %v463 = vld [vmem:[%s413 + $0x1] sm:$0xff]
        %v464 = vld [vmem:[%s413 + $0x11] sm:$0xff]
        %v465 = vld [vmem:[%s413 + $0x21] sm:$0xff]
        %v466 = vld [vmem:[%s413 + $0x31] sm:$0xff]
        %v467 = vld [vmem:[%s413 + $0x41] sm:$0xff]
        %v468 = vld [vmem:[%s413 + $0x51] sm:$0xff]
        %v469 = vld [vmem:[%s413 + $0x61] sm:$0xff]
        %v470 = vld [vmem:[%s413 + $0x71] sm:$0xff]
        %471 = vst.msk [vmem:[#allocation2 + $0x8] sm:$0xff] %vm306, %v463
        %472 = vst.msk [vmem:[#allocation2 + $0x20] sm:$0xff] %vm306, %v464
        %473 = vst.msk [vmem:[#allocation2 + $0x38] sm:$0xff] %vm306, %v465
        %474 = vst.msk [vmem:[#allocation2 + $0x50] sm:$0xff] %vm306, %v466
        %475 = vst.msk [vmem:[#allocation2 + $0x68] sm:$0xff] %vm306, %v467
        %476 = vst.msk [vmem:[#allocation2 + $0x80] sm:$0xff] %vm306, %v468
        %477 = vst.msk [vmem:[#allocation2 + $0x98] sm:$0xff] %vm306, %v469
        %478 = vst.msk [vmem:[#allocation2 + $0xb0] sm:$0xff] %vm306, %v470
        %v479 = vld [vmem:[%s413 + $0x2] sm:$0xff]
        %v480 = vld [vmem:[%s413 + $0x12] sm:$0xff]
        %v481 = vld [vmem:[%s413 + $0x22] sm:$0xff]
        %v482 = vld [vmem:[%s413 + $0x32] sm:$0xff]
        %v483 = vld [vmem:[%s413 + $0x42] sm:$0xff]
        %v484 = vld [vmem:[%s413 + $0x52] sm:$0xff]
        %v485 = vld [vmem:[%s413 + $0x62] sm:$0xff]
        %v486 = vld [vmem:[%s413 + $0x72] sm:$0xff]
        %495 = vrot.lane.b32.xlu0 %v479, 32
        %v496 = vpop.permute.xlu0 %495
        %497 = vrot.lane.b32.xlu0 %v480, 32
        %v498 = vpop.permute.xlu0 %497
        %499 = vrot.lane.b32.xlu0 %v481, 32
        %v500 = vpop.permute.xlu0 %499
        %501 = vrot.lane.b32.xlu0 %v482, 32
        %v502 = vpop.permute.xlu0 %501
        %503 = vrot.lane.b32.xlu0 %v483, 32
        %v504 = vpop.permute.xlu0 %503
        %505 = vrot.lane.b32.xlu0 %v484, 32
        %v506 = vpop.permute.xlu0 %505
        %507 = vrot.lane.b32.xlu0 %v485, 32
        %v508 = vpop.permute.xlu0 %507
        %509 = vrot.lane.b32.xlu0 %v486, 32
        %v510 = vpop.permute.xlu0 %509
        %519 = vst.msk [vmem:[#allocation2 + $0x8] sm:$0xff] %vm355, %v496
        %520 = vst.msk [vmem:[#allocation2 + $0x20] sm:$0xff] %vm355, %v498
        %521 = vst.msk [vmem:[#allocation2 + $0x38] sm:$0xff] %vm355, %v500
        %522 = vst.msk [vmem:[#allocation2 + $0x50] sm:$0xff] %vm355, %v502
        %523 = vst.msk [vmem:[#allocation2 + $0x68] sm:$0xff] %vm355, %v504
        %524 = vst.msk [vmem:[#allocation2 + $0x80] sm:$0xff] %vm355, %v506
        %525 = vst.msk [vmem:[#allocation2 + $0x98] sm:$0xff] %vm355, %v508
        %526 = vst.msk [vmem:[#allocation2 + $0xb0] sm:$0xff] %vm355, %v510
        %s527 = scalar_lea.vmem %s295, 32
        %v528 = vld [vmem:[%s527] sm:$0xff]
        %v529 = vld [vmem:[%s527 + $0x10] sm:$0xff]
        %v530 = vld [vmem:[%s527 + $0x20] sm:$0xff]
        %v531 = vld [vmem:[%s527 + $0x30] sm:$0xff]
        %v532 = vld [vmem:[%s527 + $0x40] sm:$0xff]
        %v533 = vld [vmem:[%s527 + $0x50] sm:$0xff]
        %v534 = vld [vmem:[%s527 + $0x60] sm:$0xff]
        %v535 = vld [vmem:[%s527 + $0x70] sm:$0xff]
        %544 = vrot.lane.b32.xlu0 %v528, 64
        %v545 = vpop.permute.xlu0 %544
        %546 = vrot.lane.b32.xlu0 %v529, 64
        %v547 = vpop.permute.xlu0 %546
        %548 = vrot.lane.b32.xlu0 %v530, 64
        %v549 = vpop.permute.xlu0 %548
        %550 = vrot.lane.b32.xlu0 %v531, 64
        %v551 = vpop.permute.xlu0 %550
        %552 = vrot.lane.b32.xlu0 %v532, 64
        %v553 = vpop.permute.xlu0 %552
        %554 = vrot.lane.b32.xlu0 %v533, 64
        %v555 = vpop.permute.xlu0 %554
        %556 = vrot.lane.b32.xlu0 %v534, 64
        %v557 = vpop.permute.xlu0 %556
        %558 = vrot.lane.b32.xlu0 %v535, 64
        %v559 = vpop.permute.xlu0 %558
        %568 = vst.msk [vmem:[#allocation2 + $0x8] sm:$0xff] %vm404, %v545
        %569 = vst.msk [vmem:[#allocation2 + $0x20] sm:$0xff] %vm404, %v547
        %570 = vst.msk [vmem:[#allocation2 + $0x38] sm:$0xff] %vm404, %v549
        %571 = vst.msk [vmem:[#allocation2 + $0x50] sm:$0xff] %vm404, %v551
        %572 = vst.msk [vmem:[#allocation2 + $0x68] sm:$0xff] %vm404, %v553
        %573 = vst.msk [vmem:[#allocation2 + $0x80] sm:$0xff] %vm404, %v555
        %574 = vst.msk [vmem:[#allocation2 + $0x98] sm:$0xff] %vm404, %v557
        %575 = vst.msk [vmem:[#allocation2 + $0xb0] sm:$0xff] %vm404, %v559
        %v576 = vld [vmem:[%s527 + $0x1] sm:$0xff]
        %v577 = vld [vmem:[%s527 + $0x11] sm:$0xff]
        %v578 = vld [vmem:[%s527 + $0x21] sm:$0xff]
        %v579 = vld [vmem:[%s527 + $0x31] sm:$0xff]
        %v580 = vld [vmem:[%s527 + $0x41] sm:$0xff]
        %v581 = vld [vmem:[%s527 + $0x51] sm:$0xff]
        %v582 = vld [vmem:[%s527 + $0x61] sm:$0xff]
        %v583 = vld [vmem:[%s527 + $0x71] sm:$0xff]
        %592 = vrot.lane.b32.xlu0 %v576, 96
        %v593 = vpop.permute.xlu0 %592
        %594 = vrot.lane.b32.xlu0 %v577, 96
        %v595 = vpop.permute.xlu0 %594
        %596 = vrot.lane.b32.xlu0 %v578, 96
        %v597 = vpop.permute.xlu0 %596
        %598 = vrot.lane.b32.xlu0 %v579, 96
        %v599 = vpop.permute.xlu0 %598
        %600 = vrot.lane.b32.xlu0 %v580, 96
        %v601 = vpop.permute.xlu0 %600
        %602 = vrot.lane.b32.xlu0 %v581, 96
        %v603 = vpop.permute.xlu0 %602
        %604 = vrot.lane.b32.xlu0 %v582, 96
        %v605 = vpop.permute.xlu0 %604
        %606 = vrot.lane.b32.xlu0 %v583, 96
        %v607 = vpop.permute.xlu0 %606
        %616 = vst.msk [vmem:[#allocation2 + $0x8] sm:$0xff] %vm454, %v593
        %617 = vst.msk [vmem:[#allocation2 + $0x20] sm:$0xff] %vm454, %v595
        %618 = vst.msk [vmem:[#allocation2 + $0x38] sm:$0xff] %vm454, %v597
        %619 = vst.msk [vmem:[#allocation2 + $0x50] sm:$0xff] %vm454, %v599
        %620 = vst.msk [vmem:[#allocation2 + $0x68] sm:$0xff] %vm454, %v601
        %621 = vst.msk [vmem:[#allocation2 + $0x80] sm:$0xff] %vm454, %v603
        %622 = vst.msk [vmem:[#allocation2 + $0x98] sm:$0xff] %vm454, %v605
        %623 = vst.msk [vmem:[#allocation2 + $0xb0] sm:$0xff] %vm454, %v607
        %v624 = vld [vmem:[%s527 + $0x2] sm:$0xff]
        %v625 = vld [vmem:[%s527 + $0x12] sm:$0xff]
        %v626 = vld [vmem:[%s527 + $0x22] sm:$0xff]
        %v627 = vld [vmem:[%s527 + $0x32] sm:$0xff]
        %v628 = vld [vmem:[%s527 + $0x42] sm:$0xff]
        %v629 = vld [vmem:[%s527 + $0x52] sm:$0xff]
        %v630 = vld [vmem:[%s527 + $0x62] sm:$0xff]
        %v631 = vld [vmem:[%s527 + $0x72] sm:$0xff]
        %632 = vst.msk [vmem:[#allocation2 + $0x10] sm:$0xff] %vm306, %v624
        %633 = vst.msk [vmem:[#allocation2 + $0x28] sm:$0xff] %vm306, %v625
        %634 = vst.msk [vmem:[#allocation2 + $0x40] sm:$0xff] %vm306, %v626
        %635 = vst.msk [vmem:[#allocation2 + $0x58] sm:$0xff] %vm306, %v627
        %636 = vst.msk [vmem:[#allocation2 + $0x70] sm:$0xff] %vm306, %v628
        %637 = vst.msk [vmem:[#allocation2 + $0x88] sm:$0xff] %vm306, %v629
        %638 = vst.msk [vmem:[#allocation2 + $0xa0] sm:$0xff] %vm306, %v630
        %639 = vst.msk [vmem:[#allocation2 + $0xb8] sm:$0xff] %vm306, %v631
        %s640 = scalar_lea.vmem %s295, 160
        %v641 = vld [vmem:[%s640] sm:$0xff]
        %v642 = vld [vmem:[%s640 + $0x10] sm:$0xff]
        %v643 = vld [vmem:[%s640 + $0x20] sm:$0xff]
        %v644 = vld [vmem:[%s640 + $0x30] sm:$0xff]
        %v645 = vld [vmem:[%s640 + $0x40] sm:$0xff]
        %v646 = vld [vmem:[%s640 + $0x50] sm:$0xff]
        %v647 = vld [vmem:[%s640 + $0x60] sm:$0xff]
        %v648 = vld [vmem:[%s640 + $0x70] sm:$0xff]
        %649 = vst.msk [vmem:[#allocation2 + $0xc0] sm:$0xff] %vm306, %v641
        %650 = vst.msk [vmem:[#allocation2 + $0xd8] sm:$0xff] %vm306, %v642
        %651 = vst.msk [vmem:[#allocation2 + $0xf0] sm:$0xff] %vm306, %v643
        %652 = vst.msk [vmem:[#allocation2 + $0x108] sm:$0xff] %vm306, %v644
        %653 = vst.msk [vmem:[#allocation2 + $0x120] sm:$0xff] %vm306, %v645
        %654 = vst.msk [vmem:[#allocation2 + $0x138] sm:$0xff] %vm306, %v646
        %655 = vst.msk [vmem:[#allocation2 + $0x150] sm:$0xff] %vm306, %v647
        %656 = vst.msk [vmem:[#allocation2 + $0x168] sm:$0xff] %vm306, %v648
        %v657 = vld [vmem:[%s640 + $0x1] sm:$0xff]
        %v658 = vld [vmem:[%s640 + $0x11] sm:$0xff]
        %v659 = vld [vmem:[%s640 + $0x21] sm:$0xff]
        %v660 = vld [vmem:[%s640 + $0x31] sm:$0xff]
        %v661 = vld [vmem:[%s640 + $0x41] sm:$0xff]
        %v662 = vld [vmem:[%s640 + $0x51] sm:$0xff]
        %v663 = vld [vmem:[%s640 + $0x61] sm:$0xff]
        %v664 = vld [vmem:[%s640 + $0x71] sm:$0xff]
        %673 = vrot.lane.b32.xlu0 %v657, 32
        %v674 = vpop.permute.xlu0 %673
        %675 = vrot.lane.b32.xlu0 %v658, 32
        %v676 = vpop.permute.xlu0 %675
        %677 = vrot.lane.b32.xlu0 %v659, 32
        %v678 = vpop.permute.xlu0 %677
        %679 = vrot.lane.b32.xlu0 %v660, 32
        %v680 = vpop.permute.xlu0 %679
        %681 = vrot.lane.b32.xlu0 %v661, 32
        %v682 = vpop.permute.xlu0 %681
        %683 = vrot.lane.b32.xlu0 %v662, 32
        %v684 = vpop.permute.xlu0 %683
        %685 = vrot.lane.b32.xlu0 %v663, 32
        %v686 = vpop.permute.xlu0 %685
        %687 = vrot.lane.b32.xlu0 %v664, 32
        %v688 = vpop.permute.xlu0 %687
        %697 = vst.msk [vmem:[#allocation2 + $0xc0] sm:$0xff] %vm355, %v674
        %698 = vst.msk [vmem:[#allocation2 + $0xd8] sm:$0xff] %vm355, %v676
        %699 = vst.msk [vmem:[#allocation2 + $0xf0] sm:$0xff] %vm355, %v678
        %700 = vst.msk [vmem:[#allocation2 + $0x108] sm:$0xff] %vm355, %v680
        %701 = vst.msk [vmem:[#allocation2 + $0x120] sm:$0xff] %vm355, %v682
        %702 = vst.msk [vmem:[#allocation2 + $0x138] sm:$0xff] %vm355, %v684
        %703 = vst.msk [vmem:[#allocation2 + $0x150] sm:$0xff] %vm355, %v686
        %704 = vst.msk [vmem:[#allocation2 + $0x168] sm:$0xff] %vm355, %v688
        %v705 = vld [vmem:[%s640 + $0x2] sm:$0xff]
        %v706 = vld [vmem:[%s640 + $0x12] sm:$0xff]
        %v707 = vld [vmem:[%s640 + $0x22] sm:$0xff]
        %v708 = vld [vmem:[%s640 + $0x32] sm:$0xff]
        %v709 = vld [vmem:[%s640 + $0x42] sm:$0xff]
        %v710 = vld [vmem:[%s640 + $0x52] sm:$0xff]
        %v711 = vld [vmem:[%s640 + $0x62] sm:$0xff]
        %v712 = vld [vmem:[%s640 + $0x72] sm:$0xff]
        %721 = vrot.lane.b32.xlu0 %v705, 64
        %v722 = vpop.permute.xlu0 %721
        %723 = vrot.lane.b32.xlu0 %v706, 64
        %v724 = vpop.permute.xlu0 %723
        %725 = vrot.lane.b32.xlu0 %v707, 64
        %v726 = vpop.permute.xlu0 %725
        %727 = vrot.lane.b32.xlu0 %v708, 64
        %v728 = vpop.permute.xlu0 %727
        %729 = vrot.lane.b32.xlu0 %v709, 64
        %v730 = vpop.permute.xlu0 %729
        %731 = vrot.lane.b32.xlu0 %v710, 64
        %v732 = vpop.permute.xlu0 %731
        %733 = vrot.lane.b32.xlu0 %v711, 64
        %v734 = vpop.permute.xlu0 %733
        %735 = vrot.lane.b32.xlu0 %v712, 64
        %v736 = vpop.permute.xlu0 %735
        %745 = vst.msk [vmem:[#allocation2 + $0xc0] sm:$0xff] %vm404, %v722
        %746 = vst.msk [vmem:[#allocation2 + $0xd8] sm:$0xff] %vm404, %v724
        %747 = vst.msk [vmem:[#allocation2 + $0xf0] sm:$0xff] %vm404, %v726
        %748 = vst.msk [vmem:[#allocation2 + $0x108] sm:$0xff] %vm404, %v728
        %749 = vst.msk [vmem:[#allocation2 + $0x120] sm:$0xff] %vm404, %v730
        %750 = vst.msk [vmem:[#allocation2 + $0x138] sm:$0xff] %vm404, %v732
        %751 = vst.msk [vmem:[#allocation2 + $0x150] sm:$0xff] %vm404, %v734
        %752 = vst.msk [vmem:[#allocation2 + $0x168] sm:$0xff] %vm404, %v736
        %s753 = scalar_lea.vmem %s295, 176
        %v754 = vld [vmem:[%s753] sm:$0xff]
        %v755 = vld [vmem:[%s753 + $0x10] sm:$0xff]
        %v756 = vld [vmem:[%s753 + $0x20] sm:$0xff]
        %v757 = vld [vmem:[%s753 + $0x30] sm:$0xff]
        %v758 = vld [vmem:[%s753 + $0x40] sm:$0xff]
        %v759 = vld [vmem:[%s753 + $0x50] sm:$0xff]
        %v760 = vld [vmem:[%s753 + $0x60] sm:$0xff]
        %v761 = vld [vmem:[%s753 + $0x70] sm:$0xff]
        %770 = vrot.lane.b32.xlu0 %v754, 96
        %v771 = vpop.permute.xlu0 %770
        %772 = vrot.lane.b32.xlu0 %v755, 96
        %v773 = vpop.permute.xlu0 %772
        %774 = vrot.lane.b32.xlu0 %v756, 96
        %v775 = vpop.permute.xlu0 %774
        %776 = vrot.lane.b32.xlu0 %v757, 96
        %v777 = vpop.permute.xlu0 %776
        %778 = vrot.lane.b32.xlu0 %v758, 96
        %v779 = vpop.permute.xlu0 %778
        %780 = vrot.lane.b32.xlu0 %v759, 96
        %v781 = vpop.permute.xlu0 %780
        %782 = vrot.lane.b32.xlu0 %v760, 96
        %v783 = vpop.permute.xlu0 %782
        %784 = vrot.lane.b32.xlu0 %v761, 96
        %v785 = vpop.permute.xlu0 %784
        %794 = vst.msk [vmem:[#allocation2 + $0xc0] sm:$0xff] %vm454, %v771
        %795 = vst.msk [vmem:[#allocation2 + $0xd8] sm:$0xff] %vm454, %v773
        %796 = vst.msk [vmem:[#allocation2 + $0xf0] sm:$0xff] %vm454, %v775
        %797 = vst.msk [vmem:[#allocation2 + $0x108] sm:$0xff] %vm454, %v777
        %798 = vst.msk [vmem:[#allocation2 + $0x120] sm:$0xff] %vm454, %v779
        %799 = vst.msk [vmem:[#allocation2 + $0x138] sm:$0xff] %vm454, %v781
        %800 = vst.msk [vmem:[#allocation2 + $0x150] sm:$0xff] %vm454, %v783
        %801 = vst.msk [vmem:[#allocation2 + $0x168] sm:$0xff] %vm454, %v785
        %v802 = vld [vmem:[%s753 + $0x1] sm:$0xff]
        %v803 = vld [vmem:[%s753 + $0x11] sm:$0xff]
        %v804 = vld [vmem:[%s753 + $0x21] sm:$0xff]
        %v805 = vld [vmem:[%s753 + $0x31] sm:$0xff]
        %v806 = vld [vmem:[%s753 + $0x41] sm:$0xff]
        %v807 = vld [vmem:[%s753 + $0x51] sm:$0xff]
        %v808 = vld [vmem:[%s753 + $0x61] sm:$0xff]
        %v809 = vld [vmem:[%s753 + $0x71] sm:$0xff]
        %810 = vst.msk [vmem:[#allocation2 + $0xc8] sm:$0xff] %vm306, %v802
        %811 = vst.msk [vmem:[#allocation2 + $0xe0] sm:$0xff] %vm306, %v803
        %812 = vst.msk [vmem:[#allocation2 + $0xf8] sm:$0xff] %vm306, %v804
        %813 = vst.msk [vmem:[#allocation2 + $0x110] sm:$0xff] %vm306, %v805
        %814 = vst.msk [vmem:[#allocation2 + $0x128] sm:$0xff] %vm306, %v806
        %815 = vst.msk [vmem:[#allocation2 + $0x140] sm:$0xff] %vm306, %v807
        %816 = vst.msk [vmem:[#allocation2 + $0x158] sm:$0xff] %vm306, %v808
        %817 = vst.msk [vmem:[#allocation2 + $0x170] sm:$0xff] %vm306, %v809
        %v818 = vld [vmem:[%s753 + $0x2] sm:$0xff]
        %v819 = vld [vmem:[%s753 + $0x12] sm:$0xff]
        %v820 = vld [vmem:[%s753 + $0x22] sm:$0xff]
        %v821 = vld [vmem:[%s753 + $0x32] sm:$0xff]
        %v822 = vld [vmem:[%s753 + $0x42] sm:$0xff]
        %v823 = vld [vmem:[%s753 + $0x52] sm:$0xff]
        %v824 = vld [vmem:[%s753 + $0x62] sm:$0xff]
        %v825 = vld [vmem:[%s753 + $0x72] sm:$0xff]
        %834 = vrot.lane.b32.xlu0 %v818, 32
        %v835 = vpop.permute.xlu0 %834
        %836 = vrot.lane.b32.xlu0 %v819, 32
        %v837 = vpop.permute.xlu0 %836
        %838 = vrot.lane.b32.xlu0 %v820, 32
        %v839 = vpop.permute.xlu0 %838
        %840 = vrot.lane.b32.xlu0 %v821, 32
        %v841 = vpop.permute.xlu0 %840
        %842 = vrot.lane.b32.xlu0 %v822, 32
        %v843 = vpop.permute.xlu0 %842
        %844 = vrot.lane.b32.xlu0 %v823, 32
        %v845 = vpop.permute.xlu0 %844
        %846 = vrot.lane.b32.xlu0 %v824, 32
        %v847 = vpop.permute.xlu0 %846
        %848 = vrot.lane.b32.xlu0 %v825, 32
        %v849 = vpop.permute.xlu0 %848
        %858 = vst.msk [vmem:[#allocation2 + $0xc8] sm:$0xff] %vm355, %v835
        %859 = vst.msk [vmem:[#allocation2 + $0xe0] sm:$0xff] %vm355, %v837
        %860 = vst.msk [vmem:[#allocation2 + $0xf8] sm:$0xff] %vm355, %v839
        %861 = vst.msk [vmem:[#allocation2 + $0x110] sm:$0xff] %vm355, %v841
        %862 = vst.msk [vmem:[#allocation2 + $0x128] sm:$0xff] %vm355, %v843
        %863 = vst.msk [vmem:[#allocation2 + $0x140] sm:$0xff] %vm355, %v845
        %864 = vst.msk [vmem:[#allocation2 + $0x158] sm:$0xff] %vm355, %v847
        %865 = vst.msk [vmem:[#allocation2 + $0x170] sm:$0xff] %vm355, %v849
        %s866 = scalar_lea.vmem %s295, 192
        %v867 = vld [vmem:[%s866] sm:$0xff]
        %v868 = vld [vmem:[%s866 + $0x10] sm:$0xff]
        %v869 = vld [vmem:[%s866 + $0x20] sm:$0xff]
        %v870 = vld [vmem:[%s866 + $0x30] sm:$0xff]
        %v871 = vld [vmem:[%s866 + $0x40] sm:$0xff]
        %v872 = vld [vmem:[%s866 + $0x50] sm:$0xff]
        %v873 = vld [vmem:[%s866 + $0x60] sm:$0xff]
        %v874 = vld [vmem:[%s866 + $0x70] sm:$0xff]
        %883 = vrot.lane.b32.xlu0 %v867, 64
        %v884 = vpop.permute.xlu0 %883
        %885 = vrot.lane.b32.xlu0 %v868, 64
        %v886 = vpop.permute.xlu0 %885
        %887 = vrot.lane.b32.xlu0 %v869, 64
        %v888 = vpop.permute.xlu0 %887
        %889 = vrot.lane.b32.xlu0 %v870, 64
        %v890 = vpop.permute.xlu0 %889
        %891 = vrot.lane.b32.xlu0 %v871, 64
        %v892 = vpop.permute.xlu0 %891
        %893 = vrot.lane.b32.xlu0 %v872, 64
        %v894 = vpop.permute.xlu0 %893
        %895 = vrot.lane.b32.xlu0 %v873, 64
        %v896 = vpop.permute.xlu0 %895
        %897 = vrot.lane.b32.xlu0 %v874, 64
        %v898 = vpop.permute.xlu0 %897
        %907 = vst.msk [vmem:[#allocation2 + $0xc8] sm:$0xff] %vm404, %v884
        %908 = vst.msk [vmem:[#allocation2 + $0xe0] sm:$0xff] %vm404, %v886
        %909 = vst.msk [vmem:[#allocation2 + $0xf8] sm:$0xff] %vm404, %v888
        %910 = vst.msk [vmem:[#allocation2 + $0x110] sm:$0xff] %vm404, %v890
        %911 = vst.msk [vmem:[#allocation2 + $0x128] sm:$0xff] %vm404, %v892
        %912 = vst.msk [vmem:[#allocation2 + $0x140] sm:$0xff] %vm404, %v894
        %913 = vst.msk [vmem:[#allocation2 + $0x158] sm:$0xff] %vm404, %v896
        %914 = vst.msk [vmem:[#allocation2 + $0x170] sm:$0xff] %vm404, %v898
        %v915 = vld [vmem:[%s866 + $0x1] sm:$0xff]
        %v916 = vld [vmem:[%s866 + $0x11] sm:$0xff]
        %v917 = vld [vmem:[%s866 + $0x21] sm:$0xff]
        %v918 = vld [vmem:[%s866 + $0x31] sm:$0xff]
        %v919 = vld [vmem:[%s866 + $0x41] sm:$0xff]
        %v920 = vld [vmem:[%s866 + $0x51] sm:$0xff]
        %v921 = vld [vmem:[%s866 + $0x61] sm:$0xff]
        %v922 = vld [vmem:[%s866 + $0x71] sm:$0xff]
        %931 = vrot.lane.b32.xlu0 %v915, 96
        %v932 = vpop.permute.xlu0 %931
        %933 = vrot.lane.b32.xlu0 %v916, 96
        %v934 = vpop.permute.xlu0 %933
        %935 = vrot.lane.b32.xlu0 %v917, 96
        %v936 = vpop.permute.xlu0 %935
        %937 = vrot.lane.b32.xlu0 %v918, 96
        %v938 = vpop.permute.xlu0 %937
        %939 = vrot.lane.b32.xlu0 %v919, 96
        %v940 = vpop.permute.xlu0 %939
        %941 = vrot.lane.b32.xlu0 %v920, 96
        %v942 = vpop.permute.xlu0 %941
        %943 = vrot.lane.b32.xlu0 %v921, 96
        %v944 = vpop.permute.xlu0 %943
        %945 = vrot.lane.b32.xlu0 %v922, 96
        %v946 = vpop.permute.xlu0 %945
        %955 = vst.msk [vmem:[#allocation2 + $0xc8] sm:$0xff] %vm454, %v932
        %956 = vst.msk [vmem:[#allocation2 + $0xe0] sm:$0xff] %vm454, %v934
        %957 = vst.msk [vmem:[#allocation2 + $0xf8] sm:$0xff] %vm454, %v936
        %958 = vst.msk [vmem:[#allocation2 + $0x110] sm:$0xff] %vm454, %v938
        %959 = vst.msk [vmem:[#allocation2 + $0x128] sm:$0xff] %vm454, %v940
        %960 = vst.msk [vmem:[#allocation2 + $0x140] sm:$0xff] %vm454, %v942
        %961 = vst.msk [vmem:[#allocation2 + $0x158] sm:$0xff] %vm454, %v944
        %962 = vst.msk [vmem:[#allocation2 + $0x170] sm:$0xff] %vm454, %v946
        %v963 = vld [vmem:[%s866 + $0x2] sm:$0xff]
        %v964 = vld [vmem:[%s866 + $0x12] sm:$0xff]
        %v965 = vld [vmem:[%s866 + $0x22] sm:$0xff]
        %v966 = vld [vmem:[%s866 + $0x32] sm:$0xff]
        %v967 = vld [vmem:[%s866 + $0x42] sm:$0xff]
        %v968 = vld [vmem:[%s866 + $0x52] sm:$0xff]
        %v969 = vld [vmem:[%s866 + $0x62] sm:$0xff]
        %v970 = vld [vmem:[%s866 + $0x72] sm:$0xff]
        %971 = vst.msk [vmem:[#allocation2 + $0xd0] sm:$0xff] %vm306, %v963
        %972 = vst.msk [vmem:[#allocation2 + $0xe8] sm:$0xff] %vm306, %v964
        %973 = vst.msk [vmem:[#allocation2 + $0x100] sm:$0xff] %vm306, %v965
        %974 = vst.msk [vmem:[#allocation2 + $0x118] sm:$0xff] %vm306, %v966
        %975 = vst.msk [vmem:[#allocation2 + $0x130] sm:$0xff] %vm306, %v967
        %976 = vst.msk [vmem:[#allocation2 + $0x148] sm:$0xff] %vm306, %v968
        %977 = vst.msk [vmem:[#allocation2 + $0x160] sm:$0xff] %vm306, %v969
        %978 = vst.msk [vmem:[#allocation2 + $0x178] sm:$0xff] %vm306, %v970
        %v979 = vld [vmem:[#allocation2] sm:$0xff]
        %v980 = vld [vmem:[#allocation2 + $0x8] sm:$0xff]
        %v981 = vld [vmem:[#allocation2 + $0x10] sm:$0xff]
        %v982 = vld [vmem:[#allocation2 + $0x18] sm:$0xff]
        %v983 = vld [vmem:[#allocation2 + $0x20] sm:$0xff]
        %v984 = vld [vmem:[#allocation2 + $0x28] sm:$0xff]
        %v985 = vld [vmem:[#allocation2 + $0x30] sm:$0xff]
        %v986 = vld [vmem:[#allocation2 + $0x38] sm:$0xff]
        %v987 = vld [vmem:[#allocation2 + $0x40] sm:$0xff]
        %v988 = vld [vmem:[#allocation2 + $0x48] sm:$0xff]
        %v989 = vld [vmem:[#allocation2 + $0x50] sm:$0xff]
        %v990 = vld [vmem:[#allocation2 + $0x58] sm:$0xff]
        %v991 = vld [vmem:[#allocation2 + $0x60] sm:$0xff]
        %v992 = vld [vmem:[#allocation2 + $0x68] sm:$0xff]
        %v993 = vld [vmem:[#allocation2 + $0x70] sm:$0xff]
        %v994 = vld [vmem:[#allocation2 + $0x78] sm:$0xff]
        %v995 = vld [vmem:[#allocation2 + $0x80] sm:$0xff]
        %v996 = vld [vmem:[#allocation2 + $0x88] sm:$0xff]
        %v997 = vld [vmem:[#allocation2 + $0x90] sm:$0xff]
        %v998 = vld [vmem:[#allocation2 + $0x98] sm:$0xff]
        %v999 = vld [vmem:[#allocation2 + $0xa0] sm:$0xff]
        %v1000 = vld [vmem:[#allocation2 + $0xa8] sm:$0xff]
        %v1001 = vld [vmem:[#allocation2 + $0xb0] sm:$0xff]
        %v1002 = vld [vmem:[#allocation2 + $0xb8] sm:$0xff]
        %v1003 = vld [vmem:[#allocation2 + $0xc0] sm:$0xff]
        %v1004 = vld [vmem:[#allocation2 + $0xc8] sm:$0xff]
        %v1005 = vld [vmem:[#allocation2 + $0xd0] sm:$0xff]
        %v1006 = vld [vmem:[#allocation2 + $0xd8] sm:$0xff]
        %v1007 = vld [vmem:[#allocation2 + $0xe0] sm:$0xff]
        %v1008 = vld [vmem:[#allocation2 + $0xe8] sm:$0xff]
        %v1009 = vld [vmem:[#allocation2 + $0xf0] sm:$0xff]
        %v1010 = vld [vmem:[#allocation2 + $0xf8] sm:$0xff]
        %v1011 = vld [vmem:[#allocation2 + $0x100] sm:$0xff]
        %v1012 = vld [vmem:[#allocation2 + $0x108] sm:$0xff]
        %v1013 = vld [vmem:[#allocation2 + $0x110] sm:$0xff]
        %v1014 = vld [vmem:[#allocation2 + $0x118] sm:$0xff]
        %v1015 = vld [vmem:[#allocation2 + $0x120] sm:$0xff]
        %v1016 = vld [vmem:[#allocation2 + $0x128] sm:$0xff]
        %v1017 = vld [vmem:[#allocation2 + $0x130] sm:$0xff]
        %v1018 = vld [vmem:[#allocation2 + $0x138] sm:$0xff]
        %v1019 = vld [vmem:[#allocation2 + $0x140] sm:$0xff]
        %v1020 = vld [vmem:[#allocation2 + $0x148] sm:$0xff]
        %v1021 = vld [vmem:[#allocation2 + $0x150] sm:$0xff]
        %v1022 = vld [vmem:[#allocation2 + $0x158] sm:$0xff]
        %v1023 = vld [vmem:[#allocation2 + $0x160] sm:$0xff]
        %v1024 = vld [vmem:[#allocation2 + $0x168] sm:$0xff]
        %v1025 = vld [vmem:[#allocation2 + $0x170] sm:$0xff]
        %v1026 = vld [vmem:[#allocation2 + $0x178] sm:$0xff]
        %v1027 = vld [vmem:[%s1] sm:$0xff]
        %v1028 = vld [vmem:[%s1 + $0x8] sm:$0xff]
        %v1029 = vld [vmem:[%s1 + $0x10] sm:$0xff]
        %v1030 = vld [vmem:[%s1 + $0x18] sm:$0xff]
        %v1031 = vld [vmem:[%s1 + $0x20] sm:$0xff]
        %v1032 = vld [vmem:[%s1 + $0x28] sm:$0xff]
        %v1033 = vld [vmem:[%s1 + $0x30] sm:$0xff]
        %v1034 = vld [vmem:[%s1 + $0x38] sm:$0xff]
        %v1035 = vld [vmem:[%s1 + $0x40] sm:$0xff]
        %v1036 = vld [vmem:[%s1 + $0x48] sm:$0xff]
        %v1037 = vld [vmem:[%s1 + $0x50] sm:$0xff]
        %v1038 = vld [vmem:[%s1 + $0x58] sm:$0xff]
        %v1039 = vld [vmem:[%s1 + $0x60] sm:$0xff]
        %v1040 = vld [vmem:[%s1 + $0x68] sm:$0xff]
        %v1041 = vld [vmem:[%s1 + $0x70] sm:$0xff]
        %v1042 = vld [vmem:[%s1 + $0x78] sm:$0xff]
        %v1043 = vld [vmem:[%s1 + $0x80] sm:$0xff]
        %v1044 = vld [vmem:[%s1 + $0x88] sm:$0xff]
        %v1045 = vld [vmem:[%s1 + $0x90] sm:$0xff]
        %v1046 = vld [vmem:[%s1 + $0x98] sm:$0xff]
        %v1047 = vld [vmem:[%s1 + $0xa0] sm:$0xff]
        %v1048 = vld [vmem:[%s1 + $0xa8] sm:$0xff]
        %v1049 = vld [vmem:[%s1 + $0xb0] sm:$0xff]
        %v1050 = vld [vmem:[%s1 + $0xb8] sm:$0xff]
        %v1051 = vld [vmem:[%s1 + $0xc0] sm:$0xff]
        %v1052 = vld [vmem:[%s1 + $0xc8] sm:$0xff]
        %v1053 = vld [vmem:[%s1 + $0xd0] sm:$0xff]
        %v1054 = vld [vmem:[%s1 + $0xd8] sm:$0xff]
        %v1055 = vld [vmem:[%s1 + $0xe0] sm:$0xff]
        %v1056 = vld [vmem:[%s1 + $0xe8] sm:$0xff]
        %v1057 = vld [vmem:[%s1 + $0xf0] sm:$0xff]
        %v1058 = vld [vmem:[%s1 + $0xf8] sm:$0xff]
        %v1059 = vld [vmem:[%s1 + $0x100] sm:$0xff]
        %v1060 = vld [vmem:[%s1 + $0x108] sm:$0xff]
        %v1061 = vld [vmem:[%s1 + $0x110] sm:$0xff]
        %v1062 = vld [vmem:[%s1 + $0x118] sm:$0xff]
        %v1064 = vsel %vm306, %v981, 0
        %v1067 = vsel %vm306, %v984, 0
        %v1070 = vsel %vm306, %v987, 0
        %v1073 = vsel %vm306, %v990, 0
        %v1076 = vsel %vm306, %v993, 0
        %v1079 = vsel %vm306, %v996, 0
        %v1082 = vsel %vm306, %v999, 0
        %v1085 = vsel %vm306, %v1002, 0
        %v1088 = vsel %vm306, %v1005, 0
        %v1091 = vsel %vm306, %v1008, 0
        %v1094 = vsel %vm306, %v1011, 0
        %v1097 = vsel %vm306, %v1014, 0
        %v1100 = vsel %vm306, %v1017, 0
        %v1103 = vsel %vm306, %v1020, 0
        %v1106 = vsel %vm306, %v1023, 0
        %v1109 = vsel %vm306, %v1026, 0
        %1111 = vmatprep.subr.mxu0 0.0
        %1112 = vmatpush1.msra.mxu0 %v1027
        %1113 = vmatprep.subr.mxu0 0.0
        %1114 = vmatpush1.msra.mxu0 %v1028
        %1115 = vmatprep.subr.mxu0 0.0
        %1116 = vmatpush1.msra.mxu0 %v1029
        %1117 = vmatprep.subr.mxu0 0.0
        %1118 = vmatpush1.msra.mxu0 %v1030
        %1119 = vmatprep.subr.mxu0 0.0
        %1120 = vmatpush1.msra.mxu0 %v1031
        %1121 = vmatprep.subr.mxu0 0.0
        %1122 = vmatpush1.msra.mxu0 %v1032
        %1123 = vmatprep.subr.mxu0 0.0
        %1124 = vmatpush1.msra.mxu0 %v1033
        %1125 = vmatprep.subr.mxu0 0.0
        %1126 = vmatpush1.msra.mxu0 %v1034
        %1127 = vmatprep.subr.mxu0 0.0
        %1128 = vmatpush1.msra.mxu0 %v1035
        %1129 = vmatprep.subr.mxu0 0.0
        %1130 = vmatpush1.msra.mxu0 %v1036
        %1131 = vmatprep.subr.mxu0 0.0
        %1132 = vmatpush1.msra.mxu0 %v1037
        %1133 = vmatprep.subr.mxu0 0.0
        %1134 = vmatpush1.msra.mxu0 %v1038
        %1135 = vmatprep.subr.mxu0 0.0
        %1136 = vmatpush1.msra.mxu0 %v1039
        %1137 = vmatprep.subr.mxu0 0.0
        %1138 = vmatpush1.msra.mxu0 %v1040
        %1139 = vmatprep.subr.mxu0 0.0
        %1140 = vmatpush1.msra.mxu0 %v1041
        %1141 = vmatprep.subr.mxu0 0.0
        %1142 = vmatpush1.msra.mxu0 %v1042
        %1143 = vmatprep.subr.mxu0 0.0
        %1144 = vmatpush1.msra.mxu0 %v1043
        %1145 = vmatprep.subr.mxu0 0.0
        %1146 = vmatpush1.msra.mxu0 %v1044
        %1147 = vmatprep.subr.mxu0 0.0
        %1148 = vmatpush1.msra.mxu0 %v1045
        %1149 = vmatprep.subr.mxu0 0.0
        %1150 = vmatpush1.msra.mxu0 %v1046
        %1151 = vmatprep.subr.mxu0 0.0
        %1152 = vmatpush1.msra.mxu0 %v1047
        %1153 = vmatprep.subr.mxu0 0.0
        %1154 = vmatpush1.msra.mxu0 %v1048
        %1155 = vmatprep.subr.mxu0 0.0
        %1156 = vmatpush1.msra.mxu0 %v1049
        %1157 = vmatprep.subr.mxu0 0.0
        %1158 = vmatpush1.msra.mxu0 %v1050
        %1159 = vmatprep.subr.mxu0 0.0
        %1160 = vmatpush1.msra.mxu0 %v1051
        %1161 = vmatprep.subr.mxu0 0.0
        %1162 = vmatpush1.msra.mxu0 %v1052
        %1163 = vmatprep.subr.mxu0 0.0
        %1164 = vmatpush1.msra.mxu0 %v1053
        %1165 = vmatprep.subr.mxu0 0.0
        %1166 = vmatpush1.msra.mxu0 %v1054
        %1167 = vmatprep.subr.mxu0 0.0
        %1168 = vmatpush1.msra.mxu0 %v1055
        %1169 = vmatprep.subr.mxu0 0.0
        %1170 = vmatpush1.msra.mxu0 %v1056
        %1171 = vmatprep.subr.mxu0 0.0
        %1172 = vmatpush1.msra.mxu0 %v1057
        %1173 = vmatprep.subr.mxu0 0.0
        %1174 = vmatpush1.msra.mxu0 %v1058
        %1175 = vmatprep.mubr.f32.mxu0 %v980
        %1176 = vmatmul.mubr.f32.gmra.mrb[0].mxu0 %v979
        %v1177 = vpop.f32.mrb[0].mxu0
        %v1178 = vadd.f32 0.0, %v1177
        %v1179 = vpop.f32.mrb[0].mxu0
        %1180 = vmatprep.mubr.f32.mxu0 %v983
        %1181 = vmatmul.mubr.f32.gmra.mrb[0].mxu0 %v982
        %v1182 = vpop.f32.mrb[0].mxu0
        %v1183 = vadd.f32 0.0, %v1182
        %v1184 = vpop.f32.mrb[0].mxu0
        %1185 = vmatprep.mubr.f32.mxu0 %v986
        %1186 = vmatmul.mubr.f32.gmra.mrb[0].mxu0 %v985
        %v1187 = vpop.f32.mrb[0].mxu0
        %v1188 = vadd.f32 0.0, %v1187
        %v1189 = vpop.f32.mrb[0].mxu0
        %1190 = vmatprep.mubr.f32.mxu0 %v989
        %1191 = vmatmul.mubr.f32.gmra.mrb[0].mxu0 %v988
        %v1192 = vpop.f32.mrb[0].mxu0
        %v1193 = vadd.f32 0.0, %v1192
        %v1194 = vpop.f32.mrb[0].mxu0
        %1195 = vmatprep.mubr.f32.mxu0 %v992
        %1196 = vmatmul.mubr.f32.gmra.mrb[0].mxu0 %v991
        %v1197 = vpop.f32.mrb[0].mxu0
        %v1198 = vadd.f32 0.0, %v1197
        %v1199 = vpop.f32.mrb[0].mxu0
        %1200 = vmatprep.mubr.f32.mxu0 %v995
        %1201 = vmatmul.mubr.f32.gmra.mrb[0].mxu0 %v994
        %v1202 = vpop.f32.mrb[0].mxu0
        %v1203 = vadd.f32 0.0, %v1202
        %v1204 = vpop.f32.mrb[0].mxu0
        %1205 = vmatprep.mubr.f32.mxu0 %v998
        %1206 = vmatmul.mubr.f32.gmra.mrb[0].mxu0 %v997
        %v1207 = vpop.f32.mrb[0].mxu0
        %v1208 = vadd.f32 0.0, %v1207
        %v1209 = vpop.f32.mrb[0].mxu0
        %1210 = vmatprep.mubr.f32.mxu0 %v1001
        %1211 = vmatmul.mubr.f32.gmra.mrb[0].mxu0 %v1000
        %v1212 = vpop.f32.mrb[0].mxu0
        %v1213 = vadd.f32 0.0, %v1212
        %v1214 = vpop.f32.mrb[0].mxu0
        %1215 = vmatprep.mubr.f32.mxu0 %v1004
        %1216 = vmatmul.mubr.f32.gmra.mrb[0].mxu0 %v1003
        %v1217 = vpop.f32.mrb[0].mxu0
        %v1218 = vadd.f32 0.0, %v1217
        %v1219 = vpop.f32.mrb[0].mxu0
        %1220 = vmatprep.mubr.f32.mxu0 %v1007
        %1221 = vmatmul.mubr.f32.gmra.mrb[0].mxu0 %v1006
        %v1222 = vpop.f32.mrb[0].mxu0
        %v1223 = vadd.f32 0.0, %v1222
        %v1224 = vpop.f32.mrb[0].mxu0
        %1225 = vmatprep.mubr.f32.mxu0 %v1010
        %1226 = vmatmul.mubr.f32.gmra.mrb[0].mxu0 %v1009
        %v1227 = vpop.f32.mrb[0].mxu0
        %v1228 = vadd.f32 0.0, %v1227
        %v1229 = vpop.f32.mrb[0].mxu0
        %1230 = vmatprep.mubr.f32.mxu0 %v1013
        %1231 = vmatmul.mubr.f32.gmra.mrb[0].mxu0 %v1012
        %v1232 = vpop.f32.mrb[0].mxu0
        %v1233 = vadd.f32 0.0, %v1232
        %v1234 = vpop.f32.mrb[0].mxu0
        %1235 = vmatprep.mubr.f32.mxu0 %v1016
        %1236 = vmatmul.mubr.f32.gmra.mrb[0].mxu0 %v1015
        %v1237 = vpop.f32.mrb[0].mxu0
        %v1238 = vadd.f32 0.0, %v1237
        %v1239 = vpop.f32.mrb[0].mxu0
        %1240 = vmatprep.mubr.f32.mxu0 %v1019
        %1241 = vmatmul.mubr.f32.gmra.mrb[0].mxu0 %v1018
        %v1242 = vpop.f32.mrb[0].mxu0
        %v1243 = vadd.f32 0.0, %v1242
        %v1244 = vpop.f32.mrb[0].mxu0
        %1245 = vmatprep.mubr.f32.mxu0 %v1022
        %1246 = vmatmul.mubr.f32.gmra.mrb[0].mxu0 %v1021
        %v1247 = vpop.f32.mrb[0].mxu0
        %v1248 = vadd.f32 0.0, %v1247
        %v1249 = vpop.f32.mrb[0].mxu0
        %1250 = vmatprep.mubr.f32.mxu0 %v1025
        %1251 = vmatmul.mubr.f32.gmra.mrb[0].mxu0 %v1024
        %v1252 = vpop.f32.mrb[0].mxu0
        %v1253 = vadd.f32 0.0, %v1252
        %v1254 = vpop.f32.mrb[0].mxu0
        %1255 = vdwg.mxu0
        %1256 = vmatprep.subr.mxu0 0.0
        %1257 = vmatpush1.msra.mxu0 %v1059
        %1258 = vmatprep.subr.mxu0 0.0
        %1259 = vmatpush1.msra.mxu0 %v1060
        %1260 = vmatprep.subr.mxu0 0.0
        %1261 = vmatpush1.msra.mxu0 %v1061
        %1262 = vmatprep.subr.mxu0 0.0
        %1263 = vmatpush1.msra.mxu0 %v1062
        %1264 = vmatprep.subr.mxu0 0.0
        %1265 = vmatpush1.msra.mxu0 0.0
        %1266 = vmatprep.subr.mxu0 0.0
        %1267 = vmatpush1.msra.mxu0 0.0
        %1268 = vmatprep.subr.mxu0 0.0
        %1269 = vmatpush1.msra.mxu0 0.0
        %1270 = vmatprep.subr.mxu0 0.0
        %1271 = vmatpush1.msra.mxu0 0.0
        %1272 = vmatprep.subr.mxu0 0.0
        %1273 = vmatpush1.msra.mxu0 0.0
        %1274 = vmatprep.subr.mxu0 0.0
        %1275 = vmatpush1.msra.mxu0 0.0
        %1276 = vmatprep.subr.mxu0 0.0
        %1277 = vmatpush1.msra.mxu0 0.0
        %1278 = vmatprep.subr.mxu0 0.0
        %1279 = vmatpush1.msra.mxu0 0.0
        %1280 = vmatprep.subr.mxu0 0.0
        %1281 = vmatpush1.msra.mxu0 0.0
        %1282 = vmatprep.subr.mxu0 0.0
        %1283 = vmatpush1.msra.mxu0 0.0
        %1284 = vmatprep.subr.mxu0 0.0
        %1285 = vmatpush1.msra.mxu0 0.0
        %1286 = vmatprep.subr.mxu0 0.0
        %1287 = vmatpush1.msra.mxu0 0.0
        %1288 = vmatprep.subr.mxu0 0.0
        %1289 = vmatpush1.msra.mxu0 0.0
        %1290 = vmatprep.subr.mxu0 0.0
        %1291 = vmatpush1.msra.mxu0 0.0
        %1292 = vmatprep.subr.mxu0 0.0
        %1293 = vmatpush1.msra.mxu0 0.0
        %1294 = vmatprep.subr.mxu0 0.0
        %1295 = vmatpush1.msra.mxu0 0.0
        %1296 = vmatprep.subr.mxu0 0.0
        %1297 = vmatpush1.msra.mxu0 0.0
        %1298 = vmatprep.subr.mxu0 0.0
        %1299 = vmatpush1.msra.mxu0 0.0
        %1300 = vmatprep.subr.mxu0 0.0
        %1301 = vmatpush1.msra.mxu0 0.0
        %1302 = vmatprep.subr.mxu0 0.0
        %1303 = vmatpush1.msra.mxu0 0.0
        %1304 = vmatprep.subr.mxu0 0.0
        %1305 = vmatpush1.msra.mxu0 0.0
        %1306 = vmatprep.subr.mxu0 0.0
        %1307 = vmatpush1.msra.mxu0 0.0
        %1308 = vmatprep.subr.mxu0 0.0
        %1309 = vmatpush1.msra.mxu0 0.0
        %1310 = vmatprep.subr.mxu0 0.0
        %1311 = vmatpush1.msra.mxu0 0.0
        %1312 = vmatprep.subr.mxu0 0.0
        %1313 = vmatpush1.msra.mxu0 0.0
        %1314 = vmatprep.subr.mxu0 0.0
        %1315 = vmatpush1.msra.mxu0 0.0
        %1316 = vmatprep.subr.mxu0 0.0
        %1317 = vmatpush1.msra.mxu0 0.0
        %1318 = vmatprep.subr.mxu0 0.0
        %1319 = vmatpush1.msra.mxu0 0.0
        %1320 = vmatprep.mubr.f32.mxu0 0.0
        %1321 = vmatmul.mubr.f32.gmra.mrb[0].mxu0 %v1064
        %v1322 = vpop.f32.mrb[0].mxu0
        %v1323 = vadd.f32 %v1178, %v1322
        %v1324 = vpop.f32.mrb[0].mxu0
        %1325 = vmatprep.mubr.f32.mxu0 0.0
        %1326 = vmatmul.mubr.f32.gmra.mrb[0].mxu0 %v1067
        %v1327 = vpop.f32.mrb[0].mxu0
        %v1328 = vadd.f32 %v1183, %v1327
        %v1329 = vpop.f32.mrb[0].mxu0
        %1330 = vmatprep.mubr.f32.mxu0 0.0
        %1331 = vmatmul.mubr.f32.gmra.mrb[0].mxu0 %v1070
        %v1332 = vpop.f32.mrb[0].mxu0
        %v1333 = vadd.f32 %v1188, %v1332
        %v1334 = vpop.f32.mrb[0].mxu0
        %1335 = vmatprep.mubr.f32.mxu0 0.0
        %1336 = vmatmul.mubr.f32.gmra.mrb[0].mxu0 %v1073
        %v1337 = vpop.f32.mrb[0].mxu0
        %v1338 = vadd.f32 %v1193, %v1337
        %v1339 = vpop.f32.mrb[0].mxu0
        %1340 = vmatprep.mubr.f32.mxu0 0.0
        %1341 = vmatmul.mubr.f32.gmra.mrb[0].mxu0 %v1076
        %v1342 = vpop.f32.mrb[0].mxu0
        %v1343 = vadd.f32 %v1198, %v1342
        %v1344 = vpop.f32.mrb[0].mxu0
        %1345 = vmatprep.mubr.f32.mxu0 0.0
        %1346 = vmatmul.mubr.f32.gmra.mrb[0].mxu0 %v1079
        %v1347 = vpop.f32.mrb[0].mxu0
        %v1348 = vadd.f32 %v1203, %v1347
        %v1349 = vpop.f32.mrb[0].mxu0
        %1350 = vmatprep.mubr.f32.mxu0 0.0
        %1351 = vmatmul.mubr.f32.gmra.mrb[0].mxu0 %v1082
        %v1352 = vpop.f32.mrb[0].mxu0
        %v1353 = vadd.f32 %v1208, %v1352
        %v1354 = vpop.f32.mrb[0].mxu0
        %1355 = vmatprep.mubr.f32.mxu0 0.0
        %1356 = vmatmul.mubr.f32.gmra.mrb[0].mxu0 %v1085
        %v1357 = vpop.f32.mrb[0].mxu0
        %v1358 = vadd.f32 %v1213, %v1357
        %v1359 = vpop.f32.mrb[0].mxu0
        %1360 = vmatprep.mubr.f32.mxu0 0.0
        %1361 = vmatmul.mubr.f32.gmra.mrb[0].mxu0 %v1088
        %v1362 = vpop.f32.mrb[0].mxu0
        %v1363 = vadd.f32 %v1218, %v1362
        %v1364 = vpop.f32.mrb[0].mxu0
        %1365 = vmatprep.mubr.f32.mxu0 0.0
        %1366 = vmatmul.mubr.f32.gmra.mrb[0].mxu0 %v1091
        %v1367 = vpop.f32.mrb[0].mxu0
        %v1368 = vadd.f32 %v1223, %v1367
        %v1369 = vpop.f32.mrb[0].mxu0
        %1370 = vmatprep.mubr.f32.mxu0 0.0
        %1371 = vmatmul.mubr.f32.gmra.mrb[0].mxu0 %v1094
        %v1372 = vpop.f32.mrb[0].mxu0
        %v1373 = vadd.f32 %v1228, %v1372
        %v1374 = vpop.f32.mrb[0].mxu0
        %1375 = vmatprep.mubr.f32.mxu0 0.0
        %1376 = vmatmul.mubr.f32.gmra.mrb[0].mxu0 %v1097
        %v1377 = vpop.f32.mrb[0].mxu0
        %v1378 = vadd.f32 %v1233, %v1377
        %v1379 = vpop.f32.mrb[0].mxu0
        %1380 = vmatprep.mubr.f32.mxu0 0.0
        %1381 = vmatmul.mubr.f32.gmra.mrb[0].mxu0 %v1100
        %v1382 = vpop.f32.mrb[0].mxu0
        %v1383 = vadd.f32 %v1238, %v1382
        %v1384 = vpop.f32.mrb[0].mxu0
        %1385 = vmatprep.mubr.f32.mxu0 0.0
        %1386 = vmatmul.mubr.f32.gmra.mrb[0].mxu0 %v1103
        %v1387 = vpop.f32.mrb[0].mxu0
        %v1388 = vadd.f32 %v1243, %v1387
        %v1389 = vpop.f32.mrb[0].mxu0
        %1390 = vmatprep.mubr.f32.mxu0 0.0
        %1391 = vmatmul.mubr.f32.gmra.mrb[0].mxu0 %v1106
        %v1392 = vpop.f32.mrb[0].mxu0
        %v1393 = vadd.f32 %v1248, %v1392
        %v1394 = vpop.f32.mrb[0].mxu0
        %1395 = vmatprep.mubr.f32.mxu0 0.0
        %1396 = vmatmul.mubr.f32.gmra.mrb[0].mxu0 %v1109
        %v1397 = vpop.f32.mrb[0].mxu0
        %v1398 = vadd.f32 %v1253, %v1397
        %v1399 = vpop.f32.mrb[0].mxu0
        %1400 = vdwg.mxu0
        %v1401 = vld [vmem:[%s2] sm:$0x1]
        %v1403 = vlaneseq
        %v1404 = vshrl.u32 %v1403, 7
        %v1405 = vsub.s32 0, %v1404
        %v1406 = vrot.slane %v1401, %v1405
        %v1408 = vmul.f32 %v1323, %v1406
        %v1409 = vmul.f32 %v1328, %v1406
        %v1410 = vmul.f32 %v1333, %v1406
        %v1411 = vmul.f32 %v1338, %v1406
        %v1412 = vmul.f32 %v1343, %v1406
        %v1413 = vmul.f32 %v1348, %v1406
        %v1414 = vmul.f32 %v1353, %v1406
        %v1415 = vmul.f32 %v1358, %v1406
        %v1416 = vmul.f32 %v1363, %v1406
        %v1417 = vmul.f32 %v1368, %v1406
        %v1418 = vmul.f32 %v1373, %v1406
        %v1419 = vmul.f32 %v1378, %v1406
        %v1420 = vmul.f32 %v1383, %v1406
        %v1421 = vmul.f32 %v1388, %v1406
        %v1422 = vmul.f32 %v1393, %v1406
        %v1423 = vmul.f32 %v1398, %v1406
        %v1424 = vld [vmem:[%s3] sm:$0x1]
        %v1426 = vlaneseq
        %v1427 = vshrl.u32 %v1426, 7
        %v1428 = vsub.s32 0, %v1427
        %v1429 = vrot.slane %v1424, %v1428
        %v1431 = vadd.f32 %v1408, %v1429
        %v1432 = vadd.f32 %v1409, %v1429
        %v1433 = vadd.f32 %v1410, %v1429
        %v1434 = vadd.f32 %v1411, %v1429
        %v1435 = vadd.f32 %v1412, %v1429
        %v1436 = vadd.f32 %v1413, %v1429
        %v1437 = vadd.f32 %v1414, %v1429
        %v1438 = vadd.f32 %v1415, %v1429
        %v1439 = vadd.f32 %v1416, %v1429
        %v1440 = vadd.f32 %v1417, %v1429
        %v1441 = vadd.f32 %v1418, %v1429
        %v1442 = vadd.f32 %v1419, %v1429
        %v1443 = vadd.f32 %v1420, %v1429
        %v1444 = vadd.f32 %v1421, %v1429
        %v1445 = vadd.f32 %v1422, %v1429
        %v1446 = vadd.f32 %v1423, %v1429
        %v1447 = vmax.f32 %v1431, 0.0
        %v1448 = vmax.f32 %v1432, 0.0
        %v1449 = vmax.f32 %v1433, 0.0
        %v1450 = vmax.f32 %v1434, 0.0
        %v1451 = vmax.f32 %v1435, 0.0
        %v1452 = vmax.f32 %v1436, 0.0
        %v1453 = vmax.f32 %v1437, 0.0
        %v1454 = vmax.f32 %v1438, 0.0
        %v1455 = vmax.f32 %v1439, 0.0
        %v1456 = vmax.f32 %v1440, 0.0
        %v1457 = vmax.f32 %v1441, 0.0
        %v1458 = vmax.f32 %v1442, 0.0
        %v1459 = vmax.f32 %v1443, 0.0
        %v1460 = vmax.f32 %v1444, 0.0
        %v1461 = vmax.f32 %v1445, 0.0
        %v1462 = vmax.f32 %v1446, 0.0
        %1463 = vst [vmem:[#allocation3] sm:$0xff] 0.0
        %1464 = vst [vmem:[#allocation3 + $0x8] sm:$0x3] 0.0
        %s1465 = scalar_lea.vmem [#allocation3], 144
        %1466 = vst [vmem:[%s1465] sm:$0xff] 0.0
        %1467 = vst [vmem:[%s1465 + $0x8] sm:$0x3] 0.0
        %s1468 = scalar_lea.vmem [#allocation3], 16
        %1469 = vst [vmem:[%s1468] sm:$0x1] 0.0
        %1470 = vst [vmem:[%s1468 + $0x10] sm:$0x1] 0.0
        %1471 = vst [vmem:[%s1468 + $0x20] sm:$0x1] 0.0
        %1472 = vst [vmem:[%s1468 + $0x30] sm:$0x1] 0.0
        %1473 = vst [vmem:[%s1468 + $0x40] sm:$0x1] 0.0
        %1474 = vst [vmem:[%s1468 + $0x50] sm:$0x1] 0.0
        %1475 = vst [vmem:[%s1468 + $0x60] sm:$0x1] 0.0
        %1476 = vst [vmem:[%s1468 + $0x70] sm:$0x1] 0.0
        %1477 = vst [vmem:[%s1468 + $0x9] sm:$0x1] 0.0
        %1478 = vst [vmem:[%s1468 + $0x19] sm:$0x1] 0.0
        %1479 = vst [vmem:[%s1468 + $0x29] sm:$0x1] 0.0
        %1480 = vst [vmem:[%s1468 + $0x39] sm:$0x1] 0.0
        %1481 = vst [vmem:[%s1468 + $0x49] sm:$0x1] 0.0
        %1482 = vst [vmem:[%s1468 + $0x59] sm:$0x1] 0.0
        %1483 = vst [vmem:[%s1468 + $0x69] sm:$0x1] 0.0
        %1484 = vst [vmem:[%s1468 + $0x79] sm:$0x1] 0.0
        %1485 = vst [vmem:[%s1468 + $0x1] sm:$0xff] %v1447
        %1486 = vst [vmem:[%s1468 + $0x11] sm:$0xff] %v1448
        %1487 = vst [vmem:[%s1468 + $0x21] sm:$0xff] %v1449
        %1488 = vst [vmem:[%s1468 + $0x31] sm:$0xff] %v1450
        %1489 = vst [vmem:[%s1468 + $0x41] sm:$0xff] %v1451
        %1490 = vst [vmem:[%s1468 + $0x51] sm:$0xff] %v1452
        %1491 = vst [vmem:[%s1468 + $0x61] sm:$0xff] %v1453
        %1492 = vst [vmem:[%s1468 + $0x71] sm:$0xff] %v1454
        %s1493 = scalar_lea.vmem [#allocation3], 160
        %1494 = vst [vmem:[%s1493] sm:$0xff] 0.0
        %1495 = vst [vmem:[%s1493 + $0x8] sm:$0x3] 0.0
        %s1496 = scalar_lea.vmem [#allocation3], 304
        %1497 = vst [vmem:[%s1496] sm:$0xff] 0.0
        %1498 = vst [vmem:[%s1496 + $0x8] sm:$0x3] 0.0
        %s1499 = scalar_lea.vmem [#allocation3], 176
        %1500 = vst [vmem:[%s1499] sm:$0x1] 0.0
        %1501 = vst [vmem:[%s1499 + $0x10] sm:$0x1] 0.0
        %1502 = vst [vmem:[%s1499 + $0x20] sm:$0x1] 0.0
        %1503 = vst [vmem:[%s1499 + $0x30] sm:$0x1] 0.0
        %1504 = vst [vmem:[%s1499 + $0x40] sm:$0x1] 0.0
        %1505 = vst [vmem:[%s1499 + $0x50] sm:$0x1] 0.0
        %1506 = vst [vmem:[%s1499 + $0x60] sm:$0x1] 0.0
        %1507 = vst [vmem:[%s1499 + $0x70] sm:$0x1] 0.0
        %1508 = vst [vmem:[%s1499 + $0x9] sm:$0x1] 0.0
        %1509 = vst [vmem:[%s1499 + $0x19] sm:$0x1] 0.0
        %1510 = vst [vmem:[%s1499 + $0x29] sm:$0x1] 0.0
        %1511 = vst [vmem:[%s1499 + $0x39] sm:$0x1] 0.0
        %1512 = vst [vmem:[%s1499 + $0x49] sm:$0x1] 0.0
        %1513 = vst [vmem:[%s1499 + $0x59] sm:$0x1] 0.0
        %1514 = vst [vmem:[%s1499 + $0x69] sm:$0x1] 0.0
        %1515 = vst [vmem:[%s1499 + $0x79] sm:$0x1] 0.0
        %1516 = vst [vmem:[%s1499 + $0x1] sm:$0xff] %v1455
        %1517 = vst [vmem:[%s1499 + $0x11] sm:$0xff] %v1456
        %1518 = vst [vmem:[%s1499 + $0x21] sm:$0xff] %v1457
        %1519 = vst [vmem:[%s1499 + $0x31] sm:$0xff] %v1458
        %1520 = vst [vmem:[%s1499 + $0x41] sm:$0xff] %v1459
        %1521 = vst [vmem:[%s1499 + $0x51] sm:$0xff] %v1460
        %1522 = vst [vmem:[%s1499 + $0x61] sm:$0xff] %v1461
        %1523 = vst [vmem:[%s1499 + $0x71] sm:$0xff] %v1462
        %v1524 = vld [vmem:[#allocation3] sm:$0xff]
        %v1525 = vld [vmem:[#allocation3 + $0x10] sm:$0xff]
        %v1526 = vld [vmem:[#allocation3 + $0x20] sm:$0xff]
        %v1527 = vld [vmem:[#allocation3 + $0x30] sm:$0xff]
        %v1528 = vld [vmem:[#allocation3 + $0x40] sm:$0xff]
        %v1529 = vld [vmem:[#allocation3 + $0x50] sm:$0xff]
        %v1530 = vld [vmem:[#allocation3 + $0x60] sm:$0xff]
        %v1531 = vld [vmem:[#allocation3 + $0x70] sm:$0xff]
        %1532 = vst [vmem:[#allocation4] sm:$0xff] %v1524
        %1533 = vst [vmem:[#allocation4 + $0x48] sm:$0xff] %v1525
        %1534 = vst [vmem:[#allocation4 + $0x90] sm:$0xff] %v1526
        %1535 = vst [vmem:[#allocation4 + $0xd8] sm:$0xff] %v1527
        %1536 = vst [vmem:[#allocation4 + $0x120] sm:$0xff] %v1528
        %1537 = vst [vmem:[#allocation4 + $0x168] sm:$0xff] %v1529
        %1538 = vst [vmem:[#allocation4 + $0x1b0] sm:$0xff] %v1530
        %1539 = vst [vmem:[#allocation4 + $0x1f8] sm:$0xff] %v1531
        %v1540 = vld [vmem:[#allocation3 + $0x1] sm:$0xff]
        %v1541 = vld [vmem:[#allocation3 + $0x11] sm:$0xff]
        %v1542 = vld [vmem:[#allocation3 + $0x21] sm:$0xff]
        %v1543 = vld [vmem:[#allocation3 + $0x31] sm:$0xff]
        %v1544 = vld [vmem:[#allocation3 + $0x41] sm:$0xff]
        %v1545 = vld [vmem:[#allocation3 + $0x51] sm:$0xff]
        %v1546 = vld [vmem:[#allocation3 + $0x61] sm:$0xff]
        %v1547 = vld [vmem:[#allocation3 + $0x71] sm:$0xff]
        %1548 = vst [vmem:[#allocation4 + $0x8] sm:$0xff] %v1540
        %1549 = vst [vmem:[#allocation4 + $0x50] sm:$0xff] %v1541
        %1550 = vst [vmem:[#allocation4 + $0x98] sm:$0xff] %v1542
        %1551 = vst [vmem:[#allocation4 + $0xe0] sm:$0xff] %v1543
        %1552 = vst [vmem:[#allocation4 + $0x128] sm:$0xff] %v1544
        %1553 = vst [vmem:[#allocation4 + $0x170] sm:$0xff] %v1545
        %1554 = vst [vmem:[#allocation4 + $0x1b8] sm:$0xff] %v1546
        %1555 = vst [vmem:[#allocation4 + $0x200] sm:$0xff] %v1547
        %v1556 = vld [vmem:[#allocation3 + $0x2] sm:$0xff]
        %v1557 = vld [vmem:[#allocation3 + $0x12] sm:$0xff]
        %v1558 = vld [vmem:[#allocation3 + $0x22] sm:$0xff]
        %v1559 = vld [vmem:[#allocation3 + $0x32] sm:$0xff]
        %v1560 = vld [vmem:[#allocation3 + $0x42] sm:$0xff]
        %v1561 = vld [vmem:[#allocation3 + $0x52] sm:$0xff]
        %v1562 = vld [vmem:[#allocation3 + $0x62] sm:$0xff]
        %v1563 = vld [vmem:[#allocation3 + $0x72] sm:$0xff]
        %1564 = vst [vmem:[#allocation4 + $0x10] sm:$0xff] %v1556
        %1565 = vst [vmem:[#allocation4 + $0x58] sm:$0xff] %v1557
        %1566 = vst [vmem:[#allocation4 + $0xa0] sm:$0xff] %v1558
        %1567 = vst [vmem:[#allocation4 + $0xe8] sm:$0xff] %v1559
        %1568 = vst [vmem:[#allocation4 + $0x130] sm:$0xff] %v1560
        %1569 = vst [vmem:[#allocation4 + $0x178] sm:$0xff] %v1561
        %1570 = vst [vmem:[#allocation4 + $0x1c0] sm:$0xff] %v1562
        %1571 = vst [vmem:[#allocation4 + $0x208] sm:$0xff] %v1563
        %v1572 = vld [vmem:[%s1468] sm:$0xff]
        %v1573 = vld [vmem:[%s1468 + $0x10] sm:$0xff]
        %v1574 = vld [vmem:[%s1468 + $0x20] sm:$0xff]
        %v1575 = vld [vmem:[%s1468 + $0x30] sm:$0xff]
        %v1576 = vld [vmem:[%s1468 + $0x40] sm:$0xff]
        %v1577 = vld [vmem:[%s1468 + $0x50] sm:$0xff]
        %v1578 = vld [vmem:[%s1468 + $0x60] sm:$0xff]
        %v1579 = vld [vmem:[%s1468 + $0x70] sm:$0xff]
        %1580 = vst [vmem:[#allocation4 + $0x18] sm:$0xff] %v1572
        %1581 = vst [vmem:[#allocation4 + $0x60] sm:$0xff] %v1573
        %1582 = vst [vmem:[#allocation4 + $0xa8] sm:$0xff] %v1574
        %1583 = vst [vmem:[#allocation4 + $0xf0] sm:$0xff] %v1575
        %1584 = vst [vmem:[#allocation4 + $0x138] sm:$0xff] %v1576
        %1585 = vst [vmem:[#allocation4 + $0x180] sm:$0xff] %v1577
        %1586 = vst [vmem:[#allocation4 + $0x1c8] sm:$0xff] %v1578
        %1587 = vst [vmem:[#allocation4 + $0x210] sm:$0xff] %v1579
        %v1588 = vld [vmem:[%s1468 + $0x1] sm:$0xff]
        %v1589 = vld [vmem:[%s1468 + $0x11] sm:$0xff]
        %v1590 = vld [vmem:[%s1468 + $0x21] sm:$0xff]
        %v1591 = vld [vmem:[%s1468 + $0x31] sm:$0xff]
        %v1592 = vld [vmem:[%s1468 + $0x41] sm:$0xff]
        %v1593 = vld [vmem:[%s1468 + $0x51] sm:$0xff]
        %v1594 = vld [vmem:[%s1468 + $0x61] sm:$0xff]
        %v1595 = vld [vmem:[%s1468 + $0x71] sm:$0xff]
        %1596 = vst [vmem:[#allocation4 + $0x20] sm:$0xff] %v1588
        %1597 = vst [vmem:[#allocation4 + $0x68] sm:$0xff] %v1589
        %1598 = vst [vmem:[#allocation4 + $0xb0] sm:$0xff] %v1590
        %1599 = vst [vmem:[#allocation4 + $0xf8] sm:$0xff] %v1591
        %1600 = vst [vmem:[#allocation4 + $0x140] sm:$0xff] %v1592
        %1601 = vst [vmem:[#allocation4 + $0x188] sm:$0xff] %v1593
        %1602 = vst [vmem:[#allocation4 + $0x1d0] sm:$0xff] %v1594
        %1603 = vst [vmem:[#allocation4 + $0x218] sm:$0xff] %v1595
        %v1604 = vld [vmem:[%s1468 + $0x2] sm:$0xff]
        %v1605 = vld [vmem:[%s1468 + $0x12] sm:$0xff]
        %v1606 = vld [vmem:[%s1468 + $0x22] sm:$0xff]
        %v1607 = vld [vmem:[%s1468 + $0x32] sm:$0xff]
        %v1608 = vld [vmem:[%s1468 + $0x42] sm:$0xff]
        %v1609 = vld [vmem:[%s1468 + $0x52] sm:$0xff]
        %v1610 = vld [vmem:[%s1468 + $0x62] sm:$0xff]
        %v1611 = vld [vmem:[%s1468 + $0x72] sm:$0xff]
        %1612 = vst [vmem:[#allocation4 + $0x28] sm:$0xff] %v1604
        %1613 = vst [vmem:[#allocation4 + $0x70] sm:$0xff] %v1605
        %1614 = vst [vmem:[#allocation4 + $0xb8] sm:$0xff] %v1606
        %1615 = vst [vmem:[#allocation4 + $0x100] sm:$0xff] %v1607
        %1616 = vst [vmem:[#allocation4 + $0x148] sm:$0xff] %v1608
        %1617 = vst [vmem:[#allocation4 + $0x190] sm:$0xff] %v1609
        %1618 = vst [vmem:[#allocation4 + $0x1d8] sm:$0xff] %v1610
        %1619 = vst [vmem:[#allocation4 + $0x220] sm:$0xff] %v1611
        %s1620 = scalar_lea.vmem [#allocation3], 32
        %v1621 = vld [vmem:[%s1620] sm:$0xff]
        %v1622 = vld [vmem:[%s1620 + $0x10] sm:$0xff]
        %v1623 = vld [vmem:[%s1620 + $0x20] sm:$0xff]
        %v1624 = vld [vmem:[%s1620 + $0x30] sm:$0xff]
        %v1625 = vld [vmem:[%s1620 + $0x40] sm:$0xff]
        %v1626 = vld [vmem:[%s1620 + $0x50] sm:$0xff]
        %v1627 = vld [vmem:[%s1620 + $0x60] sm:$0xff]
        %v1628 = vld [vmem:[%s1620 + $0x70] sm:$0xff]
        %1629 = vst [vmem:[#allocation4 + $0x30] sm:$0xff] %v1621
        %1630 = vst [vmem:[#allocation4 + $0x78] sm:$0xff] %v1622
        %1631 = vst [vmem:[#allocation4 + $0xc0] sm:$0xff] %v1623
        %1632 = vst [vmem:[#allocation4 + $0x108] sm:$0xff] %v1624
        %1633 = vst [vmem:[#allocation4 + $0x150] sm:$0xff] %v1625
        %1634 = vst [vmem:[#allocation4 + $0x198] sm:$0xff] %v1626
        %1635 = vst [vmem:[#allocation4 + $0x1e0] sm:$0xff] %v1627
        %1636 = vst [vmem:[#allocation4 + $0x228] sm:$0xff] %v1628
        %v1637 = vld [vmem:[%s1620 + $0x1] sm:$0xff]
        %v1638 = vld [vmem:[%s1620 + $0x11] sm:$0xff]
        %v1639 = vld [vmem:[%s1620 + $0x21] sm:$0xff]
        %v1640 = vld [vmem:[%s1620 + $0x31] sm:$0xff]
        %v1641 = vld [vmem:[%s1620 + $0x41] sm:$0xff]
        %v1642 = vld [vmem:[%s1620 + $0x51] sm:$0xff]
        %v1643 = vld [vmem:[%s1620 + $0x61] sm:$0xff]
        %v1644 = vld [vmem:[%s1620 + $0x71] sm:$0xff]
        %1645 = vst [vmem:[#allocation4 + $0x38] sm:$0xff] %v1637
        %1646 = vst [vmem:[#allocation4 + $0x80] sm:$0xff] %v1638
        %1647 = vst [vmem:[#allocation4 + $0xc8] sm:$0xff] %v1639
        %1648 = vst [vmem:[#allocation4 + $0x110] sm:$0xff] %v1640
        %1649 = vst [vmem:[#allocation4 + $0x158] sm:$0xff] %v1641
        %1650 = vst [vmem:[#allocation4 + $0x1a0] sm:$0xff] %v1642
        %1651 = vst [vmem:[#allocation4 + $0x1e8] sm:$0xff] %v1643
        %1652 = vst [vmem:[#allocation4 + $0x230] sm:$0xff] %v1644
        %v1653 = vld [vmem:[%s1620 + $0x2] sm:$0xff]
        %v1654 = vld [vmem:[%s1620 + $0x12] sm:$0xff]
        %v1655 = vld [vmem:[%s1620 + $0x22] sm:$0xff]
        %v1656 = vld [vmem:[%s1620 + $0x32] sm:$0xff]
        %v1657 = vld [vmem:[%s1620 + $0x42] sm:$0xff]
        %v1658 = vld [vmem:[%s1620 + $0x52] sm:$0xff]
        %v1659 = vld [vmem:[%s1620 + $0x62] sm:$0xff]
        %v1660 = vld [vmem:[%s1620 + $0x72] sm:$0xff]
        %1661 = vst [vmem:[#allocation4 + $0x40] sm:$0xff] %v1653
        %1662 = vst [vmem:[#allocation4 + $0x88] sm:$0xff] %v1654
        %1663 = vst [vmem:[#allocation4 + $0xd0] sm:$0xff] %v1655
        %1664 = vst [vmem:[#allocation4 + $0x118] sm:$0xff] %v1656
        %1665 = vst [vmem:[#allocation4 + $0x160] sm:$0xff] %v1657
        %1666 = vst [vmem:[#allocation4 + $0x1a8] sm:$0xff] %v1658
        %1667 = vst [vmem:[#allocation4 + $0x1f0] sm:$0xff] %v1659
        %1668 = vst [vmem:[#allocation4 + $0x238] sm:$0xff] %v1660
        %v1669 = vld [vmem:[%s1493] sm:$0xff]
        %v1670 = vld [vmem:[%s1493 + $0x10] sm:$0xff]
        %v1671 = vld [vmem:[%s1493 + $0x20] sm:$0xff]
        %v1672 = vld [vmem:[%s1493 + $0x30] sm:$0xff]
        %v1673 = vld [vmem:[%s1493 + $0x40] sm:$0xff]
        %v1674 = vld [vmem:[%s1493 + $0x50] sm:$0xff]
        %v1675 = vld [vmem:[%s1493 + $0x60] sm:$0xff]
        %v1676 = vld [vmem:[%s1493 + $0x70] sm:$0xff]
        %1677 = vst [vmem:[#allocation4 + $0x240] sm:$0xff] %v1669
        %1678 = vst [vmem:[#allocation4 + $0x288] sm:$0xff] %v1670
        %1679 = vst [vmem:[#allocation4 + $0x2d0] sm:$0xff] %v1671
        %1680 = vst [vmem:[#allocation4 + $0x318] sm:$0xff] %v1672
        %1681 = vst [vmem:[#allocation4 + $0x360] sm:$0xff] %v1673
        %1682 = vst [vmem:[#allocation4 + $0x3a8] sm:$0xff] %v1674
        %1683 = vst [vmem:[#allocation4 + $0x3f0] sm:$0xff] %v1675
        %1684 = vst [vmem:[#allocation4 + $0x438] sm:$0xff] %v1676
        %v1685 = vld [vmem:[%s1493 + $0x1] sm:$0xff]
        %v1686 = vld [vmem:[%s1493 + $0x11] sm:$0xff]
        %v1687 = vld [vmem:[%s1493 + $0x21] sm:$0xff]
        %v1688 = vld [vmem:[%s1493 + $0x31] sm:$0xff]
        %v1689 = vld [vmem:[%s1493 + $0x41] sm:$0xff]
        %v1690 = vld [vmem:[%s1493 + $0x51] sm:$0xff]
        %v1691 = vld [vmem:[%s1493 + $0x61] sm:$0xff]
        %v1692 = vld [vmem:[%s1493 + $0x71] sm:$0xff]
        %1693 = vst [vmem:[#allocation4 + $0x248] sm:$0xff] %v1685
        %1694 = vst [vmem:[#allocation4 + $0x290] sm:$0xff] %v1686
        %1695 = vst [vmem:[#allocation4 + $0x2d8] sm:$0xff] %v1687
        %1696 = vst [vmem:[#allocation4 + $0x320] sm:$0xff] %v1688
        %1697 = vst [vmem:[#allocation4 + $0x368] sm:$0xff] %v1689
        %1698 = vst [vmem:[#allocation4 + $0x3b0] sm:$0xff] %v1690
        %1699 = vst [vmem:[#allocation4 + $0x3f8] sm:$0xff] %v1691
        %1700 = vst [vmem:[#allocation4 + $0x440] sm:$0xff] %v1692
        %v1701 = vld [vmem:[%s1493 + $0x2] sm:$0xff]
        %v1702 = vld [vmem:[%s1493 + $0x12] sm:$0xff]
        %v1703 = vld [vmem:[%s1493 + $0x22] sm:$0xff]
        %v1704 = vld [vmem:[%s1493 + $0x32] sm:$0xff]
        %v1705 = vld [vmem:[%s1493 + $0x42] sm:$0xff]
        %v1706 = vld [vmem:[%s1493 + $0x52] sm:$0xff]
        %v1707 = vld [vmem:[%s1493 + $0x62] sm:$0xff]
        %v1708 = vld [vmem:[%s1493 + $0x72] sm:$0xff]
        %1709 = vst [vmem:[#allocation4 + $0x250] sm:$0xff] %v1701
        %1710 = vst [vmem:[#allocation4 + $0x298] sm:$0xff] %v1702
        %1711 = vst [vmem:[#allocation4 + $0x2e0] sm:$0xff] %v1703
        %1712 = vst [vmem:[#allocation4 + $0x328] sm:$0xff] %v1704
        %1713 = vst [vmem:[#allocation4 + $0x370] sm:$0xff] %v1705
        %1714 = vst [vmem:[#allocation4 + $0x3b8] sm:$0xff] %v1706
        %1715 = vst [vmem:[#allocation4 + $0x400] sm:$0xff] %v1707
        %1716 = vst [vmem:[#allocation4 + $0x448] sm:$0xff] %v1708
        %v1717 = vld [vmem:[%s1499] sm:$0xff]
        %v1718 = vld [vmem:[%s1499 + $0x10] sm:$0xff]
        %v1719 = vld [vmem:[%s1499 + $0x20] sm:$0xff]
        %v1720 = vld [vmem:[%s1499 + $0x30] sm:$0xff]
        %v1721 = vld [vmem:[%s1499 + $0x40] sm:$0xff]
        %v1722 = vld [vmem:[%s1499 + $0x50] sm:$0xff]
        %v1723 = vld [vmem:[%s1499 + $0x60] sm:$0xff]
        %v1724 = vld [vmem:[%s1499 + $0x70] sm:$0xff]
        %1725 = vst [vmem:[#allocation4 + $0x258] sm:$0xff] %v1717
        %1726 = vst [vmem:[#allocation4 + $0x2a0] sm:$0xff] %v1718
        %1727 = vst [vmem:[#allocation4 + $0x2e8] sm:$0xff] %v1719
        %1728 = vst [vmem:[#allocation4 + $0x330] sm:$0xff] %v1720
        %1729 = vst [vmem:[#allocation4 + $0x378] sm:$0xff] %v1721
        %1730 = vst [vmem:[#allocation4 + $0x3c0] sm:$0xff] %v1722
        %1731 = vst [vmem:[#allocation4 + $0x408] sm:$0xff] %v1723
        %1732 = vst [vmem:[#allocation4 + $0x450] sm:$0xff] %v1724
        %v1733 = vld [vmem:[%s1499 + $0x1] sm:$0xff]
        %v1734 = vld [vmem:[%s1499 + $0x11] sm:$0xff]
        %v1735 = vld [vmem:[%s1499 + $0x21] sm:$0xff]
        %v1736 = vld [vmem:[%s1499 + $0x31] sm:$0xff]
        %v1737 = vld [vmem:[%s1499 + $0x41] sm:$0xff]
        %v1738 = vld [vmem:[%s1499 + $0x51] sm:$0xff]
        %v1739 = vld [vmem:[%s1499 + $0x61] sm:$0xff]
        %v1740 = vld [vmem:[%s1499 + $0x71] sm:$0xff]
        %1741 = vst [vmem:[#allocation4 + $0x260] sm:$0xff] %v1733
        %1742 = vst [vmem:[#allocation4 + $0x2a8] sm:$0xff] %v1734
        %1743 = vst [vmem:[#allocation4 + $0x2f0] sm:$0xff] %v1735
        %1744 = vst [vmem:[#allocation4 + $0x338] sm:$0xff] %v1736
        %1745 = vst [vmem:[#allocation4 + $0x380] sm:$0xff] %v1737
        %1746 = vst [vmem:[#allocation4 + $0x3c8] sm:$0xff] %v1738
        %1747 = vst [vmem:[#allocation4 + $0x410] sm:$0xff] %v1739
        %1748 = vst [vmem:[#allocation4 + $0x458] sm:$0xff] %v1740
        %v1749 = vld [vmem:[%s1499 + $0x2] sm:$0xff]
        %v1750 = vld [vmem:[%s1499 + $0x12] sm:$0xff]
        %v1751 = vld [vmem:[%s1499 + $0x22] sm:$0xff]
        %v1752 = vld [vmem:[%s1499 + $0x32] sm:$0xff]
        %v1753 = vld [vmem:[%s1499 + $0x42] sm:$0xff]
        %v1754 = vld [vmem:[%s1499 + $0x52] sm:$0xff]
        %v1755 = vld [vmem:[%s1499 + $0x62] sm:$0xff]
        %v1756 = vld [vmem:[%s1499 + $0x72] sm:$0xff]
        %1757 = vst [vmem:[#allocation4 + $0x268] sm:$0xff] %v1749
        %1758 = vst [vmem:[#allocation4 + $0x2b0] sm:$0xff] %v1750
        %1759 = vst [vmem:[#allocation4 + $0x2f8] sm:$0xff] %v1751
        %1760 = vst [vmem:[#allocation4 + $0x340] sm:$0xff] %v1752
        %1761 = vst [vmem:[#allocation4 + $0x388] sm:$0xff] %v1753
        %1762 = vst [vmem:[#allocation4 + $0x3d0] sm:$0xff] %v1754
        %1763 = vst [vmem:[#allocation4 + $0x418] sm:$0xff] %v1755
        %1764 = vst [vmem:[#allocation4 + $0x460] sm:$0xff] %v1756
        %s1765 = scalar_lea.vmem [#allocation3], 192
        %v1766 = vld [vmem:[%s1765] sm:$0xff]
        %v1767 = vld [vmem:[%s1765 + $0x10] sm:$0xff]
        %v1768 = vld [vmem:[%s1765 + $0x20] sm:$0xff]
        %v1769 = vld [vmem:[%s1765 + $0x30] sm:$0xff]
        %v1770 = vld [vmem:[%s1765 + $0x40] sm:$0xff]
        %v1771 = vld [vmem:[%s1765 + $0x50] sm:$0xff]
        %v1772 = vld [vmem:[%s1765 + $0x60] sm:$0xff]
        %v1773 = vld [vmem:[%s1765 + $0x70] sm:$0xff]
        %1774 = vst [vmem:[#allocation4 + $0x270] sm:$0xff] %v1766
        %1775 = vst [vmem:[#allocation4 + $0x2b8] sm:$0xff] %v1767
        %1776 = vst [vmem:[#allocation4 + $0x300] sm:$0xff] %v1768
        %1777 = vst [vmem:[#allocation4 + $0x348] sm:$0xff] %v1769
        %1778 = vst [vmem:[#allocation4 + $0x390] sm:$0xff] %v1770
        %1779 = vst [vmem:[#allocation4 + $0x3d8] sm:$0xff] %v1771
        %1780 = vst [vmem:[#allocation4 + $0x420] sm:$0xff] %v1772
        %1781 = vst [vmem:[#allocation4 + $0x468] sm:$0xff] %v1773
        %v1782 = vld [vmem:[%s1765 + $0x1] sm:$0xff]
        %v1783 = vld [vmem:[%s1765 + $0x11] sm:$0xff]
        %v1784 = vld [vmem:[%s1765 + $0x21] sm:$0xff]
        %v1785 = vld [vmem:[%s1765 + $0x31] sm:$0xff]
        %v1786 = vld [vmem:[%s1765 + $0x41] sm:$0xff]
        %v1787 = vld [vmem:[%s1765 + $0x51] sm:$0xff]
        %v1788 = vld [vmem:[%s1765 + $0x61] sm:$0xff]
        %v1789 = vld [vmem:[%s1765 + $0x71] sm:$0xff]
        %1790 = vst [vmem:[#allocation4 + $0x278] sm:$0xff] %v1782
        %1791 = vst [vmem:[#allocation4 + $0x2c0] sm:$0xff] %v1783
        %1792 = vst [vmem:[#allocation4 + $0x308] sm:$0xff] %v1784
        %1793 = vst [vmem:[#allocation4 + $0x350] sm:$0xff] %v1785
        %1794 = vst [vmem:[#allocation4 + $0x398] sm:$0xff] %v1786
        %1795 = vst [vmem:[#allocation4 + $0x3e0] sm:$0xff] %v1787
        %1796 = vst [vmem:[#allocation4 + $0x428] sm:$0xff] %v1788
        %1797 = vst [vmem:[#allocation4 + $0x470] sm:$0xff] %v1789
        %v1798 = vld [vmem:[%s1765 + $0x2] sm:$0xff]
        %v1799 = vld [vmem:[%s1765 + $0x12] sm:$0xff]
        %v1800 = vld [vmem:[%s1765 + $0x22] sm:$0xff]
        %v1801 = vld [vmem:[%s1765 + $0x32] sm:$0xff]
        %v1802 = vld [vmem:[%s1765 + $0x42] sm:$0xff]
        %v1803 = vld [vmem:[%s1765 + $0x52] sm:$0xff]
        %v1804 = vld [vmem:[%s1765 + $0x62] sm:$0xff]
        %v1805 = vld [vmem:[%s1765 + $0x72] sm:$0xff]
        %1806 = vst [vmem:[#allocation4 + $0x280] sm:$0xff] %v1798
        %1807 = vst [vmem:[#allocation4 + $0x2c8] sm:$0xff] %v1799
        %1808 = vst [vmem:[#allocation4 + $0x310] sm:$0xff] %v1800
        %1809 = vst [vmem:[#allocation4 + $0x358] sm:$0xff] %v1801
        %1810 = vst [vmem:[#allocation4 + $0x3a0] sm:$0xff] %v1802
        %1811 = vst [vmem:[#allocation4 + $0x3e8] sm:$0xff] %v1803
        %1812 = vst [vmem:[#allocation4 + $0x430] sm:$0xff] %v1804
        %1813 = vst [vmem:[#allocation4 + $0x478] sm:$0xff] %v1805
        %v1814 = vld [vmem:[#allocation4] sm:$0xff]
        %v1815 = vld [vmem:[#allocation4 + $0x8] sm:$0xff]
        %v1816 = vld [vmem:[#allocation4 + $0x10] sm:$0xff]
        %v1817 = vld [vmem:[#allocation4 + $0x18] sm:$0xff]
        %v1818 = vld [vmem:[#allocation4 + $0x20] sm:$0xff]
        %v1819 = vld [vmem:[#allocation4 + $0x28] sm:$0xff]
        %v1820 = vld [vmem:[#allocation4 + $0x30] sm:$0xff]
        %v1821 = vld [vmem:[#allocation4 + $0x38] sm:$0xff]
        %v1822 = vld [vmem:[#allocation4 + $0x40] sm:$0xff]
        %v1823 = vld [vmem:[#allocation4 + $0x48] sm:$0xff]
        %v1824 = vld [vmem:[#allocation4 + $0x50] sm:$0xff]
        %v1825 = vld [vmem:[#allocation4 + $0x58] sm:$0xff]
        %v1826 = vld [vmem:[#allocation4 + $0x60] sm:$0xff]
        %v1827 = vld [vmem:[#allocation4 + $0x68] sm:$0xff]
        %v1828 = vld [vmem:[#allocation4 + $0x70] sm:$0xff]
        %v1829 = vld [vmem:[#allocation4 + $0x78] sm:$0xff]
        %v1830 = vld [vmem:[#allocation4 + $0x80] sm:$0xff]
        %v1831 = vld [vmem:[#allocation4 + $0x88] sm:$0xff]
        %v1832 = vld [vmem:[#allocation4 + $0x90] sm:$0xff]
        %v1833 = vld [vmem:[#allocation4 + $0x98] sm:$0xff]
        %v1834 = vld [vmem:[#allocation4 + $0xa0] sm:$0xff]
        %v1835 = vld [vmem:[#allocation4 + $0xa8] sm:$0xff]
        %v1836 = vld [vmem:[#allocation4 + $0xb0] sm:$0xff]
        %v1837 = vld [vmem:[#allocation4 + $0xb8] sm:$0xff]
        %v1838 = vld [vmem:[#allocation4 + $0xc0] sm:$0xff]
        %v1839 = vld [vmem:[#allocation4 + $0xc8] sm:$0xff]
        %v1840 = vld [vmem:[#allocation4 + $0xd0] sm:$0xff]
        %v1841 = vld [vmem:[#allocation4 + $0xd8] sm:$0xff]
        %v1842 = vld [vmem:[#allocation4 + $0xe0] sm:$0xff]
        %v1843 = vld [vmem:[#allocation4 + $0xe8] sm:$0xff]
        %v1844 = vld [vmem:[#allocation4 + $0xf0] sm:$0xff]
        %v1845 = vld [vmem:[#allocation4 + $0xf8] sm:$0xff]
        %v1846 = vld [vmem:[#allocation4 + $0x100] sm:$0xff]
        %v1847 = vld [vmem:[#allocation4 + $0x108] sm:$0xff]
        %v1848 = vld [vmem:[#allocation4 + $0x110] sm:$0xff]
        %v1849 = vld [vmem:[#allocation4 + $0x118] sm:$0xff]
        %v1850 = vld [vmem:[#allocation4 + $0x120] sm:$0xff]
        %v1851 = vld [vmem:[#allocation4 + $0x128] sm:$0xff]
        %v1852 = vld [vmem:[#allocation4 + $0x130] sm:$0xff]
        %v1853 = vld [vmem:[#allocation4 + $0x138] sm:$0xff]
        %v1854 = vld [vmem:[#allocation4 + $0x140] sm:$0xff]
        %v1855 = vld [vmem:[#allocation4 + $0x148] sm:$0xff]
        %v1856 = vld [vmem:[#allocation4 + $0x150] sm:$0xff]
        %v1857 = vld [vmem:[#allocation4 + $0x158] sm:$0xff]
        %v1858 = vld [vmem:[#allocation4 + $0x160] sm:$0xff]
        %v1859 = vld [vmem:[#allocation4 + $0x168] sm:$0xff]
        %v1860 = vld [vmem:[#allocation4 + $0x170] sm:$0xff]
        %v1861 = vld [vmem:[#allocation4 + $0x178] sm:$0xff]
        %v1862 = vld [vmem:[#allocation4 + $0x180] sm:$0xff]
        %v1863 = vld [vmem:[#allocation4 + $0x188] sm:$0xff]
        %v1864 = vld [vmem:[#allocation4 + $0x190] sm:$0xff]
        %v1865 = vld [vmem:[#allocation4 + $0x198] sm:$0xff]
        %v1866 = vld [vmem:[#allocation4 + $0x1a0] sm:$0xff]
        %v1867 = vld [vmem:[#allocation4 + $0x1a8] sm:$0xff]
        %v1868 = vld [vmem:[#allocation4 + $0x1b0] sm:$0xff]
        %v1869 = vld [vmem:[#allocation4 + $0x1b8] sm:$0xff]
        %v1870 = vld [vmem:[#allocation4 + $0x1c0] sm:$0xff]
        %v1871 = vld [vmem:[#allocation4 + $0x1c8] sm:$0xff]
        %v1872 = vld [vmem:[#allocation4 + $0x1d0] sm:$0xff]
        %v1873 = vld [vmem:[#allocation4 + $0x1d8] sm:$0xff]
        %v1874 = vld [vmem:[#allocation4 + $0x1e0] sm:$0xff]
        %v1875 = vld [vmem:[#allocation4 + $0x1e8] sm:$0xff]
        %v1876 = vld [vmem:[#allocation4 + $0x1f0] sm:$0xff]
        %v1877 = vld [vmem:[#allocation4 + $0x1f8] sm:$0xff]
        %v1878 = vld [vmem:[#allocation4 + $0x200] sm:$0xff]
        %v1879 = vld [vmem:[#allocation4 + $0x208] sm:$0xff]
        %v1880 = vld [vmem:[#allocation4 + $0x210] sm:$0xff]
        %v1881 = vld [vmem:[#allocation4 + $0x218] sm:$0xff]
        %v1882 = vld [vmem:[#allocation4 + $0x220] sm:$0xff]
        %v1883 = vld [vmem:[#allocation4 + $0x228] sm:$0xff]
        %v1884 = vld [vmem:[#allocation4 + $0x230] sm:$0xff]
        %v1885 = vld [vmem:[#allocation4 + $0x238] sm:$0xff]
        %v1886 = vld [vmem:[#allocation4 + $0x240] sm:$0xff]
        %v1887 = vld [vmem:[#allocation4 + $0x248] sm:$0xff]
        %v1888 = vld [vmem:[#allocation4 + $0x250] sm:$0xff]
        %v1889 = vld [vmem:[#allocation4 + $0x258] sm:$0xff]
        %v1890 = vld [vmem:[#allocation4 + $0x260] sm:$0xff]
        %v1891 = vld [vmem:[#allocation4 + $0x268] sm:$0xff]
        %v1892 = vld [vmem:[#allocation4 + $0x270] sm:$0xff]
        %v1893 = vld [vmem:[#allocation4 + $0x278] sm:$0xff]
        %v1894 = vld [vmem:[#allocation4 + $0x280] sm:$0xff]
        %v1895 = vld [vmem:[#allocation4 + $0x288] sm:$0xff]
        %v1896 = vld [vmem:[#allocation4 + $0x290] sm:$0xff]
        %v1897 = vld [vmem:[#allocation4 + $0x298] sm:$0xff]
        %v1898 = vld [vmem:[#allocation4 + $0x2a0] sm:$0xff]
        %v1899 = vld [vmem:[#allocation4 + $0x2a8] sm:$0xff]
        %v1900 = vld [vmem:[#allocation4 + $0x2b0] sm:$0xff]
        %v1901 = vld [vmem:[#allocation4 + $0x2b8] sm:$0xff]
        %v1902 = vld [vmem:[#allocation4 + $0x2c0] sm:$0xff]
        %v1903 = vld [vmem:[#allocation4 + $0x2c8] sm:$0xff]
        %v1904 = vld [vmem:[#allocation4 + $0x2d0] sm:$0xff]
        %v1905 = vld [vmem:[#allocation4 + $0x2d8] sm:$0xff]
        %v1906 = vld [vmem:[#allocation4 + $0x2e0] sm:$0xff]
        %v1907 = vld [vmem:[#allocation4 + $0x2e8] sm:$0xff]
        %v1908 = vld [vmem:[#allocation4 + $0x2f0] sm:$0xff]
        %v1909 = vld [vmem:[#allocation4 + $0x2f8] sm:$0xff]
        %v1910 = vld [vmem:[#allocation4 + $0x300] sm:$0xff]
        %v1911 = vld [vmem:[#allocation4 + $0x308] sm:$0xff]
        %v1912 = vld [vmem:[#allocation4 + $0x310] sm:$0xff]
        %v1913 = vld [vmem:[#allocation4 + $0x318] sm:$0xff]
        %v1914 = vld [vmem:[#allocation4 + $0x320] sm:$0xff]
        %v1915 = vld [vmem:[#allocation4 + $0x328] sm:$0xff]
        %v1916 = vld [vmem:[#allocation4 + $0x330] sm:$0xff]
        %v1917 = vld [vmem:[#allocation4 + $0x338] sm:$0xff]
        %v1918 = vld [vmem:[#allocation4 + $0x340] sm:$0xff]
        %v1919 = vld [vmem:[#allocation4 + $0x348] sm:$0xff]
        %v1920 = vld [vmem:[#allocation4 + $0x350] sm:$0xff]
        %v1921 = vld [vmem:[#allocation4 + $0x358] sm:$0xff]
        %v1922 = vld [vmem:[#allocation4 + $0x360] sm:$0xff]
        %v1923 = vld [vmem:[#allocation4 + $0x368] sm:$0xff]
        %v1924 = vld [vmem:[#allocation4 + $0x370] sm:$0xff]
        %v1925 = vld [vmem:[#allocation4 + $0x378] sm:$0xff]
        %v1926 = vld [vmem:[#allocation4 + $0x380] sm:$0xff]
        %v1927 = vld [vmem:[#allocation4 + $0x388] sm:$0xff]
        %v1928 = vld [vmem:[#allocation4 + $0x390] sm:$0xff]
        %v1929 = vld [vmem:[#allocation4 + $0x398] sm:$0xff]
        %v1930 = vld [vmem:[#allocation4 + $0x3a0] sm:$0xff]
        %v1931 = vld [vmem:[#allocation4 + $0x3a8] sm:$0xff]
        %v1932 = vld [vmem:[#allocation4 + $0x3b0] sm:$0xff]
        %v1933 = vld [vmem:[#allocation4 + $0x3b8] sm:$0xff]
        %v1934 = vld [vmem:[#allocation4 + $0x3c0] sm:$0xff]
        %v1935 = vld [vmem:[#allocation4 + $0x3c8] sm:$0xff]
        %v1936 = vld [vmem:[#allocation4 + $0x3d0] sm:$0xff]
        %v1937 = vld [vmem:[#allocation4 + $0x3d8] sm:$0xff]
        %v1938 = vld [vmem:[#allocation4 + $0x3e0] sm:$0xff]
        %v1939 = vld [vmem:[#allocation4 + $0x3e8] sm:$0xff]
        %v1940 = vld [vmem:[#allocation4 + $0x3f0] sm:$0xff]
        %v1941 = vld [vmem:[#allocation4 + $0x3f8] sm:$0xff]
        %v1942 = vld [vmem:[#allocation4 + $0x400] sm:$0xff]
        %v1943 = vld [vmem:[#allocation4 + $0x408] sm:$0xff]
        %v1944 = vld [vmem:[#allocation4 + $0x410] sm:$0xff]
        %v1945 = vld [vmem:[#allocation4 + $0x418] sm:$0xff]
        %v1946 = vld [vmem:[#allocation4 + $0x420] sm:$0xff]
        %v1947 = vld [vmem:[#allocation4 + $0x428] sm:$0xff]
        %v1948 = vld [vmem:[#allocation4 + $0x430] sm:$0xff]
        %v1949 = vld [vmem:[#allocation4 + $0x438] sm:$0xff]
        %v1950 = vld [vmem:[#allocation4 + $0x440] sm:$0xff]
        %v1951 = vld [vmem:[#allocation4 + $0x448] sm:$0xff]
        %v1952 = vld [vmem:[#allocation4 + $0x450] sm:$0xff]
        %v1953 = vld [vmem:[#allocation4 + $0x458] sm:$0xff]
        %v1954 = vld [vmem:[#allocation4 + $0x460] sm:$0xff]
        %v1955 = vld [vmem:[#allocation4 + $0x468] sm:$0xff]
        %v1956 = vld [vmem:[#allocation4 + $0x470] sm:$0xff]
        %v1957 = vld [vmem:[#allocation4 + $0x478] sm:$0xff]
        %v1958 = vld [vmem:[#allocation5] sm:$0xff]
        %v1959 = vld [vmem:[#allocation5 + $0x8] sm:$0xff]
        %v1960 = vld [vmem:[#allocation5 + $0x10] sm:$0xff]
        %v1961 = vld [vmem:[#allocation5 + $0x18] sm:$0xff]
        %v1962 = vld [vmem:[#allocation5 + $0x20] sm:$0xff]
        %v1963 = vld [vmem:[#allocation5 + $0x28] sm:$0xff]
        %v1964 = vld [vmem:[#allocation5 + $0x30] sm:$0xff]
        %v1965 = vld [vmem:[#allocation5 + $0x38] sm:$0xff]
        %v1966 = vld [vmem:[#allocation5 + $0x40] sm:$0xff]
        %v1967 = vld [vmem:[#allocation5 + $0x48] sm:$0xff]
        %v1968 = vld [vmem:[#allocation5 + $0x50] sm:$0xff]
        %v1969 = vld [vmem:[#allocation5 + $0x58] sm:$0xff]
        %v1970 = vld [vmem:[#allocation5 + $0x60] sm:$0xff]
        %v1971 = vld [vmem:[#allocation5 + $0x68] sm:$0xff]
        %v1972 = vld [vmem:[#allocation5 + $0x70] sm:$0xff]
        %v1973 = vld [vmem:[#allocation5 + $0x78] sm:$0xff]
        %v1974 = vld [vmem:[#allocation5 + $0x80] sm:$0xff]
        %v1975 = vld [vmem:[#allocation5 + $0x88] sm:$0xff]
        %v1976 = vld [vmem:[#allocation5 + $0x90] sm:$0xff]
        %v1977 = vld [vmem:[#allocation5 + $0x98] sm:$0xff]
        %v1978 = vld [vmem:[#allocation5 + $0xa0] sm:$0xff]
        %v1979 = vld [vmem:[#allocation5 + $0xa8] sm:$0xff]
        %v1980 = vld [vmem:[#allocation5 + $0xb0] sm:$0xff]
        %v1981 = vld [vmem:[#allocation5 + $0xb8] sm:$0xff]
        %v1982 = vld [vmem:[#allocation5 + $0xc0] sm:$0xff]
        %v1983 = vld [vmem:[#allocation5 + $0xc8] sm:$0xff]
        %v1984 = vld [vmem:[#allocation5 + $0xd0] sm:$0xff]
        %v1985 = vld [vmem:[#allocation5 + $0xd8] sm:$0xff]
        %v1986 = vld [vmem:[#allocation5 + $0xe0] sm:$0xff]
        %v1987 = vld [vmem:[#allocation5 + $0xe8] sm:$0xff]
        %v1988 = vld [vmem:[#allocation5 + $0xf0] sm:$0xff]
        %v1989 = vld [vmem:[#allocation5 + $0xf8] sm:$0xff]
        %v1990 = vld [vmem:[#allocation5 + $0x100] sm:$0xff]
        %v1991 = vld [vmem:[#allocation5 + $0x108] sm:$0xff]
        %v1992 = vld [vmem:[#allocation5 + $0x110] sm:$0xff]
        %v1993 = vld [vmem:[#allocation5 + $0x118] sm:$0xff]
        %v1994 = vld [vmem:[#allocation5 + $0x120] sm:$0xff]
        %v1995 = vld [vmem:[#allocation5 + $0x128] sm:$0xff]
        %v1996 = vld [vmem:[#allocation5 + $0x130] sm:$0xff]
        %v1997 = vld [vmem:[#allocation5 + $0x138] sm:$0xff]
        %v1998 = vld [vmem:[#allocation5 + $0x140] sm:$0xff]
        %v1999 = vld [vmem:[#allocation5 + $0x148] sm:$0xff]
        %v2000 = vld [vmem:[#allocation5 + $0x150] sm:$0xff]
        %v2001 = vld [vmem:[#allocation5 + $0x158] sm:$0xff]
        %v2002 = vld [vmem:[#allocation5 + $0x160] sm:$0xff]
        %v2003 = vld [vmem:[#allocation5 + $0x168] sm:$0xff]
        %v2004 = vld [vmem:[#allocation5 + $0x170] sm:$0xff]
        %v2005 = vld [vmem:[#allocation5 + $0x178] sm:$0xff]
        %v2006 = vld [vmem:[#allocation5 + $0x180] sm:$0xff]
        %v2007 = vld [vmem:[#allocation5 + $0x188] sm:$0xff]
        %v2008 = vld [vmem:[#allocation5 + $0x190] sm:$0xff]
        %v2009 = vld [vmem:[#allocation5 + $0x198] sm:$0xff]
        %v2010 = vld [vmem:[#allocation5 + $0x1a0] sm:$0xff]
        %v2011 = vld [vmem:[#allocation5 + $0x1a8] sm:$0xff]
        %v2012 = vld [vmem:[#allocation5 + $0x1b0] sm:$0xff]
        %v2013 = vld [vmem:[#allocation5 + $0x1b8] sm:$0xff]
        %v2014 = vld [vmem:[#allocation5 + $0x1c0] sm:$0xff]
        %v2015 = vld [vmem:[#allocation5 + $0x1c8] sm:$0xff]
        %v2016 = vld [vmem:[#allocation5 + $0x1d0] sm:$0xff]
        %v2017 = vld [vmem:[#allocation5 + $0x1d8] sm:$0xff]
        %v2018 = vld [vmem:[#allocation5 + $0x1e0] sm:$0xff]
        %v2019 = vld [vmem:[#allocation5 + $0x1e8] sm:$0xff]
        %v2020 = vld [vmem:[#allocation5 + $0x1f0] sm:$0xff]
        %v2021 = vld [vmem:[#allocation5 + $0x1f8] sm:$0xff]
        %v2022 = vld [vmem:[#allocation5 + $0x200] sm:$0xff]
        %v2023 = vld [vmem:[#allocation5 + $0x208] sm:$0xff]
        %v2024 = vld [vmem:[#allocation5 + $0x210] sm:$0xff]
        %v2025 = vld [vmem:[#allocation5 + $0x218] sm:$0xff]
        %v2026 = vld [vmem:[#allocation5 + $0x220] sm:$0xff]
        %v2027 = vld [vmem:[#allocation5 + $0x228] sm:$0xff]
        %v2028 = vld [vmem:[#allocation5 + $0x230] sm:$0xff]
        %v2029 = vld [vmem:[#allocation5 + $0x238] sm:$0xff]
        %v2030 = vld [vmem:[#allocation5 + $0x240] sm:$0xff]
        %v2031 = vld [vmem:[#allocation5 + $0x248] sm:$0xff]
        %v2032 = vld [vmem:[#allocation5 + $0x250] sm:$0xff]
        %v2033 = vld [vmem:[#allocation5 + $0x258] sm:$0xff]
        %v2034 = vld [vmem:[#allocation5 + $0x260] sm:$0xff]
        %v2035 = vld [vmem:[#allocation5 + $0x268] sm:$0xff]
        %v2036 = vld [vmem:[#allocation5 + $0x270] sm:$0xff]
        %v2037 = vld [vmem:[#allocation5 + $0x278] sm:$0xff]
        %v2038 = vld [vmem:[#allocation5 + $0x280] sm:$0xff]
        %v2039 = vld [vmem:[#allocation5 + $0x288] sm:$0xff]
        %v2040 = vld [vmem:[#allocation5 + $0x290] sm:$0xff]
        %v2041 = vld [vmem:[#allocation5 + $0x298] sm:$0xff]
        %v2042 = vld [vmem:[#allocation5 + $0x2a0] sm:$0xff]
        %v2043 = vld [vmem:[#allocation5 + $0x2a8] sm:$0xff]
        %v2044 = vld [vmem:[#allocation5 + $0x2b0] sm:$0xff]
        %v2045 = vld [vmem:[#allocation5 + $0x2b8] sm:$0xff]
        %v2046 = vld [vmem:[#allocation5 + $0x2c0] sm:$0xff]
        %v2047 = vld [vmem:[#allocation5 + $0x2c8] sm:$0xff]
        %v2048 = vld [vmem:[#allocation5 + $0x2d0] sm:$0xff]
        %v2049 = vld [vmem:[#allocation5 + $0x2d8] sm:$0xff]
        %v2050 = vld [vmem:[#allocation5 + $0x2e0] sm:$0xff]
        %v2051 = vld [vmem:[#allocation5 + $0x2e8] sm:$0xff]
        %v2052 = vld [vmem:[#allocation5 + $0x2f0] sm:$0xff]
        %v2053 = vld [vmem:[#allocation5 + $0x2f8] sm:$0xff]
        %v2054 = vld [vmem:[#allocation5 + $0x300] sm:$0xff]
        %v2055 = vld [vmem:[#allocation5 + $0x308] sm:$0xff]
        %v2056 = vld [vmem:[#allocation5 + $0x310] sm:$0xff]
        %v2057 = vld [vmem:[#allocation5 + $0x318] sm:$0xff]
        %v2058 = vld [vmem:[#allocation5 + $0x320] sm:$0xff]
        %v2059 = vld [vmem:[#allocation5 + $0x328] sm:$0xff]
        %v2060 = vld [vmem:[#allocation5 + $0x330] sm:$0xff]
        %v2061 = vld [vmem:[#allocation5 + $0x338] sm:$0xff]
        %v2062 = vld [vmem:[#allocation5 + $0x340] sm:$0xff]
        %v2063 = vld [vmem:[#allocation5 + $0x348] sm:$0xff]
        %v2064 = vld [vmem:[#allocation5 + $0x350] sm:$0xff]
        %v2065 = vld [vmem:[#allocation5 + $0x358] sm:$0xff]
        %v2066 = vld [vmem:[#allocation5 + $0x360] sm:$0xff]
        %v2067 = vld [vmem:[#allocation5 + $0x368] sm:$0xff]
        %v2068 = vld [vmem:[#allocation5 + $0x370] sm:$0xff]
        %v2069 = vld [vmem:[#allocation5 + $0x378] sm:$0xff]
        %v2070 = vld [vmem:[#allocation5 + $0x380] sm:$0xff]
        %v2071 = vld [vmem:[#allocation5 + $0x388] sm:$0xff]
        %v2072 = vld [vmem:[#allocation5 + $0x390] sm:$0xff]
        %v2073 = vld [vmem:[#allocation5 + $0x398] sm:$0xff]
        %v2074 = vld [vmem:[#allocation5 + $0x3a0] sm:$0xff]
        %v2075 = vld [vmem:[#allocation5 + $0x3a8] sm:$0xff]
        %v2076 = vld [vmem:[#allocation5 + $0x3b0] sm:$0xff]
        %v2077 = vld [vmem:[#allocation5 + $0x3b8] sm:$0xff]
        %v2078 = vld [vmem:[#allocation5 + $0x3c0] sm:$0xff]
        %v2079 = vld [vmem:[#allocation5 + $0x3c8] sm:$0xff]
        %v2080 = vld [vmem:[#allocation5 + $0x3d0] sm:$0xff]
        %v2081 = vld [vmem:[#allocation5 + $0x3d8] sm:$0xff]
        %v2082 = vld [vmem:[#allocation5 + $0x3e0] sm:$0xff]
        %v2083 = vld [vmem:[#allocation5 + $0x3e8] sm:$0xff]
        %v2084 = vld [vmem:[#allocation5 + $0x3f0] sm:$0xff]
        %v2085 = vld [vmem:[#allocation5 + $0x3f8] sm:$0xff]
        %v2086 = vld [vmem:[#allocation5 + $0x400] sm:$0xff]
        %v2087 = vld [vmem:[#allocation5 + $0x408] sm:$0xff]
        %v2088 = vld [vmem:[#allocation5 + $0x410] sm:$0xff]
        %v2089 = vld [vmem:[#allocation5 + $0x418] sm:$0xff]
        %v2090 = vld [vmem:[#allocation5 + $0x420] sm:$0xff]
        %v2091 = vld [vmem:[#allocation5 + $0x428] sm:$0xff]
        %v2092 = vld [vmem:[#allocation5 + $0x430] sm:$0xff]
        %v2093 = vld [vmem:[#allocation5 + $0x438] sm:$0xff]
        %v2094 = vld [vmem:[#allocation5 + $0x440] sm:$0xff]
        %v2095 = vld [vmem:[#allocation5 + $0x448] sm:$0xff]
        %v2096 = vld [vmem:[#allocation5 + $0x450] sm:$0xff]
        %v2097 = vld [vmem:[#allocation5 + $0x458] sm:$0xff]
        %v2098 = vld [vmem:[#allocation5 + $0x460] sm:$0xff]
        %v2099 = vld [vmem:[#allocation5 + $0x468] sm:$0xff]
        %v2100 = vld [vmem:[#allocation5 + $0x470] sm:$0xff]
        %v2101 = vld [vmem:[#allocation5 + $0x478] sm:$0xff]
        %2102 = vmatprep.subr.mxu0 0.0
        %2103 = vmatpush1.msra.mxu0 %v1958
        %2104 = vmatprep.subr.mxu0 0.0
        %2105 = vmatpush1.msra.mxu0 %v1959
        %2106 = vmatprep.subr.mxu0 0.0
        %2107 = vmatpush1.msra.mxu0 %v1960
        %2108 = vmatprep.subr.mxu0 0.0
        %2109 = vmatpush1.msra.mxu0 %v1961
        %2110 = vmatprep.subr.mxu0 0.0
        %2111 = vmatpush1.msra.mxu0 %v1962
        %2112 = vmatprep.subr.mxu0 0.0
        %2113 = vmatpush1.msra.mxu0 %v1963
        %2114 = vmatprep.subr.mxu0 0.0
        %2115 = vmatpush1.msra.mxu0 %v1964
        %2116 = vmatprep.subr.mxu0 0.0
        %2117 = vmatpush1.msra.mxu0 %v1965
        %2118 = vmatprep.subr.mxu0 0.0
        %2119 = vmatpush1.msra.mxu0 %v1966
        %2120 = vmatprep.subr.mxu0 0.0
        %2121 = vmatpush1.msra.mxu0 %v1967
        %2122 = vmatprep.subr.mxu0 0.0
        %2123 = vmatpush1.msra.mxu0 %v1968
        %2124 = vmatprep.subr.mxu0 0.0
        %2125 = vmatpush1.msra.mxu0 %v1969
        %2126 = vmatprep.subr.mxu0 0.0
        %2127 = vmatpush1.msra.mxu0 %v1970
        %2128 = vmatprep.subr.mxu0 0.0
        %2129 = vmatpush1.msra.mxu0 %v1971
        %2130 = vmatprep.subr.mxu0 0.0
        %2131 = vmatpush1.msra.mxu0 %v1972
        %2132 = vmatprep.subr.mxu0 0.0
        %2133 = vmatpush1.msra.mxu0 %v1973
        %2134 = vmatprep.subr.mxu0 0.0
        %2135 = vmatpush1.msra.mxu0 %v1974
        %2136 = vmatprep.subr.mxu0 0.0
        %2137 = vmatpush1.msra.mxu0 %v1975
        %2138 = vmatprep.subr.mxu0 0.0
        %2139 = vmatpush1.msra.mxu0 %v1976
        %2140 = vmatprep.subr.mxu0 0.0
        %2141 = vmatpush1.msra.mxu0 %v1977
        %2142 = vmatprep.subr.mxu0 0.0
        %2143 = vmatpush1.msra.mxu0 %v1978
        %2144 = vmatprep.subr.mxu0 0.0
        %2145 = vmatpush1.msra.mxu0 %v1979
        %2146 = vmatprep.subr.mxu0 0.0
        %2147 = vmatpush1.msra.mxu0 %v1980
        %2148 = vmatprep.subr.mxu0 0.0
        %2149 = vmatpush1.msra.mxu0 %v1981
        %2150 = vmatprep.subr.mxu0 0.0
        %2151 = vmatpush1.msra.mxu0 %v1982
        %2152 = vmatprep.subr.mxu0 0.0
        %2153 = vmatpush1.msra.mxu0 %v1983
        %2154 = vmatprep.subr.mxu0 0.0
        %2155 = vmatpush1.msra.mxu0 %v1984
        %2156 = vmatprep.subr.mxu0 0.0
        %2157 = vmatpush1.msra.mxu0 %v1985
        %2158 = vmatprep.subr.mxu0 0.0
        %2159 = vmatpush1.msra.mxu0 %v1986
        %2160 = vmatprep.subr.mxu0 0.0
        %2161 = vmatpush1.msra.mxu0 %v1987
        %2162 = vmatprep.subr.mxu0 0.0
        %2163 = vmatpush1.msra.mxu0 %v1988
        %2164 = vmatprep.subr.mxu0 0.0
        %2165 = vmatpush1.msra.mxu0 %v1989
        %2166 = vmatprep.mubr.f32.mxu0 %v1815
        %2167 = vmatmul.mubr.f32.gmra.mrb[0].mxu0 %v1814
        %v2168 = vpop.f32.mrb[0].mxu0
        %v2169 = vadd.f32 0.0, %v2168
        %v2170 = vpop.f32.mrb[0].mxu0
        %2171 = vmatprep.mubr.f32.mxu0 %v1824
        %2172 = vmatmul.mubr.f32.gmra.mrb[0].mxu0 %v1823
        %v2173 = vpop.f32.mrb[0].mxu0
        %v2174 = vadd.f32 0.0, %v2173
        %v2175 = vpop.f32.mrb[0].mxu0
        %2176 = vmatprep.mubr.f32.mxu0 %v1833
        %2177 = vmatmul.mubr.f32.gmra.mrb[0].mxu0 %v1832
        %v2178 = vpop.f32.mrb[0].mxu0
        %v2179 = vadd.f32 0.0, %v2178
        %v2180 = vpop.f32.mrb[0].mxu0
        %2181 = vmatprep.mubr.f32.mxu0 %v1842
        %2182 = vmatmul.mubr.f32.gmra.mrb[0].mxu0 %v1841
        %v2183 = vpop.f32.mrb[0].mxu0
        %v2184 = vadd.f32 0.0, %v2183
        %v2185 = vpop.f32.mrb[0].mxu0
        %2186 = vmatprep.mubr.f32.mxu0 %v1851
        %2187 = vmatmul.mubr.f32.gmra.mrb[0].mxu0 %v1850
        %v2188 = vpop.f32.mrb[0].mxu0
        %v2189 = vadd.f32 0.0, %v2188
        %v2190 = vpop.f32.mrb[0].mxu0
        %2191 = vmatprep.mubr.f32.mxu0 %v1860
        %2192 = vmatmul.mubr.f32.gmra.mrb[0].mxu0 %v1859
        %v2193 = vpop.f32.mrb[0].mxu0
        %v2194 = vadd.f32 0.0, %v2193
        %v2195 = vpop.f32.mrb[0].mxu0
        %2196 = vmatprep.mubr.f32.mxu0 %v1869
        %2197 = vmatmul.mubr.f32.gmra.mrb[0].mxu0 %v1868
        %v2198 = vpop.f32.mrb[0].mxu0
        %v2199 = vadd.f32 0.0, %v2198
        %v2200 = vpop.f32.mrb[0].mxu0
        %2201 = vmatprep.mubr.f32.mxu0 %v1878
        %2202 = vmatmul.mubr.f32.gmra.mrb[0].mxu0 %v1877
        %v2203 = vpop.f32.mrb[0].mxu0
        %v2204 = vadd.f32 0.0, %v2203
        %v2205 = vpop.f32.mrb[0].mxu0
        %2206 = vmatprep.mubr.f32.mxu0 %v1887
        %2207 = vmatmul.mubr.f32.gmra.mrb[0].mxu0 %v1886
        %v2208 = vpop.f32.mrb[0].mxu0
        %v2209 = vadd.f32 0.0, %v2208
        %v2210 = vpop.f32.mrb[0].mxu0
        %2211 = vmatprep.mubr.f32.mxu0 %v1896
        %2212 = vmatmul.mubr.f32.gmra.mrb[0].mxu0 %v1895
        %v2213 = vpop.f32.mrb[0].mxu0
        %v2214 = vadd.f32 0.0, %v2213
        %v2215 = vpop.f32.mrb[0].mxu0
        %2216 = vmatprep.mubr.f32.mxu0 %v1905
        %2217 = vmatmul.mubr.f32.gmra.mrb[0].mxu0 %v1904
        %v2218 = vpop.f32.mrb[0].mxu0
        %v2219 = vadd.f32 0.0, %v2218
        %v2220 = vpop.f32.mrb[0].mxu0
        %2221 = vmatprep.mubr.f32.mxu0 %v1914
        %2222 = vmatmul.mubr.f32.gmra.mrb[0].mxu0 %v1913
        %v2223 = vpop.f32.mrb[0].mxu0
        %v2224 = vadd.f32 0.0, %v2223
        %v2225 = vpop.f32.mrb[0].mxu0
        %2226 = vmatprep.mubr.f32.mxu0 %v1923
        %2227 = vmatmul.mubr.f32.gmra.mrb[0].mxu0 %v1922
        %v2228 = vpop.f32.mrb[0].mxu0
        %v2229 = vadd.f32 0.0, %v2228
        %v2230 = vpop.f32.mrb[0].mxu0
        %2231 = vmatprep.mubr.f32.mxu0 %v1932
        %2232 = vmatmul.mubr.f32.gmra.mrb[0].mxu0 %v1931
        %v2233 = vpop.f32.mrb[0].mxu0
        %v2234 = vadd.f32 0.0, %v2233
        %v2235 = vpop.f32.mrb[0].mxu0
        %2236 = vmatprep.mubr.f32.mxu0 %v1941
        %2237 = vmatmul.mubr.f32.gmra.mrb[0].mxu0 %v1940
        %v2238 = vpop.f32.mrb[0].mxu0
        %v2239 = vadd.f32 0.0, %v2238
        %v2240 = vpop.f32.mrb[0].mxu0
        %2241 = vmatprep.mubr.f32.mxu0 %v1950
        %2242 = vmatmul.mubr.f32.gmra.mrb[0].mxu0 %v1949
        %v2243 = vpop.f32.mrb[0].mxu0
        %v2244 = vadd.f32 0.0, %v2243
        %v2245 = vpop.f32.mrb[0].mxu0
        %2246 = vdwg.mxu0
        %2247 = vmatprep.subr.mxu0 0.0
        %2248 = vmatpush1.msra.mxu0 %v1990
        %2249 = vmatprep.subr.mxu0 0.0
        %2250 = vmatpush1.msra.mxu0 %v1991
        %2251 = vmatprep.subr.mxu0 0.0
        %2252 = vmatpush1.msra.mxu0 %v1992
        %2253 = vmatprep.subr.mxu0 0.0
        %2254 = vmatpush1.msra.mxu0 %v1993
        %2255 = vmatprep.subr.mxu0 0.0
        %2256 = vmatpush1.msra.mxu0 %v1994
        %2257 = vmatprep.subr.mxu0 0.0
        %2258 = vmatpush1.msra.mxu0 %v1995
        %2259 = vmatprep.subr.mxu0 0.0
        %2260 = vmatpush1.msra.mxu0 %v1996
        %2261 = vmatprep.subr.mxu0 0.0
        %2262 = vmatpush1.msra.mxu0 %v1997
        %2263 = vmatprep.subr.mxu0 0.0
        %2264 = vmatpush1.msra.mxu0 %v1998
        %2265 = vmatprep.subr.mxu0 0.0
        %2266 = vmatpush1.msra.mxu0 %v1999
        %2267 = vmatprep.subr.mxu0 0.0
        %2268 = vmatpush1.msra.mxu0 %v2000
        %2269 = vmatprep.subr.mxu0 0.0
        %2270 = vmatpush1.msra.mxu0 %v2001
        %2271 = vmatprep.subr.mxu0 0.0
        %2272 = vmatpush1.msra.mxu0 %v2002
        %2273 = vmatprep.subr.mxu0 0.0
        %2274 = vmatpush1.msra.mxu0 %v2003
        %2275 = vmatprep.subr.mxu0 0.0
        %2276 = vmatpush1.msra.mxu0 %v2004
        %2277 = vmatprep.subr.mxu0 0.0
        %2278 = vmatpush1.msra.mxu0 %v2005
        %2279 = vmatprep.subr.mxu0 0.0
        %2280 = vmatpush1.msra.mxu0 %v2006
        %2281 = vmatprep.subr.mxu0 0.0
        %2282 = vmatpush1.msra.mxu0 %v2007
        %2283 = vmatprep.subr.mxu0 0.0
        %2284 = vmatpush1.msra.mxu0 %v2008
        %2285 = vmatprep.subr.mxu0 0.0
        %2286 = vmatpush1.msra.mxu0 %v2009
        %2287 = vmatprep.subr.mxu0 0.0
        %2288 = vmatpush1.msra.mxu0 %v2010
        %2289 = vmatprep.subr.mxu0 0.0
        %2290 = vmatpush1.msra.mxu0 %v2011
        %2291 = vmatprep.subr.mxu0 0.0
        %2292 = vmatpush1.msra.mxu0 %v2012
        %2293 = vmatprep.subr.mxu0 0.0
        %2294 = vmatpush1.msra.mxu0 %v2013
        %2295 = vmatprep.subr.mxu0 0.0
        %2296 = vmatpush1.msra.mxu0 %v2014
        %2297 = vmatprep.subr.mxu0 0.0
        %2298 = vmatpush1.msra.mxu0 %v2015
        %2299 = vmatprep.subr.mxu0 0.0
        %2300 = vmatpush1.msra.mxu0 %v2016
        %2301 = vmatprep.subr.mxu0 0.0
        %2302 = vmatpush1.msra.mxu0 %v2017
        %2303 = vmatprep.subr.mxu0 0.0
        %2304 = vmatpush1.msra.mxu0 %v2018
        %2305 = vmatprep.subr.mxu0 0.0
        %2306 = vmatpush1.msra.mxu0 %v2019
        %2307 = vmatprep.subr.mxu0 0.0
        %2308 = vmatpush1.msra.mxu0 %v2020
        %2309 = vmatprep.subr.mxu0 0.0
        %2310 = vmatpush1.msra.mxu0 %v2021
        %2311 = vmatprep.mubr.f32.mxu0 %v1817
        %2312 = vmatmul.mubr.f32.gmra.mrb[0].mxu0 %v1816
        %v2313 = vpop.f32.mrb[0].mxu0
        %v2314 = vadd.f32 %v2169, %v2313
        %v2315 = vpop.f32.mrb[0].mxu0
        %2316 = vmatprep.mubr.f32.mxu0 %v1826
        %2317 = vmatmul.mubr.f32.gmra.mrb[0].mxu0 %v1825
        %v2318 = vpop.f32.mrb[0].mxu0
        %v2319 = vadd.f32 %v2174, %v2318
        %v2320 = vpop.f32.mrb[0].mxu0
        %2321 = vmatprep.mubr.f32.mxu0 %v1835
        %2322 = vmatmul.mubr.f32.gmra.mrb[0].mxu0 %v1834
        %v2323 = vpop.f32.mrb[0].mxu0
        %v2324 = vadd.f32 %v2179, %v2323
        %v2325 = vpop.f32.mrb[0].mxu0
        %2326 = vmatprep.mubr.f32.mxu0 %v1844
        %2327 = vmatmul.mubr.f32.gmra.mrb[0].mxu0 %v1843
        %v2328 = vpop.f32.mrb[0].mxu0
        %v2329 = vadd.f32 %v2184, %v2328
        %v2330 = vpop.f32.mrb[0].mxu0
        %2331 = vmatprep.mubr.f32.mxu0 %v1853
        %2332 = vmatmul.mubr.f32.gmra.mrb[0].mxu0 %v1852
        %v2333 = vpop.f32.mrb[0].mxu0
        %v2334 = vadd.f32 %v2189, %v2333
        %v2335 = vpop.f32.mrb[0].mxu0
        %2336 = vmatprep.mubr.f32.mxu0 %v1862
        %2337 = vmatmul.mubr.f32.gmra.mrb[0].mxu0 %v1861
        %v2338 = vpop.f32.mrb[0].mxu0
        %v2339 = vadd.f32 %v2194, %v2338
        %v2340 = vpop.f32.mrb[0].mxu0
        %2341 = vmatprep.mubr.f32.mxu0 %v1871
        %2342 = vmatmul.mubr.f32.gmra.mrb[0].mxu0 %v1870
        %v2343 = vpop.f32.mrb[0].mxu0
        %v2344 = vadd.f32 %v2199, %v2343
        %v2345 = vpop.f32.mrb[0].mxu0
        %2346 = vmatprep.mubr.f32.mxu0 %v1880
        %2347 = vmatmul.mubr.f32.gmra.mrb[0].mxu0 %v1879
        %v2348 = vpop.f32.mrb[0].mxu0
        %v2349 = vadd.f32 %v2204, %v2348
        %v2350 = vpop.f32.mrb[0].mxu0
        %2351 = vmatprep.mubr.f32.mxu0 %v1889
        %2352 = vmatmul.mubr.f32.gmra.mrb[0].mxu0 %v1888
        %v2353 = vpop.f32.mrb[0].mxu0
        %v2354 = vadd.f32 %v2209, %v2353
        %v2355 = vpop.f32.mrb[0].mxu0
        %2356 = vmatprep.mubr.f32.mxu0 %v1898
        %2357 = vmatmul.mubr.f32.gmra.mrb[0].mxu0 %v1897
        %v2358 = vpop.f32.mrb[0].mxu0
        %v2359 = vadd.f32 %v2214, %v2358
        %v2360 = vpop.f32.mrb[0].mxu0
        %2361 = vmatprep.mubr.f32.mxu0 %v1907
        %2362 = vmatmul.mubr.f32.gmra.mrb[0].mxu0 %v1906
        %v2363 = vpop.f32.mrb[0].mxu0
        %v2364 = vadd.f32 %v2219, %v2363
        %v2365 = vpop.f32.mrb[0].mxu0
        %2366 = vmatprep.mubr.f32.mxu0 %v1916
        %2367 = vmatmul.mubr.f32.gmra.mrb[0].mxu0 %v1915
        %v2368 = vpop.f32.mrb[0].mxu0
        %v2369 = vadd.f32 %v2224, %v2368
        %v2370 = vpop.f32.mrb[0].mxu0
        %2371 = vmatprep.mubr.f32.mxu0 %v1925
        %2372 = vmatmul.mubr.f32.gmra.mrb[0].mxu0 %v1924
        %v2373 = vpop.f32.mrb[0].mxu0
        %v2374 = vadd.f32 %v2229, %v2373
        %v2375 = vpop.f32.mrb[0].mxu0
        %2376 = vmatprep.mubr.f32.mxu0 %v1934
        %2377 = vmatmul.mubr.f32.gmra.mrb[0].mxu0 %v1933
        %v2378 = vpop.f32.mrb[0].mxu0
        %v2379 = vadd.f32 %v2234, %v2378
        %v2380 = vpop.f32.mrb[0].mxu0
        %2381 = vmatprep.mubr.f32.mxu0 %v1943
        %2382 = vmatmul.mubr.f32.gmra.mrb[0].mxu0 %v1942
        %v2383 = vpop.f32.mrb[0].mxu0
        %v2384 = vadd.f32 %v2239, %v2383
        %v2385 = vpop.f32.mrb[0].mxu0
        %2386 = vmatprep.mubr.f32.mxu0 %v1952
        %2387 = vmatmul.mubr.f32.gmra.mrb[0].mxu0 %v1951
        %v2388 = vpop.f32.mrb[0].mxu0
        %v2389 = vadd.f32 %v2244, %v2388
        %v2390 = vpop.f32.mrb[0].mxu0
        %2391 = vdwg.mxu0
        %2392 = vmatprep.subr.mxu0 0.0
        %2393 = vmatpush1.msra.mxu0 %v2022
        %2394 = vmatprep.subr.mxu0 0.0
        %2395 = vmatpush1.msra.mxu0 %v2023
        %2396 = vmatprep.subr.mxu0 0.0
        %2397 = vmatpush1.msra.mxu0 %v2024
        %2398 = vmatprep.subr.mxu0 0.0
        %2399 = vmatpush1.msra.mxu0 %v2025
        %2400 = vmatprep.subr.mxu0 0.0
        %2401 = vmatpush1.msra.mxu0 %v2026
        %2402 = vmatprep.subr.mxu0 0.0
        %2403 = vmatpush1.msra.mxu0 %v2027
        %2404 = vmatprep.subr.mxu0 0.0
        %2405 = vmatpush1.msra.mxu0 %v2028
        %2406 = vmatprep.subr.mxu0 0.0
        %2407 = vmatpush1.msra.mxu0 %v2029
        %2408 = vmatprep.subr.mxu0 0.0
        %2409 = vmatpush1.msra.mxu0 %v2030
        %2410 = vmatprep.subr.mxu0 0.0
        %2411 = vmatpush1.msra.mxu0 %v2031
        %2412 = vmatprep.subr.mxu0 0.0
        %2413 = vmatpush1.msra.mxu0 %v2032
        %2414 = vmatprep.subr.mxu0 0.0
        %2415 = vmatpush1.msra.mxu0 %v2033
        %2416 = vmatprep.subr.mxu0 0.0
        %2417 = vmatpush1.msra.mxu0 %v2034
        %2418 = vmatprep.subr.mxu0 0.0
        %2419 = vmatpush1.msra.mxu0 %v2035
        %2420 = vmatprep.subr.mxu0 0.0
        %2421 = vmatpush1.msra.mxu0 %v2036
        %2422 = vmatprep.subr.mxu0 0.0
        %2423 = vmatpush1.msra.mxu0 %v2037
        %2424 = vmatprep.subr.mxu0 0.0
        %2425 = vmatpush1.msra.mxu0 %v2038
        %2426 = vmatprep.subr.mxu0 0.0
        %2427 = vmatpush1.msra.mxu0 %v2039
        %2428 = vmatprep.subr.mxu0 0.0
        %2429 = vmatpush1.msra.mxu0 %v2040
        %2430 = vmatprep.subr.mxu0 0.0
        %2431 = vmatpush1.msra.mxu0 %v2041
        %2432 = vmatprep.subr.mxu0 0.0
        %2433 = vmatpush1.msra.mxu0 %v2042
        %2434 = vmatprep.subr.mxu0 0.0
        %2435 = vmatpush1.msra.mxu0 %v2043
        %2436 = vmatprep.subr.mxu0 0.0
        %2437 = vmatpush1.msra.mxu0 %v2044
        %2438 = vmatprep.subr.mxu0 0.0
        %2439 = vmatpush1.msra.mxu0 %v2045
        %2440 = vmatprep.subr.mxu0 0.0
        %2441 = vmatpush1.msra.mxu0 %v2046
        %2442 = vmatprep.subr.mxu0 0.0
        %2443 = vmatpush1.msra.mxu0 %v2047
        %2444 = vmatprep.subr.mxu0 0.0
        %2445 = vmatpush1.msra.mxu0 %v2048
        %2446 = vmatprep.subr.mxu0 0.0
        %2447 = vmatpush1.msra.mxu0 %v2049
        %2448 = vmatprep.subr.mxu0 0.0
        %2449 = vmatpush1.msra.mxu0 %v2050
        %2450 = vmatprep.subr.mxu0 0.0
        %2451 = vmatpush1.msra.mxu0 %v2051
        %2452 = vmatprep.subr.mxu0 0.0
        %2453 = vmatpush1.msra.mxu0 %v2052
        %2454 = vmatprep.subr.mxu0 0.0
        %2455 = vmatpush1.msra.mxu0 %v2053
        %2456 = vmatprep.mubr.f32.mxu0 %v1819
        %2457 = vmatmul.mubr.f32.gmra.mrb[0].mxu0 %v1818
        %v2458 = vpop.f32.mrb[0].mxu0
        %v2459 = vadd.f32 %v2314, %v2458
        %v2460 = vpop.f32.mrb[0].mxu0
        %2461 = vmatprep.mubr.f32.mxu0 %v1828
        %2462 = vmatmul.mubr.f32.gmra.mrb[0].mxu0 %v1827
        %v2463 = vpop.f32.mrb[0].mxu0
        %v2464 = vadd.f32 %v2319, %v2463
        %v2465 = vpop.f32.mrb[0].mxu0
        %2466 = vmatprep.mubr.f32.mxu0 %v1837
        %2467 = vmatmul.mubr.f32.gmra.mrb[0].mxu0 %v1836
        %v2468 = vpop.f32.mrb[0].mxu0
        %v2469 = vadd.f32 %v2324, %v2468
        %v2470 = vpop.f32.mrb[0].mxu0
        %2471 = vmatprep.mubr.f32.mxu0 %v1846
        %2472 = vmatmul.mubr.f32.gmra.mrb[0].mxu0 %v1845
        %v2473 = vpop.f32.mrb[0].mxu0
        %v2474 = vadd.f32 %v2329, %v2473
        %v2475 = vpop.f32.mrb[0].mxu0
        %2476 = vmatprep.mubr.f32.mxu0 %v1855
        %2477 = vmatmul.mubr.f32.gmra.mrb[0].mxu0 %v1854
        %v2478 = vpop.f32.mrb[0].mxu0
        %v2479 = vadd.f32 %v2334, %v2478
        %v2480 = vpop.f32.mrb[0].mxu0
        %2481 = vmatprep.mubr.f32.mxu0 %v1864
        %2482 = vmatmul.mubr.f32.gmra.mrb[0].mxu0 %v1863
        %v2483 = vpop.f32.mrb[0].mxu0
        %v2484 = vadd.f32 %v2339, %v2483
        %v2485 = vpop.f32.mrb[0].mxu0
        %2486 = vmatprep.mubr.f32.mxu0 %v1873
        %2487 = vmatmul.mubr.f32.gmra.mrb[0].mxu0 %v1872
        %v2488 = vpop.f32.mrb[0].mxu0
        %v2489 = vadd.f32 %v2344, %v2488
        %v2490 = vpop.f32.mrb[0].mxu0
        %2491 = vmatprep.mubr.f32.mxu0 %v1882
        %2492 = vmatmul.mubr.f32.gmra.mrb[0].mxu0 %v1881
        %v2493 = vpop.f32.mrb[0].mxu0
        %v2494 = vadd.f32 %v2349, %v2493
        %v2495 = vpop.f32.mrb[0].mxu0
        %2496 = vmatprep.mubr.f32.mxu0 %v1891
        %2497 = vmatmul.mubr.f32.gmra.mrb[0].mxu0 %v1890
        %v2498 = vpop.f32.mrb[0].mxu0
        %v2499 = vadd.f32 %v2354, %v2498
        %v2500 = vpop.f32.mrb[0].mxu0
        %2501 = vmatprep.mubr.f32.mxu0 %v1900
        %2502 = vmatmul.mubr.f32.gmra.mrb[0].mxu0 %v1899
        %v2503 = vpop.f32.mrb[0].mxu0
        %v2504 = vadd.f32 %v2359, %v2503
        %v2505 = vpop.f32.mrb[0].mxu0
        %2506 = vmatprep.mubr.f32.mxu0 %v1909
        %2507 = vmatmul.mubr.f32.gmra.mrb[0].mxu0 %v1908
        %v2508 = vpop.f32.mrb[0].mxu0
        %v2509 = vadd.f32 %v2364, %v2508
        %v2510 = vpop.f32.mrb[0].mxu0
        %2511 = vmatprep.mubr.f32.mxu0 %v1918
        %2512 = vmatmul.mubr.f32.gmra.mrb[0].mxu0 %v1917
        %v2513 = vpop.f32.mrb[0].mxu0
        %v2514 = vadd.f32 %v2369, %v2513
        %v2515 = vpop.f32.mrb[0].mxu0
        %2516 = vmatprep.mubr.f32.mxu0 %v1927
        %2517 = vmatmul.mubr.f32.gmra.mrb[0].mxu0 %v1926
        %v2518 = vpop.f32.mrb[0].mxu0
        %v2519 = vadd.f32 %v2374, %v2518
        %v2520 = vpop.f32.mrb[0].mxu0
        %2521 = vmatprep.mubr.f32.mxu0 %v1936
        %2522 = vmatmul.mubr.f32.gmra.mrb[0].mxu0 %v1935
        %v2523 = vpop.f32.mrb[0].mxu0
        %v2524 = vadd.f32 %v2379, %v2523
        %v2525 = vpop.f32.mrb[0].mxu0
        %2526 = vmatprep.mubr.f32.mxu0 %v1945
        %2527 = vmatmul.mubr.f32.gmra.mrb[0].mxu0 %v1944
        %v2528 = vpop.f32.mrb[0].mxu0
        %v2529 = vadd.f32 %v2384, %v2528
        %v2530 = vpop.f32.mrb[0].mxu0
        %2531 = vmatprep.mubr.f32.mxu0 %v1954
        %2532 = vmatmul.mubr.f32.gmra.mrb[0].mxu0 %v1953
        %v2533 = vpop.f32.mrb[0].mxu0
        %v2534 = vadd.f32 %v2389, %v2533
        %v2535 = vpop.f32.mrb[0].mxu0
        %2536 = vdwg.mxu0
        %2537 = vmatprep.subr.mxu0 0.0
        %2538 = vmatpush1.msra.mxu0 %v2054
        %2539 = vmatprep.subr.mxu0 0.0
        %2540 = vmatpush1.msra.mxu0 %v2055
        %2541 = vmatprep.subr.mxu0 0.0
        %2542 = vmatpush1.msra.mxu0 %v2056
        %2543 = vmatprep.subr.mxu0 0.0
        %2544 = vmatpush1.msra.mxu0 %v2057
        %2545 = vmatprep.subr.mxu0 0.0
        %2546 = vmatpush1.msra.mxu0 %v2058
        %2547 = vmatprep.subr.mxu0 0.0
        %2548 = vmatpush1.msra.mxu0 %v2059
        %2549 = vmatprep.subr.mxu0 0.0
        %2550 = vmatpush1.msra.mxu0 %v2060
        %2551 = vmatprep.subr.mxu0 0.0
        %2552 = vmatpush1.msra.mxu0 %v2061
        %2553 = vmatprep.subr.mxu0 0.0
        %2554 = vmatpush1.msra.mxu0 %v2062
        %2555 = vmatprep.subr.mxu0 0.0
        %2556 = vmatpush1.msra.mxu0 %v2063
        %2557 = vmatprep.subr.mxu0 0.0
        %2558 = vmatpush1.msra.mxu0 %v2064
        %2559 = vmatprep.subr.mxu0 0.0
        %2560 = vmatpush1.msra.mxu0 %v2065
        %2561 = vmatprep.subr.mxu0 0.0
        %2562 = vmatpush1.msra.mxu0 %v2066
        %2563 = vmatprep.subr.mxu0 0.0
        %2564 = vmatpush1.msra.mxu0 %v2067
        %2565 = vmatprep.subr.mxu0 0.0
        %2566 = vmatpush1.msra.mxu0 %v2068
        %2567 = vmatprep.subr.mxu0 0.0
        %2568 = vmatpush1.msra.mxu0 %v2069
        %2569 = vmatprep.subr.mxu0 0.0
        %2570 = vmatpush1.msra.mxu0 %v2070
        %2571 = vmatprep.subr.mxu0 0.0
        %2572 = vmatpush1.msra.mxu0 %v2071
        %2573 = vmatprep.subr.mxu0 0.0
        %2574 = vmatpush1.msra.mxu0 %v2072
        %2575 = vmatprep.subr.mxu0 0.0
        %2576 = vmatpush1.msra.mxu0 %v2073
        %2577 = vmatprep.subr.mxu0 0.0
        %2578 = vmatpush1.msra.mxu0 %v2074
        %2579 = vmatprep.subr.mxu0 0.0
        %2580 = vmatpush1.msra.mxu0 %v2075
        %2581 = vmatprep.subr.mxu0 0.0
        %2582 = vmatpush1.msra.mxu0 %v2076
        %2583 = vmatprep.subr.mxu0 0.0
        %2584 = vmatpush1.msra.mxu0 %v2077
        %2585 = vmatprep.subr.mxu0 0.0
        %2586 = vmatpush1.msra.mxu0 %v2078
        %2587 = vmatprep.subr.mxu0 0.0
        %2588 = vmatpush1.msra.mxu0 %v2079
        %2589 = vmatprep.subr.mxu0 0.0
        %2590 = vmatpush1.msra.mxu0 %v2080
        %2591 = vmatprep.subr.mxu0 0.0
        %2592 = vmatpush1.msra.mxu0 %v2081
        %2593 = vmatprep.subr.mxu0 0.0
        %2594 = vmatpush1.msra.mxu0 %v2082
        %2595 = vmatprep.subr.mxu0 0.0
        %2596 = vmatpush1.msra.mxu0 %v2083
        %2597 = vmatprep.subr.mxu0 0.0
        %2598 = vmatpush1.msra.mxu0 %v2084
        %2599 = vmatprep.subr.mxu0 0.0
        %2600 = vmatpush1.msra.mxu0 %v2085
        %2601 = vmatprep.mubr.f32.mxu0 %v1821
        %2602 = vmatmul.mubr.f32.gmra.mrb[0].mxu0 %v1820
        %v2603 = vpop.f32.mrb[0].mxu0
        %v2604 = vadd.f32 %v2459, %v2603
        %v2605 = vpop.f32.mrb[0].mxu0
        %2606 = vmatprep.mubr.f32.mxu0 %v1830
        %2607 = vmatmul.mubr.f32.gmra.mrb[0].mxu0 %v1829
        %v2608 = vpop.f32.mrb[0].mxu0
        %v2609 = vadd.f32 %v2464, %v2608
        %v2610 = vpop.f32.mrb[0].mxu0
        %2611 = vmatprep.mubr.f32.mxu0 %v1839
        %2612 = vmatmul.mubr.f32.gmra.mrb[0].mxu0 %v1838
        %v2613 = vpop.f32.mrb[0].mxu0
        %v2614 = vadd.f32 %v2469, %v2613
        %v2615 = vpop.f32.mrb[0].mxu0
        %2616 = vmatprep.mubr.f32.mxu0 %v1848
        %2617 = vmatmul.mubr.f32.gmra.mrb[0].mxu0 %v1847
        %v2618 = vpop.f32.mrb[0].mxu0
        %v2619 = vadd.f32 %v2474, %v2618
        %v2620 = vpop.f32.mrb[0].mxu0
        %2621 = vmatprep.mubr.f32.mxu0 %v1857
        %2622 = vmatmul.mubr.f32.gmra.mrb[0].mxu0 %v1856
        %v2623 = vpop.f32.mrb[0].mxu0
        %v2624 = vadd.f32 %v2479, %v2623
        %v2625 = vpop.f32.mrb[0].mxu0
        %2626 = vmatprep.mubr.f32.mxu0 %v1866
        %2627 = vmatmul.mubr.f32.gmra.mrb[0].mxu0 %v1865
        %v2628 = vpop.f32.mrb[0].mxu0
        %v2629 = vadd.f32 %v2484, %v2628
        %v2630 = vpop.f32.mrb[0].mxu0
        %2631 = vmatprep.mubr.f32.mxu0 %v1875
        %2632 = vmatmul.mubr.f32.gmra.mrb[0].mxu0 %v1874
        %v2633 = vpop.f32.mrb[0].mxu0
        %v2634 = vadd.f32 %v2489, %v2633
        %v2635 = vpop.f32.mrb[0].mxu0
        %2636 = vmatprep.mubr.f32.mxu0 %v1884
        %2637 = vmatmul.mubr.f32.gmra.mrb[0].mxu0 %v1883
        %v2638 = vpop.f32.mrb[0].mxu0
        %v2639 = vadd.f32 %v2494, %v2638
        %v2640 = vpop.f32.mrb[0].mxu0
        %2641 = vmatprep.mubr.f32.mxu0 %v1893
        %2642 = vmatmul.mubr.f32.gmra.mrb[0].mxu0 %v1892
        %v2643 = vpop.f32.mrb[0].mxu0
        %v2644 = vadd.f32 %v2499, %v2643
        %v2645 = vpop.f32.mrb[0].mxu0
        %2646 = vmatprep.mubr.f32.mxu0 %v1902
        %2647 = vmatmul.mubr.f32.gmra.mrb[0].mxu0 %v1901
        %v2648 = vpop.f32.mrb[0].mxu0
        %v2649 = vadd.f32 %v2504, %v2648
        %v2650 = vpop.f32.mrb[0].mxu0
        %2651 = vmatprep.mubr.f32.mxu0 %v1911
        %2652 = vmatmul.mubr.f32.gmra.mrb[0].mxu0 %v1910
        %v2653 = vpop.f32.mrb[0].mxu0
        %v2654 = vadd.f32 %v2509, %v2653
        %v2655 = vpop.f32.mrb[0].mxu0
        %2656 = vmatprep.mubr.f32.mxu0 %v1920
        %2657 = vmatmul.mubr.f32.gmra.mrb[0].mxu0 %v1919
        %v2658 = vpop.f32.mrb[0].mxu0
        %v2659 = vadd.f32 %v2514, %v2658
        %v2660 = vpop.f32.mrb[0].mxu0
        %2661 = vmatprep.mubr.f32.mxu0 %v1929
        %2662 = vmatmul.mubr.f32.gmra.mrb[0].mxu0 %v1928
        %v2663 = vpop.f32.mrb[0].mxu0
        %v2664 = vadd.f32 %v2519, %v2663
        %v2665 = vpop.f32.mrb[0].mxu0
        %2666 = vmatprep.mubr.f32.mxu0 %v1938
        %2667 = vmatmul.mubr.f32.gmra.mrb[0].mxu0 %v1937
        %v2668 = vpop.f32.mrb[0].mxu0
        %v2669 = vadd.f32 %v2524, %v2668
        %v2670 = vpop.f32.mrb[0].mxu0
        %2671 = vmatprep.mubr.f32.mxu0 %v1947
        %2672 = vmatmul.mubr.f32.gmra.mrb[0].mxu0 %v1946
        %v2673 = vpop.f32.mrb[0].mxu0
        %v2674 = vadd.f32 %v2529, %v2673
        %v2675 = vpop.f32.mrb[0].mxu0
        %2676 = vmatprep.mubr.f32.mxu0 %v1956
        %2677 = vmatmul.mubr.f32.gmra.mrb[0].mxu0 %v1955
        %v2678 = vpop.f32.mrb[0].mxu0
        %v2679 = vadd.f32 %v2534, %v2678
        %v2680 = vpop.f32.mrb[0].mxu0
        %2681 = vdwg.mxu0
        %2682 = vmatprep.subr.mxu0 0.0
        %2683 = vmatpush1.msra.mxu0 %v2086
        %2684 = vmatprep.subr.mxu0 0.0
        %2685 = vmatpush1.msra.mxu0 %v2087
        %2686 = vmatprep.subr.mxu0 0.0
        %2687 = vmatpush1.msra.mxu0 %v2088
        %2688 = vmatprep.subr.mxu0 0.0
        %2689 = vmatpush1.msra.mxu0 %v2089
        %2690 = vmatprep.subr.mxu0 0.0
        %2691 = vmatpush1.msra.mxu0 %v2090
        %2692 = vmatprep.subr.mxu0 0.0
        %2693 = vmatpush1.msra.mxu0 %v2091
        %2694 = vmatprep.subr.mxu0 0.0
        %2695 = vmatpush1.msra.mxu0 %v2092
        %2696 = vmatprep.subr.mxu0 0.0
        %2697 = vmatpush1.msra.mxu0 %v2093
        %2698 = vmatprep.subr.mxu0 0.0
        %2699 = vmatpush1.msra.mxu0 %v2094
        %2700 = vmatprep.subr.mxu0 0.0
        %2701 = vmatpush1.msra.mxu0 %v2095
        %2702 = vmatprep.subr.mxu0 0.0
        %2703 = vmatpush1.msra.mxu0 %v2096
        %2704 = vmatprep.subr.mxu0 0.0
        %2705 = vmatpush1.msra.mxu0 %v2097
        %2706 = vmatprep.subr.mxu0 0.0
        %2707 = vmatpush1.msra.mxu0 %v2098
        %2708 = vmatprep.subr.mxu0 0.0
        %2709 = vmatpush1.msra.mxu0 %v2099
        %2710 = vmatprep.subr.mxu0 0.0
        %2711 = vmatpush1.msra.mxu0 %v2100
        %2712 = vmatprep.subr.mxu0 0.0
        %2713 = vmatpush1.msra.mxu0 %v2101
        %2714 = vmatprep.subr.mxu0 0.0
        %2715 = vmatpush1.msra.mxu0 0.0
        %2716 = vmatprep.subr.mxu0 0.0
        %2717 = vmatpush1.msra.mxu0 0.0
        %2718 = vmatprep.subr.mxu0 0.0
        %2719 = vmatpush1.msra.mxu0 0.0
        %2720 = vmatprep.subr.mxu0 0.0
        %2721 = vmatpush1.msra.mxu0 0.0
        %2722 = vmatprep.subr.mxu0 0.0
        %2723 = vmatpush1.msra.mxu0 0.0
        %2724 = vmatprep.subr.mxu0 0.0
        %2725 = vmatpush1.msra.mxu0 0.0
        %2726 = vmatprep.subr.mxu0 0.0
        %2727 = vmatpush1.msra.mxu0 0.0
        %2728 = vmatprep.subr.mxu0 0.0
        %2729 = vmatpush1.msra.mxu0 0.0
        %2730 = vmatprep.subr.mxu0 0.0
        %2731 = vmatpush1.msra.mxu0 0.0
        %2732 = vmatprep.subr.mxu0 0.0
        %2733 = vmatpush1.msra.mxu0 0.0
        %2734 = vmatprep.subr.mxu0 0.0
        %2735 = vmatpush1.msra.mxu0 0.0
        %2736 = vmatprep.subr.mxu0 0.0
        %2737 = vmatpush1.msra.mxu0 0.0
        %2738 = vmatprep.subr.mxu0 0.0
        %2739 = vmatpush1.msra.mxu0 0.0
        %2740 = vmatprep.subr.mxu0 0.0
        %2741 = vmatpush1.msra.mxu0 0.0
        %2742 = vmatprep.subr.mxu0 0.0
        %2743 = vmatpush1.msra.mxu0 0.0
        %2744 = vmatprep.subr.mxu0 0.0
        %2745 = vmatpush1.msra.mxu0 0.0
        %2746 = vmatprep.mubr.f32.mxu0 0.0
        %2747 = vmatmul.mubr.f32.gmra.mrb[0].mxu0 %v1822
        %v2748 = vpop.f32.mrb[0].mxu0
        %v2749 = vadd.f32 %v2604, %v2748
        %v2750 = vpop.f32.mrb[0].mxu0
        %2751 = vmatprep.mubr.f32.mxu0 0.0
        %2752 = vmatmul.mubr.f32.gmra.mrb[0].mxu0 %v1831
        %v2753 = vpop.f32.mrb[0].mxu0
        %v2754 = vadd.f32 %v2609, %v2753
        %v2755 = vpop.f32.mrb[0].mxu0
        %2756 = vmatprep.mubr.f32.mxu0 0.0
        %2757 = vmatmul.mubr.f32.gmra.mrb[0].mxu0 %v1840
        %v2758 = vpop.f32.mrb[0].mxu0
        %v2759 = vadd.f32 %v2614, %v2758
        %v2760 = vpop.f32.mrb[0].mxu0
        %2761 = vmatprep.mubr.f32.mxu0 0.0
        %2762 = vmatmul.mubr.f32.gmra.mrb[0].mxu0 %v1849
        %v2763 = vpop.f32.mrb[0].mxu0
        %v2764 = vadd.f32 %v2619, %v2763
        %v2765 = vpop.f32.mrb[0].mxu0
        %2766 = vmatprep.mubr.f32.mxu0 0.0
        %2767 = vmatmul.mubr.f32.gmra.mrb[0].mxu0 %v1858
        %v2768 = vpop.f32.mrb[0].mxu0
        %v2769 = vadd.f32 %v2624, %v2768
        %v2770 = vpop.f32.mrb[0].mxu0
        %2771 = vmatprep.mubr.f32.mxu0 0.0
        %2772 = vmatmul.mubr.f32.gmra.mrb[0].mxu0 %v1867
        %v2773 = vpop.f32.mrb[0].mxu0
        %v2774 = vadd.f32 %v2629, %v2773
        %v2775 = vpop.f32.mrb[0].mxu0
        %2776 = vmatprep.mubr.f32.mxu0 0.0
        %2777 = vmatmul.mubr.f32.gmra.mrb[0].mxu0 %v1876
        %v2778 = vpop.f32.mrb[0].mxu0
        %v2779 = vadd.f32 %v2634, %v2778
        %v2780 = vpop.f32.mrb[0].mxu0
        %2781 = vmatprep.mubr.f32.mxu0 0.0
        %2782 = vmatmul.mubr.f32.gmra.mrb[0].mxu0 %v1885
        %v2783 = vpop.f32.mrb[0].mxu0
        %v2784 = vadd.f32 %v2639, %v2783
        %v2785 = vpop.f32.mrb[0].mxu0
        %2786 = vmatprep.mubr.f32.mxu0 0.0
        %2787 = vmatmul.mubr.f32.gmra.mrb[0].mxu0 %v1894
        %v2788 = vpop.f32.mrb[0].mxu0
        %v2789 = vadd.f32 %v2644, %v2788
        %v2790 = vpop.f32.mrb[0].mxu0
        %2791 = vmatprep.mubr.f32.mxu0 0.0
        %2792 = vmatmul.mubr.f32.gmra.mrb[0].mxu0 %v1903
        %v2793 = vpop.f32.mrb[0].mxu0
        %v2794 = vadd.f32 %v2649, %v2793
        %v2795 = vpop.f32.mrb[0].mxu0
        %2796 = vmatprep.mubr.f32.mxu0 0.0
        %2797 = vmatmul.mubr.f32.gmra.mrb[0].mxu0 %v1912
        %v2798 = vpop.f32.mrb[0].mxu0
        %v2799 = vadd.f32 %v2654, %v2798
        %v2800 = vpop.f32.mrb[0].mxu0
        %2801 = vmatprep.mubr.f32.mxu0 0.0
        %2802 = vmatmul.mubr.f32.gmra.mrb[0].mxu0 %v1921
        %v2803 = vpop.f32.mrb[0].mxu0
        %v2804 = vadd.f32 %v2659, %v2803
        %v2805 = vpop.f32.mrb[0].mxu0
        %2806 = vmatprep.mubr.f32.mxu0 0.0
        %2807 = vmatmul.mubr.f32.gmra.mrb[0].mxu0 %v1930
        %v2808 = vpop.f32.mrb[0].mxu0
        %v2809 = vadd.f32 %v2664, %v2808
        %v2810 = vpop.f32.mrb[0].mxu0
        %2811 = vmatprep.mubr.f32.mxu0 0.0
        %2812 = vmatmul.mubr.f32.gmra.mrb[0].mxu0 %v1939
        %v2813 = vpop.f32.mrb[0].mxu0
        %v2814 = vadd.f32 %v2669, %v2813
        %v2815 = vpop.f32.mrb[0].mxu0
        %2816 = vmatprep.mubr.f32.mxu0 0.0
        %2817 = vmatmul.mubr.f32.gmra.mrb[0].mxu0 %v1948
        %v2818 = vpop.f32.mrb[0].mxu0
        %v2819 = vadd.f32 %v2674, %v2818
        %v2820 = vpop.f32.mrb[0].mxu0
        %2821 = vmatprep.mubr.f32.mxu0 0.0
        %2822 = vmatmul.mubr.f32.gmra.mrb[0].mxu0 %v1957
        %v2823 = vpop.f32.mrb[0].mxu0
        %v2824 = vadd.f32 %v2679, %v2823
        %v2825 = vpop.f32.mrb[0].mxu0
        %2826 = vdwg.mxu0
        %v2827 = vld [vmem:[%s5] sm:$0x1]
        %v2829 = vlaneseq
        %v2830 = vshrl.u32 %v2829, 7
        %v2831 = vsub.s32 0, %v2830
        %v2832 = vrot.slane %v2827, %v2831
        %v2834 = vmul.f32 %v2749, %v2832
        %v2835 = vmul.f32 %v2754, %v2832
        %v2836 = vmul.f32 %v2759, %v2832
        %v2837 = vmul.f32 %v2764, %v2832
        %v2838 = vmul.f32 %v2769, %v2832
        %v2839 = vmul.f32 %v2774, %v2832
        %v2840 = vmul.f32 %v2779, %v2832
        %v2841 = vmul.f32 %v2784, %v2832
        %v2842 = vmul.f32 %v2789, %v2832
        %v2843 = vmul.f32 %v2794, %v2832
        %v2844 = vmul.f32 %v2799, %v2832
        %v2845 = vmul.f32 %v2804, %v2832
        %v2846 = vmul.f32 %v2809, %v2832
        %v2847 = vmul.f32 %v2814, %v2832
        %v2848 = vmul.f32 %v2819, %v2832
        %v2849 = vmul.f32 %v2824, %v2832
        %v2850 = vld [vmem:[%s6] sm:$0x1]
        %v2852 = vlaneseq
        %v2853 = vshrl.u32 %v2852, 7
        %v2854 = vsub.s32 0, %v2853
        %v2855 = vrot.slane %v2850, %v2854
        %v2857 = vadd.f32 %v2834, %v2855
        %v2858 = vadd.f32 %v2835, %v2855
        %v2859 = vadd.f32 %v2836, %v2855
        %v2860 = vadd.f32 %v2837, %v2855
        %v2861 = vadd.f32 %v2838, %v2855
        %v2862 = vadd.f32 %v2839, %v2855
        %v2863 = vadd.f32 %v2840, %v2855
        %v2864 = vadd.f32 %v2841, %v2855
        %v2865 = vadd.f32 %v2842, %v2855
        %v2866 = vadd.f32 %v2843, %v2855
        %v2867 = vadd.f32 %v2844, %v2855
        %v2868 = vadd.f32 %v2845, %v2855
        %v2869 = vadd.f32 %v2846, %v2855
        %v2870 = vadd.f32 %v2847, %v2855
        %v2871 = vadd.f32 %v2848, %v2855
        %v2872 = vadd.f32 %v2849, %v2855
        %v2873 = vmax.f32 %v2857, 0.0
        %v2874 = vmax.f32 %v2858, 0.0
        %v2875 = vmax.f32 %v2859, 0.0
        %v2876 = vmax.f32 %v2860, 0.0
        %v2877 = vmax.f32 %v2861, 0.0
        %v2878 = vmax.f32 %v2862, 0.0
        %v2879 = vmax.f32 %v2863, 0.0
        %v2880 = vmax.f32 %v2864, 0.0
        %v2881 = vmax.f32 %v2865, 0.0
        %v2882 = vmax.f32 %v2866, 0.0
        %v2883 = vmax.f32 %v2867, 0.0
        %v2884 = vmax.f32 %v2868, 0.0
        %v2885 = vmax.f32 %v2869, 0.0
        %v2886 = vmax.f32 %v2870, 0.0
        %v2887 = vmax.f32 %v2871, 0.0
        %v2888 = vmax.f32 %v2872, 0.0
        %2889 = vst [vmem:[%s289] sm:$0xff] %v2873
        %2890 = vst [vmem:[%s289 + $0x8] sm:$0xff] %v2874
        %2891 = vst [vmem:[%s289 + $0x10] sm:$0xff] %v2875
        %2892 = vst [vmem:[%s289 + $0x18] sm:$0xff] %v2876
        %2893 = vst [vmem:[%s289 + $0x20] sm:$0xff] %v2877
        %2894 = vst [vmem:[%s289 + $0x28] sm:$0xff] %v2878
        %2895 = vst [vmem:[%s289 + $0x30] sm:$0xff] %v2879
        %2896 = vst [vmem:[%s289 + $0x38] sm:$0xff] %v2880
        %2897 = vst [vmem:[%s289 + $0x40] sm:$0xff] %v2881
        %2898 = vst [vmem:[%s289 + $0x48] sm:$0xff] %v2882
        %2899 = vst [vmem:[%s289 + $0x50] sm:$0xff] %v2883
        %2900 = vst [vmem:[%s289 + $0x58] sm:$0xff] %v2884
        %2901 = vst [vmem:[%s289 + $0x60] sm:$0xff] %v2885
        %2902 = vst [vmem:[%s289 + $0x68] sm:$0xff] %v2886
        %2903 = vst [vmem:[%s289 + $0x70] sm:$0xff] %v2887
        %2904 = vst [vmem:[%s289 + $0x78] sm:$0xff] %v2888
        %s2905 = sand.u32 %s182, 1
        %s2906 = scalar_lea.sflag [#allocation7], %s2905
        %s2907 = sand.u32 %s182, 1
        %s2908 = smul.addr %s2907, 128
        %s2909 = scalar_lea.vmem [#allocation8], %s2908
        // Predicated region
        $region53: #{tpu_custom_call.1} parent=47 // pred_check
          %p2910 = pneg %p192
        $region54: #{tpu_custom_call.1} parent=47 // pred_check_branch
          %2912 = sbr.rel (%p2910) target = $region56
        $region55: #{tpu_custom_call.1} parent=47 // pred_region
          %s2913 = smul.u32 2, %s22
          %s2915 = ssub.s32 2048, 2048
          %2916 = vsyncadd %s2906, %s2915
          %s2917 = smul.addr %s2913, 8
          %s2918 = smul.addr %s2917, 128
          %s2919 = scalar_lea.hbm %s7, %s2918
          %s2920 = sshll.u32 %s2909, 4
          %s2921 = int_to_ptr.vmem [resolvable:$true] %s2920
          %2926 = dma.vmem_to_hbm [thread:$0]  %s2921, 2048, %s2919, %s2906, 128, 128, 8
        $region56: #{tpu_custom_call.1} parent=47 // pred_fallthru
          _
      $region48: #{tpu_custom_call.1} parent=5 // pred_fallthru
        _
      %p2927 = scmp.le.s32.totalorder 2, %s17
      // Predicated region
      $region57: #{tpu_custom_call.1} parent=5 // pred_check
        %p2928 = pneg %p2927
      $region58: #{tpu_custom_call.1} parent=5 // pred_check_branch
        %2930 = sbr.rel (%p2928) target = $region60
      $region59: #{tpu_custom_call.1} parent=5 // pred_region
        %s2931 = ssub.s32 %s17, 2
        // Predicated region
        $region61: #{tpu_custom_call.1} parent=59 // pred_check
          %p2932 = pneg %p198
        $region62: #{tpu_custom_call.1} parent=59 // pred_check_branch
          %2934 = sbr.rel (%p2932) target = $region64
        $region63: #{tpu_custom_call.1} parent=59 // pred_region
          %s2935 = sand.u32 %s183, 1
          %s2936 = scalar_lea.sflag [#allocation7], %s2935
          %s2937 = sand.u32 %s183, 1
          %s2938 = smul.addr %s2937, 128
          %s2939 = scalar_lea.vmem [#allocation8], %s2938
          %2940 = dma.done %s2936, 2048
        $region64: #{tpu_custom_call.1} parent=59 // pred_fallthru
          _
      $region60: #{tpu_custom_call.1} parent=5 // pred_fallthru
        _
    $region6: #{tpu_custom_call.1} parent=1 // loop_footer
      %s21 = sadd.s32 1, %s17
    $region7: #{tpu_custom_call.1} parent=1 // loop_footer_branch
      %16 = sbr.rel target = $region3
    $region8: #{tpu_custom_call.1} parent=1 // loop_exit
      _
    %2941 = vsyncpa [#allocation6], 1
    %s2942 = scalar_lea.sflag [#allocation6], 1
    %2943 = vsyncpa %s2942, 1
    %2944 = vsyncpa [#allocation7], 1
    %s2945 = scalar_lea.sflag [#allocation7], 1
    %2946 = vsyncpa %s2945, 1

</llo_original>
